<compile_context>
chip_gen: v7x
topology: tpu7x:2x2x1
jax: 0.10.0
libtpu: 0.0.40
codegen_flags: <defaults>
</compile_context>

<pallas_src>
import functools
import math

import jax
import jax.numpy as jnp
import numpy as np
from jax.experimental import pallas as pl
from jax.experimental.pallas import tpu as pltpu


def _conv_qkv_kernel(xp_ref, wc_ref, wqkv_ref, b_ref, qkv_ref, *, h, w):
    """3x3 same-conv (9 accumulated matmuls) + fused QKV projection, one batch elem."""
    f32 = jnp.float32
    n = h * w
    cp = wqkv_ref.shape[0]
    acc = jnp.zeros((n, cp), f32)
    for t in range(9):
        ky, kx = t // 3, t % 3
        # static halo slice of the padded NHWC block -> (h, w, cp) -> (n, cp)
        patch = xp_ref[0, ky:ky + h, kx:kx + w, :].reshape(n, cp)
        acc = acc + jnp.dot(patch.astype(jnp.bfloat16), wc_ref[t],
                            preferred_element_type=f32)
    y = acc.astype(jnp.bfloat16)
    # fused Q|K|V projection; conv bias + 1/sqrt(d_k) already folded into b/w
    qkv = jnp.dot(y, wqkv_ref[...], preferred_element_type=f32) + b_ref[...]
    qkv_ref[0] = qkv.astype(qkv_ref.dtype)


def _attn_kernel(q_ref, k_ref, v_ref, wo_ref, bo_ref, o_ref):
    """Attention for one (batch, query-tile): softmax(Q K^T) V @ Wo + bo."""
    f32 = jnp.float32
    q = q_ref[0]                       # (tq, cp) bf16, 1/sqrt(d_k) pre-folded
    k = k_ref[0]                       # (n,  cp) bf16
    v = v_ref[0]                       # (n,  cp) bf16
    # Q K^T without materializing a transposed K tile.
    s = jax.lax.dot_general(q, k, (((1,), (1,)), ((), ())),
                            preferred_element_type=f32)          # (tq, n)
    s = s - jnp.max(s, axis=-1, keepdims=True)
    p = jnp.exp(s)
    denom = jnp.sum(p, axis=-1, keepdims=True)                   # (tq, 1)
    ctx = jnp.dot(p.astype(jnp.bfloat16), v, preferred_element_type=f32)
    ctx = ctx * pl.reciprocal(denom, approx=True)                # normalize post-PV
    out = jnp.dot(ctx.astype(jnp.bfloat16), wo_ref[...],
                  preferred_element_type=f32) + bo_ref[...]
    o_ref[0] = out.astype(o_ref.dtype)
    # TODO(synk): attention dropout (p=0.1) is identity in eval mode; not implemented.


def _round_up(v, m):
    return (v + m - 1) // m * m


def position_attention_module(x, params):
    """x: (bs, C, H, W) float32 NCHW.  Returns (bs, H*W, C) like the PyTorch module."""
    w_conv, b_conv, wq, bq, wk, bk, wv, bv, wo, bo = params
    bs, c, h, w = x.shape
    n = h * w
    cp = _round_up(c, 128)                 # lane-dense feature width
    pad_c = cp - c
    scale = 1.0 / math.sqrt(c)             # d_k == d_model == C, h == 1

    # ---- parameter repacking (plain JAX glue) -----------------------------
    def pad2(m):
        return jnp.pad(m, ((0, pad_c), (0, pad_c)))

    # conv taps as (in, out) matmul matrices, one per (ky, kx)
    wc_taps = jnp.stack([w_conv[:, :, ky, kx].T
                         for ky in range(3) for kx in range(3)], axis=0)
    wc_taps = jnp.pad(wc_taps, ((0, 0), (0, pad_c), (0, pad_c))).astype(jnp.bfloat16)

    # fused Q|K|V weights, 1/sqrt(d_k) folded into the Q block
    w_qkv_f32 = jnp.concatenate([pad2(wq) * scale, pad2(wk), pad2(wv)], axis=1)
    b_qkv = jnp.concatenate([jnp.pad(bq, (0, pad_c)) * scale,
                             jnp.pad(bk, (0, pad_c)),
                             jnp.pad(bv, (0, pad_c))])
    bc_p = jnp.pad(b_conv, (0, pad_c))
    b_fused = (bc_p @ w_qkv_f32 + b_qkv).reshape(1, 3 * cp)       # conv bias folded through
    w_qkv = w_qkv_f32.astype(jnp.bfloat16)

    wo_p = pad2(wo).astype(jnp.bfloat16)
    bo_p = jnp.pad(bo, (0, pad_c)).reshape(1, cp)

    # activation: NCHW -> zero-padded NHWC with lane-dense channels (no im2col)
    xp = jnp.transpose(x, (0, 2, 3, 1))
    xp = jnp.pad(xp, ((0, 0), (1, 1), (1, 1), (0, pad_c)))

    # ---- kernel 1: conv + fused QKV projection -----------------------------
    qkv = pl.pallas_call(
        functools.partial(_conv_qkv_kernel, h=h, w=w),
        out_shape=jax.ShapeDtypeStruct((bs, n, 3 * cp), jnp.bfloat16),
        grid=(bs,),
        in_specs=[
            pl.BlockSpec((1, h + 2, w + 2, cp), lambda b: (b, 0, 0, 0)),
            pl.BlockSpec((9, cp, cp), lambda b: (0, 0, 0)),
            pl.BlockSpec((cp, 3 * cp), lambda b: (0, 0)),
            pl.BlockSpec((1, 3 * cp), lambda b: (0, 0)),
        ],
        out_specs=pl.BlockSpec((1, n, 3 * cp), lambda b: (b, 0, 0)),
        compiler_params=pltpu.CompilerParams(dimension_semantics=("parallel",)),
    )(xp, wc_taps, w_qkv, b_fused)

    # ---- kernel 2: attention + output projection ----------------------------
    tq = 128 if (n % 128 == 0 and n > 128) else n   # query-row tile (parallel axis)
    out_p = pl.pallas_call(
        _attn_kernel,
        out_shape=jax.ShapeDtypeStruct((bs, n, cp), jnp.float32),
        grid=(bs, n // tq),
        in_specs=[
            pl.BlockSpec((1, tq, cp), lambda b, i: (b, i, 0)),   # Q tile   (cols 0..Cp)
            pl.BlockSpec((1, n, cp), lambda b, i: (b, 0, 1)),    # K, all N (cols Cp..2Cp)
            pl.BlockSpec((1, n, cp), lambda b, i: (b, 0, 2)),    # V, all N (cols 2Cp..3Cp)
            pl.BlockSpec((cp, cp), lambda b, i: (0, 0)),
            pl.BlockSpec((1, cp), lambda b, i: (0, 0)),
        ],
        out_specs=pl.BlockSpec((1, tq, cp), lambda b, i: (b, i, 0)),
        compiler_params=pltpu.CompilerParams(
            dimension_semantics=("parallel", "parallel")),
    )(qkv, qkv, qkv, wo_p, bo_p)

    return out_p[:, :, :c]


def make_params(key, c):
    """Deterministic synthetic parameters (PyTorch-equivalent layouts)."""
    ks = jax.random.split(key, 10)
    w_conv = jax.random.normal(ks[0], (c, c, 3, 3), jnp.float32) / math.sqrt(c * 9)  # (O,I,kH,kW)
    b_conv = jax.random.normal(ks[1], (c,), jnp.float32) * 0.1
    wq = jax.random.normal(ks[2], (c, c), jnp.float32) / math.sqrt(c)   # (in, out) = torch W.T
    bq = jax.random.normal(ks[3], (c,), jnp.float32) * 0.1
    wk = jax.random.normal(ks[4], (c, c), jnp.float32) / math.sqrt(c)
    bk = jax.random.normal(ks[5], (c,), jnp.float32) * 0.1
    wv = jax.random.normal(ks[6], (c, c), jnp.float32) / math.sqrt(c)
    bv = jax.random.normal(ks[7], (c,), jnp.float32) * 0.1
    wo = jax.random.normal(ks[8], (c, c), jnp.float32) / math.sqrt(c)
    bo = jax.random.normal(ks[9], (c,), jnp.float32) * 0.1
    return (w_conv, b_conv, wq, bq, wk, bk, wv, bv, wo, bo)


def reference(x, params):
    """Pure-JAX f32 reference mirroring the PyTorch forward (eval mode)."""
    w_conv, b_conv, wq, bq, wk, bk, wv, bv, wo, bo = params
    bs, c, h, w = x.shape
    y = jax.lax.conv_general_dilated(
        x, w_conv, (1, 1), ((1, 1), (1, 1)),
        dimension_numbers=("NCHW", "OIHW", "NCHW")) + b_conv.reshape(1, c, 1, 1)
    y = y.reshape(bs, c, h * w).transpose(0, 2, 1)               # (bs, N, C)
    q = y @ wq + bq
    k = y @ wk + bk
    v = y @ wv + bv
    att = jax.nn.softmax((q @ k.transpose(0, 2, 1)) / jnp.sqrt(jnp.float32(c)), axis=-1)
    return (att @ v) @ wo + bo


if __name__ == "__main__":
    d_model, H, W, bs = 32, 16, 16, 2
    key = jax.random.PRNGKey(0)
    kx_, kp_ = jax.random.split(key)
    x = jax.random.normal(kx_, (bs, d_model, H, W), jnp.float32)
    params = make_params(kp_, d_model)

    out = jax.block_until_ready(position_attention_module(x, params))
    assert out.shape == (bs, H * W, d_model)

    ref = jax.block_until_ready(reference(x, params))
    # bf16 MXU operands + approx EUP reciprocal vs an all-f32 reference.
    if not np.allclose(np.asarray(out), np.asarray(ref), atol=5e-2, rtol=5e-2):
        err = float(np.max(np.abs(np.asarray(out) - np.asarray(ref))))
        raise AssertionError(f"Pallas kernel output mismatch vs reference (max abs err {err})")

    print("KERNEL_OK")
</pallas_src>

<mosaic_0001>
module attributes {stable_mosaic.version = 11 : i64} {
  func.func @_conv_qkv_kernel(%arg0: i32, %arg1: memref<1x18x18x128xf32, #tpu.memory_space<vmem>>, %arg2: memref<9x128x128xbf16, #tpu.memory_space<vmem>>, %arg3: memref<128x384xbf16, #tpu.memory_space<vmem>>, %arg4: memref<1x384xf32, #tpu.memory_space<vmem>>, %arg5: memref<1x256x384xbf16, #tpu.memory_space<vmem>>) attributes {dimension_semantics = [#tpu.dimension_semantics<parallel>], iteration_bounds = array<i64: 2>, scalar_prefetch = 0 : i64, scratch_operands = 0 : i64, tpu.core_type = #tpu.core_type<tc>, window_params = [{transform_indices = @transform_0, window_bounds = array<i64: 1, 18, 18, 128>}, {pipeline_mode = #tpu.pipeline_mode<synchronous>, transform_indices = @transform_1, window_bounds = array<i64: 9, 128, 128>}, {pipeline_mode = #tpu.pipeline_mode<synchronous>, transform_indices = @transform_2, window_bounds = array<i64: 128, 384>}, {pipeline_mode = #tpu.pipeline_mode<synchronous>, transform_indices = @transform_3, window_bounds = array<i64: 1, 384>}, {transform_indices = @transform_4, window_bounds = array<i64: 1, 256, 384>}]} {
    %cst = arith.constant 0.000000e+00 : f32
    %0 = vector.broadcast %cst : f32 to vector<256x128xf32>
    %c0 = arith.constant 0 : index
    %c0_0 = arith.constant 0 : index
    %c0_1 = arith.constant 0 : index
    %c0_2 = arith.constant 0 : index
    %1 = vector.load %arg1[%c0, %c0_0, %c0_1, %c0_2] : memref<1x18x18x128xf32, #tpu.memory_space<vmem>>, vector<1x16x16x128xf32>
    %2 = vector.shape_cast %1 : vector<1x16x16x128xf32> to vector<16x16x128xf32>
    %3 = vector.shape_cast %2 : vector<16x16x128xf32> to vector<256x128xf32>
    %4 = arith.truncf %3 : vector<256x128xf32> to vector<256x128xbf16>
    %c0_3 = arith.constant 0 : index
    %c0_4 = arith.constant 0 : index
    %c0_5 = arith.constant 0 : index
    %5 = vector.load %arg2[%c0_3, %c0_4, %c0_5] : memref<9x128x128xbf16, #tpu.memory_space<vmem>>, vector<1x128x128xbf16>
    %6 = vector.shape_cast %5 : vector<1x128x128xbf16> to vector<128x128xbf16>
    %cst_6 = arith.constant dense<0.000000e+00> : vector<256x128xf32>
    %7 = tpu.matmul %4, %6, %cst_6 {dimension_numbers = #tpu.dot_dimension_numbers<[1], [0], [0], [1], [0, 0, 1, 1], [], []>} : vector<256x128xbf16>, vector<128x128xbf16>, vector<256x128xf32> -> vector<256x128xf32>
    %8 = arith.addf %0, %7 : vector<256x128xf32>
    %c0_7 = arith.constant 0 : index
    %c0_8 = arith.constant 0 : index
    %c1 = arith.constant 1 : index
    %c0_9 = arith.constant 0 : index
    %9 = vector.load %arg1[%c0_7, %c0_8, %c1, %c0_9] : memref<1x18x18x128xf32, #tpu.memory_space<vmem>>, vector<1x16x16x128xf32>
    %10 = vector.shape_cast %9 : vector<1x16x16x128xf32> to vector<16x16x128xf32>
    %11 = vector.shape_cast %10 : vector<16x16x128xf32> to vector<256x128xf32>
    %12 = arith.truncf %11 : vector<256x128xf32> to vector<256x128xbf16>
    %c1_10 = arith.constant 1 : index
    %c0_11 = arith.constant 0 : index
    %c0_12 = arith.constant 0 : index
    %13 = vector.load %arg2[%c1_10, %c0_11, %c0_12] : memref<9x128x128xbf16, #tpu.memory_space<vmem>>, vector<1x128x128xbf16>
    %14 = vector.shape_cast %13 : vector<1x128x128xbf16> to vector<128x128xbf16>
    %cst_13 = arith.constant dense<0.000000e+00> : vector<256x128xf32>
    %15 = tpu.matmul %12, %14, %cst_13 {dimension_numbers = #tpu.dot_dimension_numbers<[1], [0], [0], [1], [0, 0, 1, 1], [], []>} : vector<256x128xbf16>, vector<128x128xbf16>, vector<256x128xf32> -> vector<256x128xf32>
    %16 = arith.addf %8, %15 : vector<256x128xf32>
    %c0_14 = arith.constant 0 : index
    %c0_15 = arith.constant 0 : index
    %c2 = arith.constant 2 : index
    %c0_16 = arith.constant 0 : index
    %17 = vector.load %arg1[%c0_14, %c0_15, %c2, %c0_16] : memref<1x18x18x128xf32, #tpu.memory_space<vmem>>, vector<1x16x16x128xf32>
    %18 = vector.shape_cast %17 : vector<1x16x16x128xf32> to vector<16x16x128xf32>
    %19 = vector.shape_cast %18 : vector<16x16x128xf32> to vector<256x128xf32>
    %20 = arith.truncf %19 : vector<256x128xf32> to vector<256x128xbf16>
    %c2_17 = arith.constant 2 : index
    %c0_18 = arith.constant 0 : index
    %c0_19 = arith.constant 0 : index
    %21 = vector.load %arg2[%c2_17, %c0_18, %c0_19] : memref<9x128x128xbf16, #tpu.memory_space<vmem>>, vector<1x128x128xbf16>
    %22 = vector.shape_cast %21 : vector<1x128x128xbf16> to vector<128x128xbf16>
    %cst_20 = arith.constant dense<0.000000e+00> : vector<256x128xf32>
    %23 = tpu.matmul %20, %22, %cst_20 {dimension_numbers = #tpu.dot_dimension_numbers<[1], [0], [0], [1], [0, 0, 1, 1], [], []>} : vector<256x128xbf16>, vector<128x128xbf16>, vector<256x128xf32> -> vector<256x128xf32>
    %24 = arith.addf %16, %23 : vector<256x128xf32>
    %c0_21 = arith.constant 0 : index
    %c1_22 = arith.constant 1 : index
    %c0_23 = arith.constant 0 : index
    %c0_24 = arith.constant 0 : index
    %25 = vector.load %arg1[%c0_21, %c1_22, %c0_23, %c0_24] : memref<1x18x18x128xf32, #tpu.memory_space<vmem>>, vector<1x16x16x128xf32>
    %26 = vector.shape_cast %25 : vector<1x16x16x128xf32> to vector<16x16x128xf32>
    %27 = vector.shape_cast %26 : vector<16x16x128xf32> to vector<256x128xf32>
    %28 = arith.truncf %27 : vector<256x128xf32> to vector<256x128xbf16>
    %c3 = arith.constant 3 : index
    %c0_25 = arith.constant 0 : index
    %c0_26 = arith.constant 0 : index
    %29 = vector.load %arg2[%c3, %c0_25, %c0_26] : memref<9x128x128xbf16, #tpu.memory_space<vmem>>, vector<1x128x128xbf16>
    %30 = vector.shape_cast %29 : vector<1x128x128xbf16> to vector<128x128xbf16>
    %cst_27 = arith.constant dense<0.000000e+00> : vector<256x128xf32>
    %31 = tpu.matmul %28, %30, %cst_27 {dimension_numbers = #tpu.dot_dimension_numbers<[1], [0], [0], [1], [0, 0, 1, 1], [], []>} : vector<256x128xbf16>, vector<128x128xbf16>, vector<256x128xf32> -> vector<256x128xf32>
    %32 = arith.addf %24, %31 : vector<256x128xf32>
    %c0_28 = arith.constant 0 : index
    %c1_29 = arith.constant 1 : index
    %c1_30 = arith.constant 1 : index
    %c0_31 = arith.constant 0 : index
    %33 = vector.load %arg1[%c0_28, %c1_29, %c1_30, %c0_31] : memref<1x18x18x128xf32, #tpu.memory_space<vmem>>, vector<1x16x16x128xf32>
    %34 = vector.shape_cast %33 : vector<1x16x16x128xf32> to vector<16x16x128xf32>
    %35 = vector.shape_cast %34 : vector<16x16x128xf32> to vector<256x128xf32>
    %36 = arith.truncf %35 : vector<256x128xf32> to vector<256x128xbf16>
    %c4 = arith.constant 4 : index
    %c0_32 = arith.constant 0 : index
    %c0_33 = arith.constant 0 : index
    %37 = vector.load %arg2[%c4, %c0_32, %c0_33] : memref<9x128x128xbf16, #tpu.memory_space<vmem>>, vector<1x128x128xbf16>
    %38 = vector.shape_cast %37 : vector<1x128x128xbf16> to vector<128x128xbf16>
    %cst_34 = arith.constant dense<0.000000e+00> : vector<256x128xf32>
    %39 = tpu.matmul %36, %38, %cst_34 {dimension_numbers = #tpu.dot_dimension_numbers<[1], [0], [0], [1], [0, 0, 1, 1], [], []>} : vector<256x128xbf16>, vector<128x128xbf16>, vector<256x128xf32> -> vector<256x128xf32>
    %40 = arith.addf %32, %39 : vector<256x128xf32>
    %c0_35 = arith.constant 0 : index
    %c1_36 = arith.constant 1 : index
    %c2_37 = arith.constant 2 : index
    %c0_38 = arith.constant 0 : index
    %41 = vector.load %arg1[%c0_35, %c1_36, %c2_37, %c0_38] : memref<1x18x18x128xf32, #tpu.memory_space<vmem>>, vector<1x16x16x128xf32>
    %42 = vector.shape_cast %41 : vector<1x16x16x128xf32> to vector<16x16x128xf32>
    %43 = vector.shape_cast %42 : vector<16x16x128xf32> to vector<256x128xf32>
    %44 = arith.truncf %43 : vector<256x128xf32> to vector<256x128xbf16>
    %c5 = arith.constant 5 : index
    %c0_39 = arith.constant 0 : index
    %c0_40 = arith.constant 0 : index
    %45 = vector.load %arg2[%c5, %c0_39, %c0_40] : memref<9x128x128xbf16, #tpu.memory_space<vmem>>, vector<1x128x128xbf16>
    %46 = vector.shape_cast %45 : vector<1x128x128xbf16> to vector<128x128xbf16>
    %cst_41 = arith.constant dense<0.000000e+00> : vector<256x128xf32>
    %47 = tpu.matmul %44, %46, %cst_41 {dimension_numbers = #tpu.dot_dimension_numbers<[1], [0], [0], [1], [0, 0, 1, 1], [], []>} : vector<256x128xbf16>, vector<128x128xbf16>, vector<256x128xf32> -> vector<256x128xf32>
    %48 = arith.addf %40, %47 : vector<256x128xf32>
    %c0_42 = arith.constant 0 : index
    %c2_43 = arith.constant 2 : index
    %c0_44 = arith.constant 0 : index
    %c0_45 = arith.constant 0 : index
    %49 = vector.load %arg1[%c0_42, %c2_43, %c0_44, %c0_45] : memref<1x18x18x128xf32, #tpu.memory_space<vmem>>, vector<1x16x16x128xf32>
    %50 = vector.shape_cast %49 : vector<1x16x16x128xf32> to vector<16x16x128xf32>
    %51 = vector.shape_cast %50 : vector<16x16x128xf32> to vector<256x128xf32>
    %52 = arith.truncf %51 : vector<256x128xf32> to vector<256x128xbf16>
    %c6 = arith.constant 6 : index
    %c0_46 = arith.constant 0 : index
    %c0_47 = arith.constant 0 : index
    %53 = vector.load %arg2[%c6, %c0_46, %c0_47] : memref<9x128x128xbf16, #tpu.memory_space<vmem>>, vector<1x128x128xbf16>
    %54 = vector.shape_cast %53 : vector<1x128x128xbf16> to vector<128x128xbf16>
    %cst_48 = arith.constant dense<0.000000e+00> : vector<256x128xf32>
    %55 = tpu.matmul %52, %54, %cst_48 {dimension_numbers = #tpu.dot_dimension_numbers<[1], [0], [0], [1], [0, 0, 1, 1], [], []>} : vector<256x128xbf16>, vector<128x128xbf16>, vector<256x128xf32> -> vector<256x128xf32>
    %56 = arith.addf %48, %55 : vector<256x128xf32>
    %c0_49 = arith.constant 0 : index
    %c2_50 = arith.constant 2 : index
    %c1_51 = arith.constant 1 : index
    %c0_52 = arith.constant 0 : index
    %57 = vector.load %arg1[%c0_49, %c2_50, %c1_51, %c0_52] : memref<1x18x18x128xf32, #tpu.memory_space<vmem>>, vector<1x16x16x128xf32>
    %58 = vector.shape_cast %57 : vector<1x16x16x128xf32> to vector<16x16x128xf32>
    %59 = vector.shape_cast %58 : vector<16x16x128xf32> to vector<256x128xf32>
    %60 = arith.truncf %59 : vector<256x128xf32> to vector<256x128xbf16>
    %c7 = arith.constant 7 : index
    %c0_53 = arith.constant 0 : index
    %c0_54 = arith.constant 0 : index
    %61 = vector.load %arg2[%c7, %c0_53, %c0_54] : memref<9x128x128xbf16, #tpu.memory_space<vmem>>, vector<1x128x128xbf16>
    %62 = vector.shape_cast %61 : vector<1x128x128xbf16> to vector<128x128xbf16>
    %cst_55 = arith.constant dense<0.000000e+00> : vector<256x128xf32>
    %63 = tpu.matmul %60, %62, %cst_55 {dimension_numbers = #tpu.dot_dimension_numbers<[1], [0], [0], [1], [0, 0, 1, 1], [], []>} : vector<256x128xbf16>, vector<128x128xbf16>, vector<256x128xf32> -> vector<256x128xf32>
    %64 = arith.addf %56, %63 : vector<256x128xf32>
    %c0_56 = arith.constant 0 : index
    %c2_57 = arith.constant 2 : index
    %c2_58 = arith.constant 2 : index
    %c0_59 = arith.constant 0 : index
    %65 = vector.load %arg1[%c0_56, %c2_57, %c2_58, %c0_59] : memref<1x18x18x128xf32, #tpu.memory_space<vmem>>, vector<1x16x16x128xf32>
    %66 = vector.shape_cast %65 : vector<1x16x16x128xf32> to vector<16x16x128xf32>
    %67 = vector.shape_cast %66 : vector<16x16x128xf32> to vector<256x128xf32>
    %68 = arith.truncf %67 : vector<256x128xf32> to vector<256x128xbf16>
    %c8 = arith.constant 8 : index
    %c0_60 = arith.constant 0 : index
    %c0_61 = arith.constant 0 : index
    %69 = vector.load %arg2[%c8, %c0_60, %c0_61] : memref<9x128x128xbf16, #tpu.memory_space<vmem>>, vector<1x128x128xbf16>
    %70 = vector.shape_cast %69 : vector<1x128x128xbf16> to vector<128x128xbf16>
    %cst_62 = arith.constant dense<0.000000e+00> : vector<256x128xf32>
    %71 = tpu.matmul %68, %70, %cst_62 {dimension_numbers = #tpu.dot_dimension_numbers<[1], [0], [0], [1], [0, 0, 1, 1], [], []>} : vector<256x128xbf16>, vector<128x128xbf16>, vector<256x128xf32> -> vector<256x128xf32>
    %72 = arith.addf %64, %71 : vector<256x128xf32>
    %73 = arith.truncf %72 : vector<256x128xf32> to vector<256x128xbf16>
    %c0_63 = arith.constant 0 : index
    %c0_64 = arith.constant 0 : index
    %74 = vector.load %arg3[%c0_63, %c0_64] : memref<128x384xbf16, #tpu.memory_space<vmem>>, vector<128x384xbf16>
    %cst_65 = arith.constant dense<0.000000e+00> : vector<256x384xf32>
    %75 = tpu.matmul %73, %74, %cst_65 {dimension_numbers = #tpu.dot_dimension_numbers<[1], [0], [0], [1], [0, 0, 1, 1], [], []>} : vector<256x128xbf16>, vector<128x384xbf16>, vector<256x384xf32> -> vector<256x384xf32>
    %c0_66 = arith.constant 0 : index
    %c0_67 = arith.constant 0 : index
    %76 = vector.load %arg4[%c0_66, %c0_67] : memref<1x384xf32, #tpu.memory_space<vmem>>, vector<1x384xf32>
    %77 = vector.broadcast %76 : vector<1x384xf32> to vector<256x384xf32>
    %78 = arith.addf %75, %77 : vector<256x384xf32>
    %79 = arith.truncf %78 : vector<256x384xf32> to vector<256x384xbf16>
    %c0_68 = arith.constant 0 : index
    %c0_69 = arith.constant 0 : index
    %c0_70 = arith.constant 0 : index
    %80 = vector.load %arg5[%c0_68, %c0_69, %c0_70] : memref<1x256x384xbf16, #tpu.memory_space<vmem>>, vector<1x256x384xbf16>
    %81 = vector.shape_cast %80 : vector<1x256x384xbf16> to vector<256x384xbf16>
    %82 = vector.shape_cast %79 : vector<256x384xbf16> to vector<1x256x384xbf16>
    tpu.vector_store %arg5[%c0_68, %c0_69, %c0_70], %82 {strides = array<i32>} : memref<1x256x384xbf16, #tpu.memory_space<vmem>>, vector<1x256x384xbf16>,
    return
  }
  func.func @transform_0(%arg0: i32) -> (i32, i32, i32, i32) {
    %c0_i32 = arith.constant 0 : i32
    %c0_i32_0 = arith.constant 0 : i32
    %c0_i32_1 = arith.constant 0 : i32
    %c0_i32_2 = arith.constant 0 : i32
    return %arg0, %c0_i32, %c0_i32_0, %c0_i32_1 : i32, i32, i32, i32
  }
  func.func @transform_1(%arg0: i32) -> (i32, i32, i32) {
    %c0_i32 = arith.constant 0 : i32
    %c0_i32_0 = arith.constant 0 : i32
    %c0_i32_1 = arith.constant 0 : i32
    %c0_i32_2 = arith.constant 0 : i32
    return %c0_i32, %c0_i32_0, %c0_i32_1 : i32, i32, i32
  }
  func.func @transform_2(%arg0: i32) -> (i32, i32) {
    %c0_i32 = arith.constant 0 : i32
    %c0_i32_0 = arith.constant 0 : i32
    %c0_i32_1 = arith.constant 0 : i32
    return %c0_i32, %c0_i32_0 : i32, i32
  }
  func.func @transform_3(%arg0: i32) -> (i32, i32) {
    %c0_i32 = arith.constant 0 : i32
    %c0_i32_0 = arith.constant 0 : i32
    %c0_i32_1 = arith.constant 0 : i32
    return %c0_i32, %c0_i32_0 : i32, i32
  }
  func.func @transform_4(%arg0: i32) -> (i32, i32, i32) {
    %c0_i32 = arith.constant 0 : i32
    %c0_i32_0 = arith.constant 0 : i32
    %c0_i32_1 = arith.constant 0 : i32
    return %arg0, %c0_i32, %c0_i32_0 : i32, i32, i32
  }
}

</mosaic_0001>

<llo_original>
// kernel: tpu_custom_call.1
$region0: #{tpu_custom_call.1}
  #allocation0 [shape = 'u32[]', space=smem, size = 0x4, offset = 0x4, fixed_abs, tag = 'smem constant byte address 0x4 - core index']
  #allocation1 [shape = 'u32[144,128]{1,0:T(1,128)}', space=vmem, size = 0x12000, scoped, tag = 'internal scratch']
  %s0 = inlined_call_operand.vmem [shape: f32[2,18,18,128], index: 0, kind: input, shape index: {}]
  %s1 = inlined_call_operand.vmem [shape: bf16[9,128,128], index: 1, kind: input, shape index: {}]
  %s2 = inlined_call_operand.vmem [shape: bf16[128,384], index: 2, kind: input, shape index: {}]
  %s3 = inlined_call_operand.vmem [shape: f32[1,384], index: 3, kind: input, shape index: {}]
  %s4 = inlined_call_operand.hbm [shape: bf16[2,256,384], index: 4, kind: output, shape index: {}]
  %s5 = sld [smem:[#allocation0]]
  $region49: #{tpu_custom_call.1} parent=0
    _
  %s7 = ssub.s32 1, %s5
  %s8 = scalar_select 0, %s7, %s5
  $region1: #{tpu_custom_call.1} parent=0
    #allocation2 [shape = 'u8[393216]{0}', space=vmem, size = 0x60000, scoped, tag = 'output window, operand 0']
    #allocation3 [shape = 's32[2]{0}', space=sflag, size = 0x8, scoped, tag = 'scoped memory for tpu_custom_call.1']
    %9 = vsyncpa [#allocation3], 0
    %s10 = scalar_lea.sflag [#allocation3], 1
    %11 = vsyncpa %s10, 0
    loop: start=0, step=1, limit=4
    $region2: #{tpu_custom_call.1} parent=1 // loop_pre_header
      _
    $region3: #{tpu_custom_call.1} parent=1 // loop_header
      %s13 = sphi 0, %s17
      %p14 = scmp.ge.s32.totalorder %s13, 4
      %s23 = sphi 0, %s25
      %s26 = sphi 0, %s23
      %s27 = sphi 0, %s26
      %s43 = sphi 0, %s27
      %s47 = sphi 0, %s47
      %s49 = sphi 0, %s47
      %s50 = sphi 0, %s49
      %s64 = sphi 0, %s50
      %s68 = sphi 0, %s68
      %s70 = sphi 0, %s68
      %s71 = sphi 0, %s70
      %s85 = sphi 0, %s71
      %s89 = sphi 0, %s89
      %s91 = sphi 0, %s89
      %s92 = sphi 0, %s91
      %s106 = sphi 0, %s92
      %s112 = sphi 0, %s114
      %s115 = sphi 0, %s112
      %s116 = sphi 0, %s115
      %s132 = sphi 0, %s116
    $region4: #{tpu_custom_call.1} parent=1 // loop_header_branch
      %16 = sbr.rel (%p14) target = $region8
    $region5: #{tpu_custom_call.1} parent=1 // loop_body
      %s18 = ssub.s32 %s13, 1
      %s19 = ssub.s32 %s13, 2
      %s20 = sadd.s32 %s13, 1
      %s21 = ssub.s32 %s13, %s20
      %p22 = scmp.eq.s32.totalorder %s21, 0
      %s24 = sadd.s32 %s23, 1
      %s25 = scalar_select %p22, %s23, %s24
      %p28 = pneg %p22
      %p29 = scmp.eq.s32.totalorder %s13, 1
      %p30 = por %p28, %p29
      %p31 = scmp.ne.s32.totalorder %s23, %s26
      %p32 = scmp.eq.s32.totalorder %s13, 0
      %p33 = por %p31, %p32
      %p34 = scmp.ne.s32.totalorder %s23, %s26
      %p35 = scmp.eq.s32.totalorder %s18, 1
      %p36 = por %p34, %p35
      %p37 = scmp.ne.s32.totalorder %s26, %s27
      %p38 = scmp.eq.s32.totalorder %s18, 0
      %p39 = por %p37, %p38
      %p40 = scmp.ne.s32.totalorder %s26, %s27
      %p41 = scmp.eq.s32.totalorder %s19, 1
      %p42 = por %p40, %p41
      %p44 = scmp.ne.s32.totalorder %s27, %s43
      %p45 = scmp.eq.s32.totalorder %s19, 0
      %p46 = por %p44, %p45
      %s48 = sadd.s32 %s47, 1
      %p51 = scmp.eq.s32.totalorder %s13, 1
      %p52 = scmp.ne.s32.totalorder %s47, %s49
      %p53 = scmp.eq.s32.totalorder %s13, 0
      %p54 = por %p52, %p53
      %p55 = scmp.ne.s32.totalorder %s47, %s49
      %p56 = scmp.eq.s32.totalorder %s18, 1
      %p57 = por %p55, %p56
      %p58 = scmp.ne.s32.totalorder %s49, %s50
      %p59 = scmp.eq.s32.totalorder %s18, 0
      %p60 = por %p58, %p59
      %p61 = scmp.ne.s32.totalorder %s49, %s50
      %p62 = scmp.eq.s32.totalorder %s19, 1
      %p63 = por %p61, %p62
      %p65 = scmp.ne.s32.totalorder %s50, %s64
      %p66 = scmp.eq.s32.totalorder %s19, 0
      %p67 = por %p65, %p66
      %s69 = sadd.s32 %s68, 1
      %p72 = scmp.eq.s32.totalorder %s13, 1
      %p73 = scmp.ne.s32.totalorder %s68, %s70
      %p74 = scmp.eq.s32.totalorder %s13, 0
      %p75 = por %p73, %p74
      %p76 = scmp.ne.s32.totalorder %s68, %s70
      %p77 = scmp.eq.s32.totalorder %s18, 1
      %p78 = por %p76, %p77
      %p79 = scmp.ne.s32.totalorder %s70, %s71
      %p80 = scmp.eq.s32.totalorder %s18, 0
      %p81 = por %p79, %p80
      %p82 = scmp.ne.s32.totalorder %s70, %s71
      %p83 = scmp.eq.s32.totalorder %s19, 1
      %p84 = por %p82, %p83
      %p86 = scmp.ne.s32.totalorder %s71, %s85
      %p87 = scmp.eq.s32.totalorder %s19, 0
      %p88 = por %p86, %p87
      %s90 = sadd.s32 %s89, 1
      %p93 = scmp.eq.s32.totalorder %s13, 1
      %p94 = scmp.ne.s32.totalorder %s89, %s91
      %p95 = scmp.eq.s32.totalorder %s13, 0
      %p96 = por %p94, %p95
      %p97 = scmp.ne.s32.totalorder %s89, %s91
      %p98 = scmp.eq.s32.totalorder %s18, 1
      %p99 = por %p97, %p98
      %p100 = scmp.ne.s32.totalorder %s91, %s92
      %p101 = scmp.eq.s32.totalorder %s18, 0
      %p102 = por %p100, %p101
      %p103 = scmp.ne.s32.totalorder %s91, %s92
      %p104 = scmp.eq.s32.totalorder %s19, 1
      %p105 = por %p103, %p104
      %p107 = scmp.ne.s32.totalorder %s92, %s106
      %p108 = scmp.eq.s32.totalorder %s19, 0
      %p109 = por %p107, %p108
      %s110 = ssub.s32 %s13, %s20
      %p111 = scmp.eq.s32.totalorder %s110, 0
      %s113 = sadd.s32 %s112, 1
      %s114 = scalar_select %p111, %s112, %s113
      %p117 = pneg %p111
      %p118 = scmp.eq.s32.totalorder %s13, 1
      %p119 = por %p117, %p118
      %p120 = scmp.ne.s32.totalorder %s112, %s115
      %p121 = scmp.eq.s32.totalorder %s13, 0
      %p122 = por %p120, %p121
      %p123 = scmp.ne.s32.totalorder %s112, %s115
      %p124 = scmp.eq.s32.totalorder %s18, 1
      %p125 = por %p123, %p124
      %p126 = scmp.ne.s32.totalorder %s115, %s116
      %p127 = scmp.eq.s32.totalorder %s18, 0
      %p128 = por %p126, %p127
      %p129 = scmp.ne.s32.totalorder %s115, %s116
      %p130 = scmp.eq.s32.totalorder %s19, 1
      %p131 = por %p129, %p130
      %p133 = scmp.ne.s32.totalorder %s116, %s132
      %p134 = scmp.eq.s32.totalorder %s19, 0
      %p135 = por %p133, %p134
      %p136 = scmp.le.s32.totalorder 1, %s13
      %p137 = scmp.lt.s32.totalorder %s13, 3
      %p138 = pnand %p136, %p137
      %p139 = pneg %p138
      // Predicated region
      $region9: #{tpu_custom_call.1} parent=5 // pred_check
        _
      $region10: #{tpu_custom_call.1} parent=5 // pred_check_branch
        %141 = sbr.rel (%p138) target = $region12
      $region11: #{tpu_custom_call.1} parent=5 // pred_region
        %s142 = ssub.s32 %s13, 1
        // Predicated region
        $region13: #{tpu_custom_call.1} parent=11 // pred_check
          %p143 = pneg %p60
        $region14: #{tpu_custom_call.1} parent=11 // pred_check_branch
          %145 = sbr.rel (%p143) target = $region16
        $region15: #{tpu_custom_call.1} parent=11 // pred_region
          _
        $region16: #{tpu_custom_call.1} parent=11 // pred_fallthru
          _
        // Predicated region
        $region17: #{tpu_custom_call.1} parent=11 // pred_check
          %p146 = pneg %p81
        $region18: #{tpu_custom_call.1} parent=11 // pred_check_branch
          %148 = sbr.rel (%p146) target = $region20
        $region19: #{tpu_custom_call.1} parent=11 // pred_region
          _
        $region20: #{tpu_custom_call.1} parent=11 // pred_fallthru
          _
        // Predicated region
        $region21: #{tpu_custom_call.1} parent=11 // pred_check
          %p149 = pneg %p102
        $region22: #{tpu_custom_call.1} parent=11 // pred_check_branch
          %151 = sbr.rel (%p149) target = $region24
        $region23: #{tpu_custom_call.1} parent=11 // pred_region
          _
        $region24: #{tpu_custom_call.1} parent=11 // pred_fallthru
          _
      $region12: #{tpu_custom_call.1} parent=5 // pred_fallthru
        _
      %p152 = scmp.lt.s32.totalorder %s13, 2
      // Predicated region
      $region25: #{tpu_custom_call.1} parent=5 // pred_check
        %p153 = pneg %p152
      $region26: #{tpu_custom_call.1} parent=5 // pred_check_branch
        %155 = sbr.rel (%p153) target = $region28
      $region27: #{tpu_custom_call.1} parent=5 // pred_region
        // Predicated region
        $region29: #{tpu_custom_call.1} parent=27 // pred_check
          %p156 = pneg %p33
        $region30: #{tpu_custom_call.1} parent=27 // pred_check_branch
          %158 = sbr.rel (%p156) target = $region32
        $region31: #{tpu_custom_call.1} parent=27 // pred_region
          %p159 = scmp.lt.s32.totalorder %s13, 1
          %s160 = scalar_select %p159, %s13, 1
          %s161 = smul.addr %s160, 54
          %s162 = smul.addr %s161, 8
          %s163 = scalar_lea.vmem %s0, %s162
        $region32: #{tpu_custom_call.1} parent=27 // pred_fallthru
          _
      $region28: #{tpu_custom_call.1} parent=5 // pred_fallthru
        _
      %p164 = scmp.le.s32.totalorder 1, %s13
      %p165 = scmp.lt.s32.totalorder %s13, 3
      %p166 = pnand %p164, %p165
      %p167 = pneg %p166
      // Predicated region
      $region33: #{tpu_custom_call.1} parent=5 // pred_check
        _
      $region34: #{tpu_custom_call.1} parent=5 // pred_check_branch
        %169 = sbr.rel (%p166) target = $region36
      $region35: #{tpu_custom_call.1} parent=5 // pred_region
        %s170 = ssub.s32 %s13, 1
        %p171 = scmp.lt.s32.totalorder %s18, 1
        %s172 = scalar_select %p171, %s18, 1
        %s173 = smul.addr %s172, 54
        %s174 = smul.addr %s173, 8
        %s175 = scalar_lea.vmem %s0, %s174
        %p176 = pneg %p39
        %p177 = pneg %p36
        %p178 = pneg %p60
        %p179 = pneg %p57
        %p180 = pneg %p81
        %p181 = pneg %p78
        %p182 = pneg %p102
        %p183 = pneg %p99
        %p184 = pneg %p128
        %p185 = pneg %p125
        %s186 = sand.u32 %s115, 1
        %s187 = scalar_lea.sflag [#allocation3], %s186
        %s188 = sand.u32 %s115, 1
        %s189 = smul.addr %s188, 384
        %s190 = scalar_lea.vmem [#allocation2], %s189
        %p191 = scmp.lt.s32.totalorder %s18, 1
        %s192 = scalar_select %p191, %s18, 1
        %s193 = smul.addr %s192, 54
        %s194 = smul.addr %s193, 8
        %s195 = scalar_lea.vmem %s0, %s194
        %v197 = vld [vmem:[%s195] sm:$0xff]
        %v198 = vld [vmem:[%s195 + $0x8] sm:$0xff]
        %v199 = vld [vmem:[%s195 + $0x18] sm:$0xff]
        %v200 = vld [vmem:[%s195 + $0x20] sm:$0xff]
        %v201 = vld [vmem:[%s195 + $0x30] sm:$0xff]
        %v202 = vld [vmem:[%s195 + $0x38] sm:$0xff]
        %v203 = vld [vmem:[%s195 + $0x48] sm:$0xff]
        %v204 = vld [vmem:[%s195 + $0x50] sm:$0xff]
        %v205 = vld [vmem:[%s195 + $0x60] sm:$0xff]
        %v206 = vld [vmem:[%s195 + $0x68] sm:$0xff]
        %v207 = vld [vmem:[%s195 + $0x78] sm:$0xff]
        %v208 = vld [vmem:[%s195 + $0x80] sm:$0xff]
        %v209 = vld [vmem:[%s195 + $0x90] sm:$0xff]
        %v210 = vld [vmem:[%s195 + $0x98] sm:$0xff]
        %v211 = vld [vmem:[%s195 + $0xa8] sm:$0xff]
        %v212 = vld [vmem:[%s195 + $0xb0] sm:$0xff]
        %v213 = vld [vmem:[%s195 + $0xc0] sm:$0xff]
        %v214 = vld [vmem:[%s195 + $0xc8] sm:$0xff]
        %v215 = vld [vmem:[%s195 + $0xd8] sm:$0xff]
        %v216 = vld [vmem:[%s195 + $0xe0] sm:$0xff]
        %v217 = vld [vmem:[%s195 + $0xf0] sm:$0xff]
        %v218 = vld [vmem:[%s195 + $0xf8] sm:$0xff]
        %v219 = vld [vmem:[%s195 + $0x108] sm:$0xff]
        %v220 = vld [vmem:[%s195 + $0x110] sm:$0xff]
        %v221 = vld [vmem:[%s195 + $0x120] sm:$0xff]
        %v222 = vld [vmem:[%s195 + $0x128] sm:$0xff]
        %v223 = vld [vmem:[%s195 + $0x138] sm:$0xff]
        %v224 = vld [vmem:[%s195 + $0x140] sm:$0xff]
        %v225 = vld [vmem:[%s195 + $0x150] sm:$0xff]
        %v226 = vld [vmem:[%s195 + $0x158] sm:$0xff]
        %v227 = vld [vmem:[%s195 + $0x168] sm:$0xff]
        %v228 = vld [vmem:[%s195 + $0x170] sm:$0xff]
        %v229 = vpack.c.bf16 %v198, %v197
        %v230 = vpack.c.bf16 %v200, %v199
        %v231 = vpack.c.bf16 %v202, %v201
        %v232 = vpack.c.bf16 %v204, %v203
        %v233 = vpack.c.bf16 %v206, %v205
        %v234 = vpack.c.bf16 %v208, %v207
        %v235 = vpack.c.bf16 %v210, %v209
        %v236 = vpack.c.bf16 %v212, %v211
        %v237 = vpack.c.bf16 %v214, %v213
        %v238 = vpack.c.bf16 %v216, %v215
        %v239 = vpack.c.bf16 %v218, %v217
        %v240 = vpack.c.bf16 %v220, %v219
        %v241 = vpack.c.bf16 %v222, %v221
        %v242 = vpack.c.bf16 %v224, %v223
        %v243 = vpack.c.bf16 %v226, %v225
        %v244 = vpack.c.bf16 %v228, %v227
        %v245 = vld [vmem:[%s1] sm:$0xf]
        %v246 = vld [vmem:[%s1 + $0x4] sm:$0xf]
        %v247 = vld [vmem:[%s1 + $0x8] sm:$0xf]
        %v248 = vld [vmem:[%s1 + $0xc] sm:$0xf]
        %v249 = vld [vmem:[%s1 + $0x10] sm:$0xf]
        %v250 = vld [vmem:[%s1 + $0x14] sm:$0xf]
        %v251 = vld [vmem:[%s1 + $0x18] sm:$0xf]
        %v252 = vld [vmem:[%s1 + $0x1c] sm:$0xf]
        %v253 = vld [vmem:[%s1 + $0x20] sm:$0xf]
        %v254 = vld [vmem:[%s1 + $0x24] sm:$0xf]
        %v255 = vld [vmem:[%s1 + $0x28] sm:$0xf]
        %v256 = vld [vmem:[%s1 + $0x2c] sm:$0xf]
        %v257 = vld [vmem:[%s1 + $0x30] sm:$0xf]
        %v258 = vld [vmem:[%s1 + $0x34] sm:$0xf]
        %v259 = vld [vmem:[%s1 + $0x38] sm:$0xf]
        %v260 = vld [vmem:[%s1 + $0x3c] sm:$0xf]
        %v261 = vld [vmem:[%s195 + $0x1] sm:$0xff]
        %v262 = vld [vmem:[%s195 + $0x9] sm:$0xff]
        %v263 = vld [vmem:[%s195 + $0x19] sm:$0xff]
        %v264 = vld [vmem:[%s195 + $0x21] sm:$0xff]
        %v265 = vld [vmem:[%s195 + $0x31] sm:$0xff]
        %v266 = vld [vmem:[%s195 + $0x39] sm:$0xff]
        %v267 = vld [vmem:[%s195 + $0x49] sm:$0xff]
        %v268 = vld [vmem:[%s195 + $0x51] sm:$0xff]
        %v269 = vld [vmem:[%s195 + $0x61] sm:$0xff]
        %v270 = vld [vmem:[%s195 + $0x69] sm:$0xff]
        %v271 = vld [vmem:[%s195 + $0x79] sm:$0xff]
        %v272 = vld [vmem:[%s195 + $0x81] sm:$0xff]
        %v273 = vld [vmem:[%s195 + $0x91] sm:$0xff]
        %v274 = vld [vmem:[%s195 + $0x99] sm:$0xff]
        %v275 = vld [vmem:[%s195 + $0xa9] sm:$0xff]
        %v276 = vld [vmem:[%s195 + $0xb1] sm:$0xff]
        %v277 = vld [vmem:[%s195 + $0xc1] sm:$0xff]
        %v278 = vld [vmem:[%s195 + $0xc9] sm:$0xff]
        %v279 = vld [vmem:[%s195 + $0xd9] sm:$0xff]
        %v280 = vld [vmem:[%s195 + $0xe1] sm:$0xff]
        %v281 = vld [vmem:[%s195 + $0xf1] sm:$0xff]
        %v282 = vld [vmem:[%s195 + $0xf9] sm:$0xff]
        %v283 = vld [vmem:[%s195 + $0x109] sm:$0xff]
        %v284 = vld [vmem:[%s195 + $0x111] sm:$0xff]
        %v285 = vld [vmem:[%s195 + $0x121] sm:$0xff]
        %v286 = vld [vmem:[%s195 + $0x129] sm:$0xff]
        %v287 = vld [vmem:[%s195 + $0x139] sm:$0xff]
        %v288 = vld [vmem:[%s195 + $0x141] sm:$0xff]
        %v289 = vld [vmem:[%s195 + $0x151] sm:$0xff]
        %v290 = vld [vmem:[%s195 + $0x159] sm:$0xff]
        %v291 = vld [vmem:[%s195 + $0x169] sm:$0xff]
        %v292 = vld [vmem:[%s195 + $0x171] sm:$0xff]
        %v293 = vpack.c.bf16 %v262, %v261
        %v294 = vpack.c.bf16 %v264, %v263
        %v295 = vpack.c.bf16 %v266, %v265
        %v296 = vpack.c.bf16 %v268, %v267
        %v297 = vpack.c.bf16 %v270, %v269
        %v298 = vpack.c.bf16 %v272, %v271
        %v299 = vpack.c.bf16 %v274, %v273
        %v300 = vpack.c.bf16 %v276, %v275
        %v301 = vpack.c.bf16 %v278, %v277
        %v302 = vpack.c.bf16 %v280, %v279
        %v303 = vpack.c.bf16 %v282, %v281
        %v304 = vpack.c.bf16 %v284, %v283
        %v305 = vpack.c.bf16 %v286, %v285
        %v306 = vpack.c.bf16 %v288, %v287
        %v307 = vpack.c.bf16 %v290, %v289
        %v308 = vpack.c.bf16 %v292, %v291
        %s309 = scalar_lea.vmem %s1, 64
        %v310 = vld [vmem:[%s309] sm:$0xf]
        %v311 = vld [vmem:[%s309 + $0x4] sm:$0xf]
        %v312 = vld [vmem:[%s309 + $0x8] sm:$0xf]
        %v313 = vld [vmem:[%s309 + $0xc] sm:$0xf]
        %v314 = vld [vmem:[%s309 + $0x10] sm:$0xf]
        %v315 = vld [vmem:[%s309 + $0x14] sm:$0xf]
        %v316 = vld [vmem:[%s309 + $0x18] sm:$0xf]
        %v317 = vld [vmem:[%s309 + $0x1c] sm:$0xf]
        %v318 = vld [vmem:[%s309 + $0x20] sm:$0xf]
        %v319 = vld [vmem:[%s309 + $0x24] sm:$0xf]
        %v320 = vld [vmem:[%s309 + $0x28] sm:$0xf]
        %v321 = vld [vmem:[%s309 + $0x2c] sm:$0xf]
        %v322 = vld [vmem:[%s309 + $0x30] sm:$0xf]
        %v323 = vld [vmem:[%s309 + $0x34] sm:$0xf]
        %v324 = vld [vmem:[%s309 + $0x38] sm:$0xf]
        %v325 = vld [vmem:[%s309 + $0x3c] sm:$0xf]
        %v342 = vunpack.c.l.b16 %v310
        %v343 = vunpack.c.l.b16 %v311
        %v344 = vunpack.c.l.b16 %v312
        %v345 = vunpack.c.l.b16 %v313
        %v346 = vunpack.c.l.b16 %v314
        %v347 = vunpack.c.l.b16 %v315
        %v348 = vunpack.c.l.b16 %v316
        %v349 = vunpack.c.l.b16 %v317
        %v350 = vunpack.c.l.b16 %v318
        %v351 = vunpack.c.l.b16 %v319
        %v352 = vunpack.c.l.b16 %v320
        %v353 = vunpack.c.l.b16 %v321
        %v354 = vunpack.c.l.b16 %v322
        %v355 = vunpack.c.l.b16 %v323
        %v356 = vunpack.c.l.b16 %v324
        %v357 = vunpack.c.l.b16 %v325
        %v358 = vpack.c.b16 %v343, %v342
        %v359 = vpack.c.b16 %v345, %v344
        %v360 = vpack.c.b16 %v347, %v346
        %v361 = vpack.c.b16 %v349, %v348
        %v362 = vpack.c.b16 %v351, %v350
        %v363 = vpack.c.b16 %v353, %v352
        %v364 = vpack.c.b16 %v355, %v354
        %v365 = vpack.c.b16 %v357, %v356
        %374 = vmatprep.subr.bf16.mxu0 0
        %375 = vmatpush1.bf16.msra.mxu0 %v358
        %376 = vmatprep.subr.bf16.mxu0 0
        %377 = vmatpush1.bf16.msra.mxu0 %v359
        %378 = vmatprep.subr.bf16.mxu0 0
        %379 = vmatpush1.bf16.msra.mxu0 %v360
        %380 = vmatprep.subr.bf16.mxu0 0
        %381 = vmatpush1.bf16.msra.mxu0 %v361
        %382 = vmatprep.subr.bf16.mxu0 0
        %383 = vmatpush1.bf16.msra.mxu0 %v362
        %384 = vmatprep.subr.bf16.mxu0 0
        %385 = vmatpush1.bf16.msra.mxu0 %v363
        %386 = vmatprep.subr.bf16.mxu0 0
        %387 = vmatpush1.bf16.msra.mxu0 %v364
        %388 = vmatprep.subr.bf16.mxu0 0
        %389 = vmatpush1.bf16.msra.mxu0 %v365
        %390 = vmatprep.subr.bf16.mxu0 0
        %391 = vmatpush1.bf16.msra.mxu0 0
        %392 = vmatprep.subr.bf16.mxu0 0
        %393 = vmatpush1.bf16.msra.mxu0 0
        %394 = vmatprep.subr.bf16.mxu0 0
        %395 = vmatpush1.bf16.msra.mxu0 0
        %396 = vmatprep.subr.bf16.mxu0 0
        %397 = vmatpush1.bf16.msra.mxu0 0
        %398 = vmatprep.subr.bf16.mxu0 0
        %399 = vmatpush1.bf16.msra.mxu0 0
        %400 = vmatprep.subr.bf16.mxu0 0
        %401 = vmatpush1.bf16.msra.mxu0 0
        %402 = vmatprep.subr.bf16.mxu0 0
        %403 = vmatpush1.bf16.msra.mxu0 0
        %404 = vmatprep.subr.bf16.mxu0 0
        %405 = vmatpush1.bf16.msra.mxu0 0
        %406 = vmatprep.mubr.bf16.mxu0 0
        %407 = vmatmul.mubr.bf16.gmra.mrb[0].mxu0 %v293
        %v408 = vpop.f32.mrb[0].mxu0
        %v409 = vadd.f32 0.0, %v408
        %v410 = vpop.f32.mrb[0].mxu0
        %v411 = vpop.f32.mrb[0].mxu0
        %v412 = vadd.f32 0.0, %v411
        %v413 = vpop.f32.mrb[0].mxu0
        %414 = vmatprep.mubr.bf16.mxu0 0
        %415 = vmatmul.mubr.bf16.gmra.mrb[0].mxu0 %v294
        %v416 = vpop.f32.mrb[0].mxu0
        %v417 = vadd.f32 0.0, %v416
        %v418 = vpop.f32.mrb[0].mxu0
        %v419 = vpop.f32.mrb[0].mxu0
        %v420 = vadd.f32 0.0, %v419
        %v421 = vpop.f32.mrb[0].mxu0
        %422 = vmatprep.mubr.bf16.mxu0 0
        %423 = vmatmul.mubr.bf16.gmra.mrb[0].mxu0 %v295
        %v424 = vpop.f32.mrb[0].mxu0
        %v425 = vadd.f32 0.0, %v424
        %v426 = vpop.f32.mrb[0].mxu0
        %v427 = vpop.f32.mrb[0].mxu0
        %v428 = vadd.f32 0.0, %v427
        %v429 = vpop.f32.mrb[0].mxu0
        %430 = vmatprep.mubr.bf16.mxu0 0
        %431 = vmatmul.mubr.bf16.gmra.mrb[0].mxu0 %v296
        %v432 = vpop.f32.mrb[0].mxu0
        %v433 = vadd.f32 0.0, %v432
        %v434 = vpop.f32.mrb[0].mxu0
        %v435 = vpop.f32.mrb[0].mxu0
        %v436 = vadd.f32 0.0, %v435
        %v437 = vpop.f32.mrb[0].mxu0
        %438 = vmatprep.mubr.bf16.mxu0 0
        %439 = vmatmul.mubr.bf16.gmra.mrb[0].mxu0 %v297
        %v440 = vpop.f32.mrb[0].mxu0
        %v441 = vadd.f32 0.0, %v440
        %v442 = vpop.f32.mrb[0].mxu0
        %v443 = vpop.f32.mrb[0].mxu0
        %v444 = vadd.f32 0.0, %v443
        %v445 = vpop.f32.mrb[0].mxu0
        %446 = vmatprep.mubr.bf16.mxu0 0
        %447 = vmatmul.mubr.bf16.gmra.mrb[0].mxu0 %v298
        %v448 = vpop.f32.mrb[0].mxu0
        %v449 = vadd.f32 0.0, %v448
        %v450 = vpop.f32.mrb[0].mxu0
        %v451 = vpop.f32.mrb[0].mxu0
        %v452 = vadd.f32 0.0, %v451
        %v453 = vpop.f32.mrb[0].mxu0
        %454 = vmatprep.mubr.bf16.mxu0 0
        %455 = vmatmul.mubr.bf16.gmra.mrb[0].mxu0 %v299
        %v456 = vpop.f32.mrb[0].mxu0
        %v457 = vadd.f32 0.0, %v456
        %v458 = vpop.f32.mrb[0].mxu0
        %v459 = vpop.f32.mrb[0].mxu0
        %v460 = vadd.f32 0.0, %v459
        %v461 = vpop.f32.mrb[0].mxu0
        %462 = vmatprep.mubr.bf16.mxu0 0
        %463 = vmatmul.mubr.bf16.gmra.mrb[0].mxu0 %v300
        %v464 = vpop.f32.mrb[0].mxu0
        %v465 = vadd.f32 0.0, %v464
        %v466 = vpop.f32.mrb[0].mxu0
        %v467 = vpop.f32.mrb[0].mxu0
        %v468 = vadd.f32 0.0, %v467
        %v469 = vpop.f32.mrb[0].mxu0
        %470 = vmatprep.mubr.bf16.mxu0 0
        %471 = vmatmul.mubr.bf16.gmra.mrb[0].mxu0 %v301
        %v472 = vpop.f32.mrb[0].mxu0
        %v473 = vadd.f32 0.0, %v472
        %v474 = vpop.f32.mrb[0].mxu0
        %v475 = vpop.f32.mrb[0].mxu0
        %v476 = vadd.f32 0.0, %v475
        %v477 = vpop.f32.mrb[0].mxu0
        %478 = vmatprep.mubr.bf16.mxu0 0
        %479 = vmatmul.mubr.bf16.gmra.mrb[0].mxu0 %v302
        %v480 = vpop.f32.mrb[0].mxu0
        %v481 = vadd.f32 0.0, %v480
        %v482 = vpop.f32.mrb[0].mxu0
        %v483 = vpop.f32.mrb[0].mxu0
        %v484 = vadd.f32 0.0, %v483
        %v485 = vpop.f32.mrb[0].mxu0
        %486 = vmatprep.mubr.bf16.mxu0 0
        %487 = vmatmul.mubr.bf16.gmra.mrb[0].mxu0 %v303
        %v488 = vpop.f32.mrb[0].mxu0
        %v489 = vadd.f32 0.0, %v488
        %v490 = vpop.f32.mrb[0].mxu0
        %v491 = vpop.f32.mrb[0].mxu0
        %v492 = vadd.f32 0.0, %v491
        %v493 = vpop.f32.mrb[0].mxu0
        %494 = vmatprep.mubr.bf16.mxu0 0
        %495 = vmatmul.mubr.bf16.gmra.mrb[0].mxu0 %v304
        %v496 = vpop.f32.mrb[0].mxu0
        %v497 = vadd.f32 0.0, %v496
        %v498 = vpop.f32.mrb[0].mxu0
        %v499 = vpop.f32.mrb[0].mxu0
        %v500 = vadd.f32 0.0, %v499
        %v501 = vpop.f32.mrb[0].mxu0
        %502 = vmatprep.mubr.bf16.mxu0 0
        %503 = vmatmul.mubr.bf16.gmra.mrb[0].mxu0 %v305
        %v504 = vpop.f32.mrb[0].mxu0
        %v505 = vadd.f32 0.0, %v504
        %v506 = vpop.f32.mrb[0].mxu0
        %v507 = vpop.f32.mrb[0].mxu0
        %v508 = vadd.f32 0.0, %v507
        %v509 = vpop.f32.mrb[0].mxu0
        %510 = vmatprep.mubr.bf16.mxu0 0
        %511 = vmatmul.mubr.bf16.gmra.mrb[0].mxu0 %v306
        %v512 = vpop.f32.mrb[0].mxu0
        %v513 = vadd.f32 0.0, %v512
        %v514 = vpop.f32.mrb[0].mxu0
        %v515 = vpop.f32.mrb[0].mxu0
        %v516 = vadd.f32 0.0, %v515
        %v517 = vpop.f32.mrb[0].mxu0
        %518 = vmatprep.mubr.bf16.mxu0 0
        %519 = vmatmul.mubr.bf16.gmra.mrb[0].mxu0 %v307
        %v520 = vpop.f32.mrb[0].mxu0
        %v521 = vadd.f32 0.0, %v520
        %v522 = vpop.f32.mrb[0].mxu0
        %v523 = vpop.f32.mrb[0].mxu0
        %v524 = vadd.f32 0.0, %v523
        %v525 = vpop.f32.mrb[0].mxu0
        %526 = vmatprep.mubr.bf16.mxu0 0
        %527 = vmatmul.mubr.bf16.gmra.mrb[0].mxu0 %v308
        %v528 = vpop.f32.mrb[0].mxu0
        %v529 = vadd.f32 0.0, %v528
        %v530 = vpop.f32.mrb[0].mxu0
        %v531 = vpop.f32.mrb[0].mxu0
        %v532 = vadd.f32 0.0, %v531
        %v533 = vpop.f32.mrb[0].mxu0
        %534 = vdwg.mxu0
        %v551 = vunpack.c.l.b16 %v245
        %v552 = vunpack.c.l.b16 %v246
        %v553 = vunpack.c.l.b16 %v247
        %v554 = vunpack.c.l.b16 %v248
        %v555 = vunpack.c.l.b16 %v249
        %v556 = vunpack.c.l.b16 %v250
        %v557 = vunpack.c.l.b16 %v251
        %v558 = vunpack.c.l.b16 %v252
        %v559 = vunpack.c.l.b16 %v253
        %v560 = vunpack.c.l.b16 %v254
        %v561 = vunpack.c.l.b16 %v255
        %v562 = vunpack.c.l.b16 %v256
        %v563 = vunpack.c.l.b16 %v257
        %v564 = vunpack.c.l.b16 %v258
        %v565 = vunpack.c.l.b16 %v259
        %v566 = vunpack.c.l.b16 %v260
        %v567 = vpack.c.b16 %v552, %v551
        %v568 = vpack.c.b16 %v554, %v553
        %v569 = vpack.c.b16 %v556, %v555
        %v570 = vpack.c.b16 %v558, %v557
        %v571 = vpack.c.b16 %v560, %v559
        %v572 = vpack.c.b16 %v562, %v561
        %v573 = vpack.c.b16 %v564, %v563
        %v574 = vpack.c.b16 %v566, %v565
        %583 = vmatprep.subr.bf16.mxu0 0
        %584 = vmatpush1.bf16.msra.mxu0 %v567
        %585 = vmatprep.subr.bf16.mxu0 0
        %586 = vmatpush1.bf16.msra.mxu0 %v568
        %587 = vmatprep.subr.bf16.mxu0 0
        %588 = vmatpush1.bf16.msra.mxu0 %v569
        %589 = vmatprep.subr.bf16.mxu0 0
        %590 = vmatpush1.bf16.msra.mxu0 %v570
        %591 = vmatprep.subr.bf16.mxu0 0
        %592 = vmatpush1.bf16.msra.mxu0 %v571
        %593 = vmatprep.subr.bf16.mxu0 0
        %594 = vmatpush1.bf16.msra.mxu0 %v572
        %595 = vmatprep.subr.bf16.mxu0 0
        %596 = vmatpush1.bf16.msra.mxu0 %v573
        %597 = vmatprep.subr.bf16.mxu0 0
        %598 = vmatpush1.bf16.msra.mxu0 %v574
        %599 = vmatprep.subr.bf16.mxu0 0
        %600 = vmatpush1.bf16.msra.mxu0 0
        %601 = vmatprep.subr.bf16.mxu0 0
        %602 = vmatpush1.bf16.msra.mxu0 0
        %603 = vmatprep.subr.bf16.mxu0 0
        %604 = vmatpush1.bf16.msra.mxu0 0
        %605 = vmatprep.subr.bf16.mxu0 0
        %606 = vmatpush1.bf16.msra.mxu0 0
        %607 = vmatprep.subr.bf16.mxu0 0
        %608 = vmatpush1.bf16.msra.mxu0 0
        %609 = vmatprep.subr.bf16.mxu0 0
        %610 = vmatpush1.bf16.msra.mxu0 0
        %611 = vmatprep.subr.bf16.mxu0 0
        %612 = vmatpush1.bf16.msra.mxu0 0
        %613 = vmatprep.subr.bf16.mxu0 0
        %614 = vmatpush1.bf16.msra.mxu0 0
        %615 = vmatprep.mubr.bf16.mxu0 0
        %616 = vmatmul.mubr.bf16.gmra.mrb[0].mxu0 %v229
        %v617 = vpop.f32.mrb[0].mxu0
        %v618 = vadd.f32 %v409, %v617
        %v619 = vpop.f32.mrb[0].mxu0
        %v620 = vpop.f32.mrb[0].mxu0
        %v621 = vadd.f32 %v412, %v620
        %v622 = vpop.f32.mrb[0].mxu0
        %623 = vmatprep.mubr.bf16.mxu0 0
        %624 = vmatmul.mubr.bf16.gmra.mrb[0].mxu0 %v230
        %v625 = vpop.f32.mrb[0].mxu0
        %v626 = vadd.f32 %v417, %v625
        %v627 = vpop.f32.mrb[0].mxu0
        %v628 = vpop.f32.mrb[0].mxu0
        %v629 = vadd.f32 %v420, %v628
        %v630 = vpop.f32.mrb[0].mxu0
        %631 = vmatprep.mubr.bf16.mxu0 0
        %632 = vmatmul.mubr.bf16.gmra.mrb[0].mxu0 %v231
        %v633 = vpop.f32.mrb[0].mxu0
        %v634 = vadd.f32 %v425, %v633
        %v635 = vpop.f32.mrb[0].mxu0
        %v636 = vpop.f32.mrb[0].mxu0
        %v637 = vadd.f32 %v428, %v636
        %v638 = vpop.f32.mrb[0].mxu0
        %639 = vmatprep.mubr.bf16.mxu0 0
        %640 = vmatmul.mubr.bf16.gmra.mrb[0].mxu0 %v232
        %v641 = vpop.f32.mrb[0].mxu0
        %v642 = vadd.f32 %v433, %v641
        %v643 = vpop.f32.mrb[0].mxu0
        %v644 = vpop.f32.mrb[0].mxu0
        %v645 = vadd.f32 %v436, %v644
        %v646 = vpop.f32.mrb[0].mxu0
        %647 = vmatprep.mubr.bf16.mxu0 0
        %648 = vmatmul.mubr.bf16.gmra.mrb[0].mxu0 %v233
        %v649 = vpop.f32.mrb[0].mxu0
        %v650 = vadd.f32 %v441, %v649
        %v651 = vpop.f32.mrb[0].mxu0
        %v652 = vpop.f32.mrb[0].mxu0
        %v653 = vadd.f32 %v444, %v652
        %v654 = vpop.f32.mrb[0].mxu0
        %655 = vmatprep.mubr.bf16.mxu0 0
        %656 = vmatmul.mubr.bf16.gmra.mrb[0].mxu0 %v234
        %v657 = vpop.f32.mrb[0].mxu0
        %v658 = vadd.f32 %v449, %v657
        %v659 = vpop.f32.mrb[0].mxu0
        %v660 = vpop.f32.mrb[0].mxu0
        %v661 = vadd.f32 %v452, %v660
        %v662 = vpop.f32.mrb[0].mxu0
        %663 = vmatprep.mubr.bf16.mxu0 0
        %664 = vmatmul.mubr.bf16.gmra.mrb[0].mxu0 %v235
        %v665 = vpop.f32.mrb[0].mxu0
        %v666 = vadd.f32 %v457, %v665
        %v667 = vpop.f32.mrb[0].mxu0
        %v668 = vpop.f32.mrb[0].mxu0
        %v669 = vadd.f32 %v460, %v668
        %v670 = vpop.f32.mrb[0].mxu0
        %671 = vmatprep.mubr.bf16.mxu0 0
        %672 = vmatmul.mubr.bf16.gmra.mrb[0].mxu0 %v236
        %v673 = vpop.f32.mrb[0].mxu0
        %v674 = vadd.f32 %v465, %v673
        %v675 = vpop.f32.mrb[0].mxu0
        %v676 = vpop.f32.mrb[0].mxu0
        %v677 = vadd.f32 %v468, %v676
        %v678 = vpop.f32.mrb[0].mxu0
        %679 = vmatprep.mubr.bf16.mxu0 0
        %680 = vmatmul.mubr.bf16.gmra.mrb[0].mxu0 %v237
        %v681 = vpop.f32.mrb[0].mxu0
        %v682 = vadd.f32 %v473, %v681
        %v683 = vpop.f32.mrb[0].mxu0
        %v684 = vpop.f32.mrb[0].mxu0
        %v685 = vadd.f32 %v476, %v684
        %v686 = vpop.f32.mrb[0].mxu0
        %687 = vmatprep.mubr.bf16.mxu0 0
        %688 = vmatmul.mubr.bf16.gmra.mrb[0].mxu0 %v238
        %v689 = vpop.f32.mrb[0].mxu0
        %v690 = vadd.f32 %v481, %v689
        %v691 = vpop.f32.mrb[0].mxu0
        %v692 = vpop.f32.mrb[0].mxu0
        %v693 = vadd.f32 %v484, %v692
        %v694 = vpop.f32.mrb[0].mxu0
        %695 = vmatprep.mubr.bf16.mxu0 0
        %696 = vmatmul.mubr.bf16.gmra.mrb[0].mxu0 %v239
        %v697 = vpop.f32.mrb[0].mxu0
        %v698 = vadd.f32 %v489, %v697
        %v699 = vpop.f32.mrb[0].mxu0
        %v700 = vpop.f32.mrb[0].mxu0
        %v701 = vadd.f32 %v492, %v700
        %v702 = vpop.f32.mrb[0].mxu0
        %703 = vmatprep.mubr.bf16.mxu0 0
        %704 = vmatmul.mubr.bf16.gmra.mrb[0].mxu0 %v240
        %v705 = vpop.f32.mrb[0].mxu0
        %v706 = vadd.f32 %v497, %v705
        %v707 = vpop.f32.mrb[0].mxu0
        %v708 = vpop.f32.mrb[0].mxu0
        %v709 = vadd.f32 %v500, %v708
        %v710 = vpop.f32.mrb[0].mxu0
        %711 = vmatprep.mubr.bf16.mxu0 0
        %712 = vmatmul.mubr.bf16.gmra.mrb[0].mxu0 %v241
        %v713 = vpop.f32.mrb[0].mxu0
        %v714 = vadd.f32 %v505, %v713
        %v715 = vpop.f32.mrb[0].mxu0
        %v716 = vpop.f32.mrb[0].mxu0
        %v717 = vadd.f32 %v508, %v716
        %v718 = vpop.f32.mrb[0].mxu0
        %719 = vmatprep.mubr.bf16.mxu0 0
        %720 = vmatmul.mubr.bf16.gmra.mrb[0].mxu0 %v242
        %v721 = vpop.f32.mrb[0].mxu0
        %v722 = vadd.f32 %v513, %v721
        %v723 = vpop.f32.mrb[0].mxu0
        %v724 = vpop.f32.mrb[0].mxu0
        %v725 = vadd.f32 %v516, %v724
        %v726 = vpop.f32.mrb[0].mxu0
        %727 = vmatprep.mubr.bf16.mxu0 0
        %728 = vmatmul.mubr.bf16.gmra.mrb[0].mxu0 %v243
        %v729 = vpop.f32.mrb[0].mxu0
        %v730 = vadd.f32 %v521, %v729
        %v731 = vpop.f32.mrb[0].mxu0
        %v732 = vpop.f32.mrb[0].mxu0
        %v733 = vadd.f32 %v524, %v732
        %v734 = vpop.f32.mrb[0].mxu0
        %735 = vmatprep.mubr.bf16.mxu0 0
        %736 = vmatmul.mubr.bf16.gmra.mrb[0].mxu0 %v244
        %v737 = vpop.f32.mrb[0].mxu0
        %v738 = vadd.f32 %v529, %v737
        %v739 = vpop.f32.mrb[0].mxu0
        %v740 = vpop.f32.mrb[0].mxu0
        %v741 = vadd.f32 %v532, %v740
        %v742 = vpop.f32.mrb[0].mxu0
        %743 = vdwg.mxu0
        %v744 = vld [vmem:[%s195 + $0x2] sm:$0xff]
        %v745 = vld [vmem:[%s195 + $0xa] sm:$0xff]
        %v746 = vld [vmem:[%s195 + $0x1a] sm:$0xff]
        %v747 = vld [vmem:[%s195 + $0x22] sm:$0xff]
        %v748 = vld [vmem:[%s195 + $0x32] sm:$0xff]
        %v749 = vld [vmem:[%s195 + $0x3a] sm:$0xff]
        %v750 = vld [vmem:[%s195 + $0x4a] sm:$0xff]
        %v751 = vld [vmem:[%s195 + $0x52] sm:$0xff]
        %v752 = vld [vmem:[%s195 + $0x62] sm:$0xff]
        %v753 = vld [vmem:[%s195 + $0x6a] sm:$0xff]
        %v754 = vld [vmem:[%s195 + $0x7a] sm:$0xff]
        %v755 = vld [vmem:[%s195 + $0x82] sm:$0xff]
        %v756 = vld [vmem:[%s195 + $0x92] sm:$0xff]
        %v757 = vld [vmem:[%s195 + $0x9a] sm:$0xff]
        %v758 = vld [vmem:[%s195 + $0xaa] sm:$0xff]
        %v759 = vld [vmem:[%s195 + $0xb2] sm:$0xff]
        %v760 = vld [vmem:[%s195 + $0xc2] sm:$0xff]
        %v761 = vld [vmem:[%s195 + $0xca] sm:$0xff]
        %v762 = vld [vmem:[%s195 + $0xda] sm:$0xff]
        %v763 = vld [vmem:[%s195 + $0xe2] sm:$0xff]
        %v764 = vld [vmem:[%s195 + $0xf2] sm:$0xff]
        %v765 = vld [vmem:[%s195 + $0xfa] sm:$0xff]
        %v766 = vld [vmem:[%s195 + $0x10a] sm:$0xff]
        %v767 = vld [vmem:[%s195 + $0x112] sm:$0xff]
        %v768 = vld [vmem:[%s195 + $0x122] sm:$0xff]
        %v769 = vld [vmem:[%s195 + $0x12a] sm:$0xff]
        %v770 = vld [vmem:[%s195 + $0x13a] sm:$0xff]
        %v771 = vld [vmem:[%s195 + $0x142] sm:$0xff]
        %v772 = vld [vmem:[%s195 + $0x152] sm:$0xff]
        %v773 = vld [vmem:[%s195 + $0x15a] sm:$0xff]
        %v774 = vld [vmem:[%s195 + $0x16a] sm:$0xff]
        %v775 = vld [vmem:[%s195 + $0x172] sm:$0xff]
        %v776 = vpack.c.bf16 %v745, %v744
        %v777 = vpack.c.bf16 %v747, %v746
        %v778 = vpack.c.bf16 %v749, %v748
        %v779 = vpack.c.bf16 %v751, %v750
        %v780 = vpack.c.bf16 %v753, %v752
        %v781 = vpack.c.bf16 %v755, %v754
        %v782 = vpack.c.bf16 %v757, %v756
        %v783 = vpack.c.bf16 %v759, %v758
        %v784 = vpack.c.bf16 %v761, %v760
        %v785 = vpack.c.bf16 %v763, %v762
        %v786 = vpack.c.bf16 %v765, %v764
        %v787 = vpack.c.bf16 %v767, %v766
        %v788 = vpack.c.bf16 %v769, %v768
        %v789 = vpack.c.bf16 %v771, %v770
        %v790 = vpack.c.bf16 %v773, %v772
        %v791 = vpack.c.bf16 %v775, %v774
        %s792 = scalar_lea.vmem %s1, 128
        %v793 = vld [vmem:[%s792] sm:$0xf]
        %v794 = vld [vmem:[%s792 + $0x4] sm:$0xf]
        %v795 = vld [vmem:[%s792 + $0x8] sm:$0xf]
        %v796 = vld [vmem:[%s792 + $0xc] sm:$0xf]
        %v797 = vld [vmem:[%s792 + $0x10] sm:$0xf]
        %v798 = vld [vmem:[%s792 + $0x14] sm:$0xf]
        %v799 = vld [vmem:[%s792 + $0x18] sm:$0xf]
        %v800 = vld [vmem:[%s792 + $0x1c] sm:$0xf]
        %v801 = vld [vmem:[%s792 + $0x20] sm:$0xf]
        %v802 = vld [vmem:[%s792 + $0x24] sm:$0xf]
        %v803 = vld [vmem:[%s792 + $0x28] sm:$0xf]
        %v804 = vld [vmem:[%s792 + $0x2c] sm:$0xf]
        %v805 = vld [vmem:[%s792 + $0x30] sm:$0xf]
        %v806 = vld [vmem:[%s792 + $0x34] sm:$0xf]
        %v807 = vld [vmem:[%s792 + $0x38] sm:$0xf]
        %v808 = vld [vmem:[%s792 + $0x3c] sm:$0xf]
        %v825 = vunpack.c.l.b16 %v793
        %v826 = vunpack.c.l.b16 %v794
        %v827 = vunpack.c.l.b16 %v795
        %v828 = vunpack.c.l.b16 %v796
        %v829 = vunpack.c.l.b16 %v797
        %v830 = vunpack.c.l.b16 %v798
        %v831 = vunpack.c.l.b16 %v799
        %v832 = vunpack.c.l.b16 %v800
        %v833 = vunpack.c.l.b16 %v801
        %v834 = vunpack.c.l.b16 %v802
        %v835 = vunpack.c.l.b16 %v803
        %v836 = vunpack.c.l.b16 %v804
        %v837 = vunpack.c.l.b16 %v805
        %v838 = vunpack.c.l.b16 %v806
        %v839 = vunpack.c.l.b16 %v807
        %v840 = vunpack.c.l.b16 %v808
        %v841 = vpack.c.b16 %v826, %v825
        %v842 = vpack.c.b16 %v828, %v827
        %v843 = vpack.c.b16 %v830, %v829
        %v844 = vpack.c.b16 %v832, %v831
        %v845 = vpack.c.b16 %v834, %v833
        %v846 = vpack.c.b16 %v836, %v835
        %v847 = vpack.c.b16 %v838, %v837
        %v848 = vpack.c.b16 %v840, %v839
        %857 = vmatprep.subr.bf16.mxu0 0
        %858 = vmatpush1.bf16.msra.mxu0 %v841
        %859 = vmatprep.subr.bf16.mxu0 0
        %860 = vmatpush1.bf16.msra.mxu0 %v842
        %861 = vmatprep.subr.bf16.mxu0 0
        %862 = vmatpush1.bf16.msra.mxu0 %v843
        %863 = vmatprep.subr.bf16.mxu0 0
        %864 = vmatpush1.bf16.msra.mxu0 %v844
        %865 = vmatprep.subr.bf16.mxu0 0
        %866 = vmatpush1.bf16.msra.mxu0 %v845
        %867 = vmatprep.subr.bf16.mxu0 0
        %868 = vmatpush1.bf16.msra.mxu0 %v846
        %869 = vmatprep.subr.bf16.mxu0 0
        %870 = vmatpush1.bf16.msra.mxu0 %v847
        %871 = vmatprep.subr.bf16.mxu0 0
        %872 = vmatpush1.bf16.msra.mxu0 %v848
        %873 = vmatprep.subr.bf16.mxu0 0
        %874 = vmatpush1.bf16.msra.mxu0 0
        %875 = vmatprep.subr.bf16.mxu0 0
        %876 = vmatpush1.bf16.msra.mxu0 0
        %877 = vmatprep.subr.bf16.mxu0 0
        %878 = vmatpush1.bf16.msra.mxu0 0
        %879 = vmatprep.subr.bf16.mxu0 0
        %880 = vmatpush1.bf16.msra.mxu0 0
        %881 = vmatprep.subr.bf16.mxu0 0
        %882 = vmatpush1.bf16.msra.mxu0 0
        %883 = vmatprep.subr.bf16.mxu0 0
        %884 = vmatpush1.bf16.msra.mxu0 0
        %885 = vmatprep.subr.bf16.mxu0 0
        %886 = vmatpush1.bf16.msra.mxu0 0
        %887 = vmatprep.subr.bf16.mxu0 0
        %888 = vmatpush1.bf16.msra.mxu0 0
        %889 = vmatprep.mubr.bf16.mxu0 0
        %890 = vmatmul.mubr.bf16.gmra.mrb[0].mxu0 %v776
        %v891 = vpop.f32.mrb[0].mxu0
        %v892 = vadd.f32 0.0, %v891
        %v893 = vpop.f32.mrb[0].mxu0
        %v894 = vpop.f32.mrb[0].mxu0
        %v895 = vadd.f32 0.0, %v894
        %v896 = vpop.f32.mrb[0].mxu0
        %897 = vmatprep.mubr.bf16.mxu0 0
        %898 = vmatmul.mubr.bf16.gmra.mrb[0].mxu0 %v777
        %v899 = vpop.f32.mrb[0].mxu0
        %v900 = vadd.f32 0.0, %v899
        %v901 = vpop.f32.mrb[0].mxu0
        %v902 = vpop.f32.mrb[0].mxu0
        %v903 = vadd.f32 0.0, %v902
        %v904 = vpop.f32.mrb[0].mxu0
        %905 = vmatprep.mubr.bf16.mxu0 0
        %906 = vmatmul.mubr.bf16.gmra.mrb[0].mxu0 %v778
        %v907 = vpop.f32.mrb[0].mxu0
        %v908 = vadd.f32 0.0, %v907
        %v909 = vpop.f32.mrb[0].mxu0
        %v910 = vpop.f32.mrb[0].mxu0
        %v911 = vadd.f32 0.0, %v910
        %v912 = vpop.f32.mrb[0].mxu0
        %913 = vmatprep.mubr.bf16.mxu0 0
        %914 = vmatmul.mubr.bf16.gmra.mrb[0].mxu0 %v779
        %v915 = vpop.f32.mrb[0].mxu0
        %v916 = vadd.f32 0.0, %v915
        %v917 = vpop.f32.mrb[0].mxu0
        %v918 = vpop.f32.mrb[0].mxu0
        %v919 = vadd.f32 0.0, %v918
        %v920 = vpop.f32.mrb[0].mxu0
        %921 = vmatprep.mubr.bf16.mxu0 0
        %922 = vmatmul.mubr.bf16.gmra.mrb[0].mxu0 %v780
        %v923 = vpop.f32.mrb[0].mxu0
        %v924 = vadd.f32 0.0, %v923
        %v925 = vpop.f32.mrb[0].mxu0
        %v926 = vpop.f32.mrb[0].mxu0
        %v927 = vadd.f32 0.0, %v926
        %v928 = vpop.f32.mrb[0].mxu0
        %929 = vmatprep.mubr.bf16.mxu0 0
        %930 = vmatmul.mubr.bf16.gmra.mrb[0].mxu0 %v781
        %v931 = vpop.f32.mrb[0].mxu0
        %v932 = vadd.f32 0.0, %v931
        %v933 = vpop.f32.mrb[0].mxu0
        %v934 = vpop.f32.mrb[0].mxu0
        %v935 = vadd.f32 0.0, %v934
        %v936 = vpop.f32.mrb[0].mxu0
        %937 = vmatprep.mubr.bf16.mxu0 0
        %938 = vmatmul.mubr.bf16.gmra.mrb[0].mxu0 %v782
        %v939 = vpop.f32.mrb[0].mxu0
        %v940 = vadd.f32 0.0, %v939
        %v941 = vpop.f32.mrb[0].mxu0
        %v942 = vpop.f32.mrb[0].mxu0
        %v943 = vadd.f32 0.0, %v942
        %v944 = vpop.f32.mrb[0].mxu0
        %945 = vmatprep.mubr.bf16.mxu0 0
        %946 = vmatmul.mubr.bf16.gmra.mrb[0].mxu0 %v783
        %v947 = vpop.f32.mrb[0].mxu0
        %v948 = vadd.f32 0.0, %v947
        %v949 = vpop.f32.mrb[0].mxu0
        %v950 = vpop.f32.mrb[0].mxu0
        %v951 = vadd.f32 0.0, %v950
        %v952 = vpop.f32.mrb[0].mxu0
        %953 = vmatprep.mubr.bf16.mxu0 0
        %954 = vmatmul.mubr.bf16.gmra.mrb[0].mxu0 %v784
        %v955 = vpop.f32.mrb[0].mxu0
        %v956 = vadd.f32 0.0, %v955
        %v957 = vpop.f32.mrb[0].mxu0
        %v958 = vpop.f32.mrb[0].mxu0
        %v959 = vadd.f32 0.0, %v958
        %v960 = vpop.f32.mrb[0].mxu0
        %961 = vmatprep.mubr.bf16.mxu0 0
        %962 = vmatmul.mubr.bf16.gmra.mrb[0].mxu0 %v785
        %v963 = vpop.f32.mrb[0].mxu0
        %v964 = vadd.f32 0.0, %v963
        %v965 = vpop.f32.mrb[0].mxu0
        %v966 = vpop.f32.mrb[0].mxu0
        %v967 = vadd.f32 0.0, %v966
        %v968 = vpop.f32.mrb[0].mxu0
        %969 = vmatprep.mubr.bf16.mxu0 0
        %970 = vmatmul.mubr.bf16.gmra.mrb[0].mxu0 %v786
        %v971 = vpop.f32.mrb[0].mxu0
        %v972 = vadd.f32 0.0, %v971
        %v973 = vpop.f32.mrb[0].mxu0
        %v974 = vpop.f32.mrb[0].mxu0
        %v975 = vadd.f32 0.0, %v974
        %v976 = vpop.f32.mrb[0].mxu0
        %977 = vmatprep.mubr.bf16.mxu0 0
        %978 = vmatmul.mubr.bf16.gmra.mrb[0].mxu0 %v787
        %v979 = vpop.f32.mrb[0].mxu0
        %v980 = vadd.f32 0.0, %v979
        %v981 = vpop.f32.mrb[0].mxu0
        %v982 = vpop.f32.mrb[0].mxu0
        %v983 = vadd.f32 0.0, %v982
        %v984 = vpop.f32.mrb[0].mxu0
        %985 = vmatprep.mubr.bf16.mxu0 0
        %986 = vmatmul.mubr.bf16.gmra.mrb[0].mxu0 %v788
        %v987 = vpop.f32.mrb[0].mxu0
        %v988 = vadd.f32 0.0, %v987
        %v989 = vpop.f32.mrb[0].mxu0
        %v990 = vpop.f32.mrb[0].mxu0
        %v991 = vadd.f32 0.0, %v990
        %v992 = vpop.f32.mrb[0].mxu0
        %993 = vmatprep.mubr.bf16.mxu0 0
        %994 = vmatmul.mubr.bf16.gmra.mrb[0].mxu0 %v789
        %v995 = vpop.f32.mrb[0].mxu0
        %v996 = vadd.f32 0.0, %v995
        %v997 = vpop.f32.mrb[0].mxu0
        %v998 = vpop.f32.mrb[0].mxu0
        %v999 = vadd.f32 0.0, %v998
        %v1000 = vpop.f32.mrb[0].mxu0
        %1001 = vmatprep.mubr.bf16.mxu0 0
        %1002 = vmatmul.mubr.bf16.gmra.mrb[0].mxu0 %v790
        %v1003 = vpop.f32.mrb[0].mxu0
        %v1004 = vadd.f32 0.0, %v1003
        %v1005 = vpop.f32.mrb[0].mxu0
        %v1006 = vpop.f32.mrb[0].mxu0
        %v1007 = vadd.f32 0.0, %v1006
        %v1008 = vpop.f32.mrb[0].mxu0
        %1009 = vmatprep.mubr.bf16.mxu0 0
        %1010 = vmatmul.mubr.bf16.gmra.mrb[0].mxu0 %v791
        %v1011 = vpop.f32.mrb[0].mxu0
        %v1012 = vadd.f32 0.0, %v1011
        %v1013 = vpop.f32.mrb[0].mxu0
        %v1014 = vpop.f32.mrb[0].mxu0
        %v1015 = vadd.f32 0.0, %v1014
        %v1016 = vpop.f32.mrb[0].mxu0
        %1017 = vdwg.mxu0
        %v1018 = vadd.f32 %v618, %v892
        %v1019 = vadd.f32 %v621, %v895
        %v1020 = vadd.f32 %v626, %v900
        %v1021 = vadd.f32 %v629, %v903
        %v1022 = vadd.f32 %v634, %v908
        %v1023 = vadd.f32 %v637, %v911
        %v1024 = vadd.f32 %v642, %v916
        %v1025 = vadd.f32 %v645, %v919
        %v1026 = vadd.f32 %v650, %v924
        %v1027 = vadd.f32 %v653, %v927
        %v1028 = vadd.f32 %v658, %v932
        %v1029 = vadd.f32 %v661, %v935
        %v1030 = vadd.f32 %v666, %v940
        %v1031 = vadd.f32 %v669, %v943
        %v1032 = vadd.f32 %v674, %v948
        %v1033 = vadd.f32 %v677, %v951
        %v1034 = vadd.f32 %v682, %v956
        %v1035 = vadd.f32 %v685, %v959
        %v1036 = vadd.f32 %v690, %v964
        %v1037 = vadd.f32 %v693, %v967
        %v1038 = vadd.f32 %v698, %v972
        %v1039 = vadd.f32 %v701, %v975
        %v1040 = vadd.f32 %v706, %v980
        %v1041 = vadd.f32 %v709, %v983
        %v1042 = vadd.f32 %v714, %v988
        %v1043 = vadd.f32 %v717, %v991
        %v1044 = vadd.f32 %v722, %v996
        %v1045 = vadd.f32 %v725, %v999
        %v1046 = vadd.f32 %v730, %v1004
        %v1047 = vadd.f32 %v733, %v1007
        %v1048 = vadd.f32 %v738, %v1012
        %v1049 = vadd.f32 %v741, %v1015
        %s1050 = scalar_lea.vmem %s195, 24
        %v1051 = vld [vmem:[%s1050] sm:$0xff]
        %v1052 = vld [vmem:[%s1050 + $0x8] sm:$0xff]
        %v1053 = vld [vmem:[%s1050 + $0x18] sm:$0xff]
        %v1054 = vld [vmem:[%s1050 + $0x20] sm:$0xff]
        %v1055 = vld [vmem:[%s1050 + $0x30] sm:$0xff]
        %v1056 = vld [vmem:[%s1050 + $0x38] sm:$0xff]
        %v1057 = vld [vmem:[%s1050 + $0x48] sm:$0xff]
        %v1058 = vld [vmem:[%s1050 + $0x50] sm:$0xff]
        %v1059 = vld [vmem:[%s1050 + $0x60] sm:$0xff]
        %v1060 = vld [vmem:[%s1050 + $0x68] sm:$0xff]
        %v1061 = vld [vmem:[%s1050 + $0x78] sm:$0xff]
        %v1062 = vld [vmem:[%s1050 + $0x80] sm:$0xff]
        %v1063 = vld [vmem:[%s1050 + $0x90] sm:$0xff]
        %v1064 = vld [vmem:[%s1050 + $0x98] sm:$0xff]
        %v1065 = vld [vmem:[%s1050 + $0xa8] sm:$0xff]
        %v1066 = vld [vmem:[%s1050 + $0xb0] sm:$0xff]
        %v1067 = vld [vmem:[%s1050 + $0xc0] sm:$0xff]
        %v1068 = vld [vmem:[%s1050 + $0xc8] sm:$0xff]
        %v1069 = vld [vmem:[%s1050 + $0xd8] sm:$0xff]
        %v1070 = vld [vmem:[%s1050 + $0xe0] sm:$0xff]
        %v1071 = vld [vmem:[%s1050 + $0xf0] sm:$0xff]
        %v1072 = vld [vmem:[%s1050 + $0xf8] sm:$0xff]
        %v1073 = vld [vmem:[%s1050 + $0x108] sm:$0xff]
        %v1074 = vld [vmem:[%s1050 + $0x110] sm:$0xff]
        %v1075 = vld [vmem:[%s1050 + $0x120] sm:$0xff]
        %v1076 = vld [vmem:[%s1050 + $0x128] sm:$0xff]
        %v1077 = vld [vmem:[%s1050 + $0x138] sm:$0xff]
        %v1078 = vld [vmem:[%s1050 + $0x140] sm:$0xff]
        %v1079 = vld [vmem:[%s1050 + $0x150] sm:$0xff]
        %v1080 = vld [vmem:[%s1050 + $0x158] sm:$0xff]
        %v1081 = vld [vmem:[%s1050 + $0x168] sm:$0xff]
        %v1082 = vld [vmem:[%s1050 + $0x170] sm:$0xff]
        %v1083 = vpack.c.bf16 %v1052, %v1051
        %v1084 = vpack.c.bf16 %v1054, %v1053
        %v1085 = vpack.c.bf16 %v1056, %v1055
        %v1086 = vpack.c.bf16 %v1058, %v1057
        %v1087 = vpack.c.bf16 %v1060, %v1059
        %v1088 = vpack.c.bf16 %v1062, %v1061
        %v1089 = vpack.c.bf16 %v1064, %v1063
        %v1090 = vpack.c.bf16 %v1066, %v1065
        %v1091 = vpack.c.bf16 %v1068, %v1067
        %v1092 = vpack.c.bf16 %v1070, %v1069
        %v1093 = vpack.c.bf16 %v1072, %v1071
        %v1094 = vpack.c.bf16 %v1074, %v1073
        %v1095 = vpack.c.bf16 %v1076, %v1075
        %v1096 = vpack.c.bf16 %v1078, %v1077
        %v1097 = vpack.c.bf16 %v1080, %v1079
        %v1098 = vpack.c.bf16 %v1082, %v1081
        %s1099 = scalar_lea.vmem %s1, 192
        %v1100 = vld [vmem:[%s1099] sm:$0xf]
        %v1101 = vld [vmem:[%s1099 + $0x4] sm:$0xf]
        %v1102 = vld [vmem:[%s1099 + $0x8] sm:$0xf]
        %v1103 = vld [vmem:[%s1099 + $0xc] sm:$0xf]
        %v1104 = vld [vmem:[%s1099 + $0x10] sm:$0xf]
        %v1105 = vld [vmem:[%s1099 + $0x14] sm:$0xf]
        %v1106 = vld [vmem:[%s1099 + $0x18] sm:$0xf]
        %v1107 = vld [vmem:[%s1099 + $0x1c] sm:$0xf]
        %v1108 = vld [vmem:[%s1099 + $0x20] sm:$0xf]
        %v1109 = vld [vmem:[%s1099 + $0x24] sm:$0xf]
        %v1110 = vld [vmem:[%s1099 + $0x28] sm:$0xf]
        %v1111 = vld [vmem:[%s1099 + $0x2c] sm:$0xf]
        %v1112 = vld [vmem:[%s1099 + $0x30] sm:$0xf]
        %v1113 = vld [vmem:[%s1099 + $0x34] sm:$0xf]
        %v1114 = vld [vmem:[%s1099 + $0x38] sm:$0xf]
        %v1115 = vld [vmem:[%s1099 + $0x3c] sm:$0xf]
        %v1132 = vunpack.c.l.b16 %v1100
        %v1133 = vunpack.c.l.b16 %v1101
        %v1134 = vunpack.c.l.b16 %v1102
        %v1135 = vunpack.c.l.b16 %v1103
        %v1136 = vunpack.c.l.b16 %v1104
        %v1137 = vunpack.c.l.b16 %v1105
        %v1138 = vunpack.c.l.b16 %v1106
        %v1139 = vunpack.c.l.b16 %v1107
        %v1140 = vunpack.c.l.b16 %v1108
        %v1141 = vunpack.c.l.b16 %v1109
        %v1142 = vunpack.c.l.b16 %v1110
        %v1143 = vunpack.c.l.b16 %v1111
        %v1144 = vunpack.c.l.b16 %v1112
        %v1145 = vunpack.c.l.b16 %v1113
        %v1146 = vunpack.c.l.b16 %v1114
        %v1147 = vunpack.c.l.b16 %v1115
        %v1148 = vpack.c.b16 %v1133, %v1132
        %v1149 = vpack.c.b16 %v1135, %v1134
        %v1150 = vpack.c.b16 %v1137, %v1136
        %v1151 = vpack.c.b16 %v1139, %v1138
        %v1152 = vpack.c.b16 %v1141, %v1140
        %v1153 = vpack.c.b16 %v1143, %v1142
        %v1154 = vpack.c.b16 %v1145, %v1144
        %v1155 = vpack.c.b16 %v1147, %v1146
        %1164 = vmatprep.subr.bf16.mxu0 0
        %1165 = vmatpush1.bf16.msra.mxu0 %v1148
        %1166 = vmatprep.subr.bf16.mxu0 0
        %1167 = vmatpush1.bf16.msra.mxu0 %v1149
        %1168 = vmatprep.subr.bf16.mxu0 0
        %1169 = vmatpush1.bf16.msra.mxu0 %v1150
        %1170 = vmatprep.subr.bf16.mxu0 0
        %1171 = vmatpush1.bf16.msra.mxu0 %v1151
        %1172 = vmatprep.subr.bf16.mxu0 0
        %1173 = vmatpush1.bf16.msra.mxu0 %v1152
        %1174 = vmatprep.subr.bf16.mxu0 0
        %1175 = vmatpush1.bf16.msra.mxu0 %v1153
        %1176 = vmatprep.subr.bf16.mxu0 0
        %1177 = vmatpush1.bf16.msra.mxu0 %v1154
        %1178 = vmatprep.subr.bf16.mxu0 0
        %1179 = vmatpush1.bf16.msra.mxu0 %v1155
        %1180 = vmatprep.subr.bf16.mxu0 0
        %1181 = vmatpush1.bf16.msra.mxu0 0
        %1182 = vmatprep.subr.bf16.mxu0 0
        %1183 = vmatpush1.bf16.msra.mxu0 0
        %1184 = vmatprep.subr.bf16.mxu0 0
        %1185 = vmatpush1.bf16.msra.mxu0 0
        %1186 = vmatprep.subr.bf16.mxu0 0
        %1187 = vmatpush1.bf16.msra.mxu0 0
        %1188 = vmatprep.subr.bf16.mxu0 0
        %1189 = vmatpush1.bf16.msra.mxu0 0
        %1190 = vmatprep.subr.bf16.mxu0 0
        %1191 = vmatpush1.bf16.msra.mxu0 0
        %1192 = vmatprep.subr.bf16.mxu0 0
        %1193 = vmatpush1.bf16.msra.mxu0 0
        %1194 = vmatprep.subr.bf16.mxu0 0
        %1195 = vmatpush1.bf16.msra.mxu0 0
        %1196 = vmatprep.mubr.bf16.mxu0 0
        %1197 = vmatmul.mubr.bf16.gmra.mrb[0].mxu0 %v1083
        %v1198 = vpop.f32.mrb[0].mxu0
        %v1199 = vadd.f32 0.0, %v1198
        %v1200 = vpop.f32.mrb[0].mxu0
        %v1201 = vpop.f32.mrb[0].mxu0
        %v1202 = vadd.f32 0.0, %v1201
        %v1203 = vpop.f32.mrb[0].mxu0
        %1204 = vmatprep.mubr.bf16.mxu0 0
        %1205 = vmatmul.mubr.bf16.gmra.mrb[0].mxu0 %v1084
        %v1206 = vpop.f32.mrb[0].mxu0
        %v1207 = vadd.f32 0.0, %v1206
        %v1208 = vpop.f32.mrb[0].mxu0
        %v1209 = vpop.f32.mrb[0].mxu0
        %v1210 = vadd.f32 0.0, %v1209
        %v1211 = vpop.f32.mrb[0].mxu0
        %1212 = vmatprep.mubr.bf16.mxu0 0
        %1213 = vmatmul.mubr.bf16.gmra.mrb[0].mxu0 %v1085
        %v1214 = vpop.f32.mrb[0].mxu0
        %v1215 = vadd.f32 0.0, %v1214
        %v1216 = vpop.f32.mrb[0].mxu0
        %v1217 = vpop.f32.mrb[0].mxu0
        %v1218 = vadd.f32 0.0, %v1217
        %v1219 = vpop.f32.mrb[0].mxu0
        %1220 = vmatprep.mubr.bf16.mxu0 0
        %1221 = vmatmul.mubr.bf16.gmra.mrb[0].mxu0 %v1086
        %v1222 = vpop.f32.mrb[0].mxu0
        %v1223 = vadd.f32 0.0, %v1222
        %v1224 = vpop.f32.mrb[0].mxu0
        %v1225 = vpop.f32.mrb[0].mxu0
        %v1226 = vadd.f32 0.0, %v1225
        %v1227 = vpop.f32.mrb[0].mxu0
        %1228 = vmatprep.mubr.bf16.mxu0 0
        %1229 = vmatmul.mubr.bf16.gmra.mrb[0].mxu0 %v1087
        %v1230 = vpop.f32.mrb[0].mxu0
        %v1231 = vadd.f32 0.0, %v1230
        %v1232 = vpop.f32.mrb[0].mxu0
        %v1233 = vpop.f32.mrb[0].mxu0
        %v1234 = vadd.f32 0.0, %v1233
        %v1235 = vpop.f32.mrb[0].mxu0
        %1236 = vmatprep.mubr.bf16.mxu0 0
        %1237 = vmatmul.mubr.bf16.gmra.mrb[0].mxu0 %v1088
        %v1238 = vpop.f32.mrb[0].mxu0
        %v1239 = vadd.f32 0.0, %v1238
        %v1240 = vpop.f32.mrb[0].mxu0
        %v1241 = vpop.f32.mrb[0].mxu0
        %v1242 = vadd.f32 0.0, %v1241
        %v1243 = vpop.f32.mrb[0].mxu0
        %1244 = vmatprep.mubr.bf16.mxu0 0
        %1245 = vmatmul.mubr.bf16.gmra.mrb[0].mxu0 %v1089
        %v1246 = vpop.f32.mrb[0].mxu0
        %v1247 = vadd.f32 0.0, %v1246
        %v1248 = vpop.f32.mrb[0].mxu0
        %v1249 = vpop.f32.mrb[0].mxu0
        %v1250 = vadd.f32 0.0, %v1249
        %v1251 = vpop.f32.mrb[0].mxu0
        %1252 = vmatprep.mubr.bf16.mxu0 0
        %1253 = vmatmul.mubr.bf16.gmra.mrb[0].mxu0 %v1090
        %v1254 = vpop.f32.mrb[0].mxu0
        %v1255 = vadd.f32 0.0, %v1254
        %v1256 = vpop.f32.mrb[0].mxu0
        %v1257 = vpop.f32.mrb[0].mxu0
        %v1258 = vadd.f32 0.0, %v1257
        %v1259 = vpop.f32.mrb[0].mxu0
        %1260 = vmatprep.mubr.bf16.mxu0 0
        %1261 = vmatmul.mubr.bf16.gmra.mrb[0].mxu0 %v1091
        %v1262 = vpop.f32.mrb[0].mxu0
        %v1263 = vadd.f32 0.0, %v1262
        %v1264 = vpop.f32.mrb[0].mxu0
        %v1265 = vpop.f32.mrb[0].mxu0
        %v1266 = vadd.f32 0.0, %v1265
        %v1267 = vpop.f32.mrb[0].mxu0
        %1268 = vmatprep.mubr.bf16.mxu0 0
        %1269 = vmatmul.mubr.bf16.gmra.mrb[0].mxu0 %v1092
        %v1270 = vpop.f32.mrb[0].mxu0
        %v1271 = vadd.f32 0.0, %v1270
        %v1272 = vpop.f32.mrb[0].mxu0
        %v1273 = vpop.f32.mrb[0].mxu0
        %v1274 = vadd.f32 0.0, %v1273
        %v1275 = vpop.f32.mrb[0].mxu0
        %1276 = vmatprep.mubr.bf16.mxu0 0
        %1277 = vmatmul.mubr.bf16.gmra.mrb[0].mxu0 %v1093
        %v1278 = vpop.f32.mrb[0].mxu0
        %v1279 = vadd.f32 0.0, %v1278
        %v1280 = vpop.f32.mrb[0].mxu0
        %v1281 = vpop.f32.mrb[0].mxu0
        %v1282 = vadd.f32 0.0, %v1281
        %v1283 = vpop.f32.mrb[0].mxu0
        %1284 = vmatprep.mubr.bf16.mxu0 0
        %1285 = vmatmul.mubr.bf16.gmra.mrb[0].mxu0 %v1094
        %v1286 = vpop.f32.mrb[0].mxu0
        %v1287 = vadd.f32 0.0, %v1286
        %v1288 = vpop.f32.mrb[0].mxu0
        %v1289 = vpop.f32.mrb[0].mxu0
        %v1290 = vadd.f32 0.0, %v1289
        %v1291 = vpop.f32.mrb[0].mxu0
        %1292 = vmatprep.mubr.bf16.mxu0 0
        %1293 = vmatmul.mubr.bf16.gmra.mrb[0].mxu0 %v1095
        %v1294 = vpop.f32.mrb[0].mxu0
        %v1295 = vadd.f32 0.0, %v1294
        %v1296 = vpop.f32.mrb[0].mxu0
        %v1297 = vpop.f32.mrb[0].mxu0
        %v1298 = vadd.f32 0.0, %v1297
        %v1299 = vpop.f32.mrb[0].mxu0
        %1300 = vmatprep.mubr.bf16.mxu0 0
        %1301 = vmatmul.mubr.bf16.gmra.mrb[0].mxu0 %v1096
        %v1302 = vpop.f32.mrb[0].mxu0
        %v1303 = vadd.f32 0.0, %v1302
        %v1304 = vpop.f32.mrb[0].mxu0
        %v1305 = vpop.f32.mrb[0].mxu0
        %v1306 = vadd.f32 0.0, %v1305
        %v1307 = vpop.f32.mrb[0].mxu0
        %1308 = vmatprep.mubr.bf16.mxu0 0
        %1309 = vmatmul.mubr.bf16.gmra.mrb[0].mxu0 %v1097
        %v1310 = vpop.f32.mrb[0].mxu0
        %v1311 = vadd.f32 0.0, %v1310
        %v1312 = vpop.f32.mrb[0].mxu0
        %v1313 = vpop.f32.mrb[0].mxu0
        %v1314 = vadd.f32 0.0, %v1313
        %v1315 = vpop.f32.mrb[0].mxu0
        %1316 = vmatprep.mubr.bf16.mxu0 0
        %1317 = vmatmul.mubr.bf16.gmra.mrb[0].mxu0 %v1098
        %v1318 = vpop.f32.mrb[0].mxu0
        %v1319 = vadd.f32 0.0, %v1318
        %v1320 = vpop.f32.mrb[0].mxu0
        %v1321 = vpop.f32.mrb[0].mxu0
        %v1322 = vadd.f32 0.0, %v1321
        %v1323 = vpop.f32.mrb[0].mxu0
        %1324 = vdwg.mxu0
        %v1325 = vadd.f32 %v1018, %v1199
        %v1326 = vadd.f32 %v1019, %v1202
        %v1327 = vadd.f32 %v1020, %v1207
        %v1328 = vadd.f32 %v1021, %v1210
        %v1329 = vadd.f32 %v1022, %v1215
        %v1330 = vadd.f32 %v1023, %v1218
        %v1331 = vadd.f32 %v1024, %v1223
        %v1332 = vadd.f32 %v1025, %v1226
        %v1333 = vadd.f32 %v1026, %v1231
        %v1334 = vadd.f32 %v1027, %v1234
        %v1335 = vadd.f32 %v1028, %v1239
        %v1336 = vadd.f32 %v1029, %v1242
        %v1337 = vadd.f32 %v1030, %v1247
        %v1338 = vadd.f32 %v1031, %v1250
        %v1339 = vadd.f32 %v1032, %v1255
        %v1340 = vadd.f32 %v1033, %v1258
        %v1341 = vadd.f32 %v1034, %v1263
        %v1342 = vadd.f32 %v1035, %v1266
        %v1343 = vadd.f32 %v1036, %v1271
        %v1344 = vadd.f32 %v1037, %v1274
        %v1345 = vadd.f32 %v1038, %v1279
        %v1346 = vadd.f32 %v1039, %v1282
        %v1347 = vadd.f32 %v1040, %v1287
        %v1348 = vadd.f32 %v1041, %v1290
        %v1349 = vadd.f32 %v1042, %v1295
        %v1350 = vadd.f32 %v1043, %v1298
        %v1351 = vadd.f32 %v1044, %v1303
        %v1352 = vadd.f32 %v1045, %v1306
        %v1353 = vadd.f32 %v1046, %v1311
        %v1354 = vadd.f32 %v1047, %v1314
        %v1355 = vadd.f32 %v1048, %v1319
        %v1356 = vadd.f32 %v1049, %v1322
        %v1357 = vld [vmem:[%s1050 + $0x1] sm:$0xff]
        %v1358 = vld [vmem:[%s1050 + $0x9] sm:$0xff]
        %v1359 = vld [vmem:[%s1050 + $0x19] sm:$0xff]
        %v1360 = vld [vmem:[%s1050 + $0x21] sm:$0xff]
        %v1361 = vld [vmem:[%s1050 + $0x31] sm:$0xff]
        %v1362 = vld [vmem:[%s1050 + $0x39] sm:$0xff]
        %v1363 = vld [vmem:[%s1050 + $0x49] sm:$0xff]
        %v1364 = vld [vmem:[%s1050 + $0x51] sm:$0xff]
        %v1365 = vld [vmem:[%s1050 + $0x61] sm:$0xff]
        %v1366 = vld [vmem:[%s1050 + $0x69] sm:$0xff]
        %v1367 = vld [vmem:[%s1050 + $0x79] sm:$0xff]
        %v1368 = vld [vmem:[%s1050 + $0x81] sm:$0xff]
        %v1369 = vld [vmem:[%s1050 + $0x91] sm:$0xff]
        %v1370 = vld [vmem:[%s1050 + $0x99] sm:$0xff]
        %v1371 = vld [vmem:[%s1050 + $0xa9] sm:$0xff]
        %v1372 = vld [vmem:[%s1050 + $0xb1] sm:$0xff]
        %v1373 = vld [vmem:[%s1050 + $0xc1] sm:$0xff]
        %v1374 = vld [vmem:[%s1050 + $0xc9] sm:$0xff]
        %v1375 = vld [vmem:[%s1050 + $0xd9] sm:$0xff]
        %v1376 = vld [vmem:[%s1050 + $0xe1] sm:$0xff]
        %v1377 = vld [vmem:[%s1050 + $0xf1] sm:$0xff]
        %v1378 = vld [vmem:[%s1050 + $0xf9] sm:$0xff]
        %v1379 = vld [vmem:[%s1050 + $0x109] sm:$0xff]
        %v1380 = vld [vmem:[%s1050 + $0x111] sm:$0xff]
        %v1381 = vld [vmem:[%s1050 + $0x121] sm:$0xff]
        %v1382 = vld [vmem:[%s1050 + $0x129] sm:$0xff]
        %v1383 = vld [vmem:[%s1050 + $0x139] sm:$0xff]
        %v1384 = vld [vmem:[%s1050 + $0x141] sm:$0xff]
        %v1385 = vld [vmem:[%s1050 + $0x151] sm:$0xff]
        %v1386 = vld [vmem:[%s1050 + $0x159] sm:$0xff]
        %v1387 = vld [vmem:[%s1050 + $0x169] sm:$0xff]
        %v1388 = vld [vmem:[%s1050 + $0x171] sm:$0xff]
        %v1389 = vpack.c.bf16 %v1358, %v1357
        %v1390 = vpack.c.bf16 %v1360, %v1359
        %v1391 = vpack.c.bf16 %v1362, %v1361
        %v1392 = vpack.c.bf16 %v1364, %v1363
        %v1393 = vpack.c.bf16 %v1366, %v1365
        %v1394 = vpack.c.bf16 %v1368, %v1367
        %v1395 = vpack.c.bf16 %v1370, %v1369
        %v1396 = vpack.c.bf16 %v1372, %v1371
        %v1397 = vpack.c.bf16 %v1374, %v1373
        %v1398 = vpack.c.bf16 %v1376, %v1375
        %v1399 = vpack.c.bf16 %v1378, %v1377
        %v1400 = vpack.c.bf16 %v1380, %v1379
        %v1401 = vpack.c.bf16 %v1382, %v1381
        %v1402 = vpack.c.bf16 %v1384, %v1383
        %v1403 = vpack.c.bf16 %v1386, %v1385
        %v1404 = vpack.c.bf16 %v1388, %v1387
        %s1405 = scalar_lea.vmem %s1, 256
        %v1406 = vld [vmem:[%s1405] sm:$0xf]
        %v1407 = vld [vmem:[%s1405 + $0x4] sm:$0xf]
        %v1408 = vld [vmem:[%s1405 + $0x8] sm:$0xf]
        %v1409 = vld [vmem:[%s1405 + $0xc] sm:$0xf]
        %v1410 = vld [vmem:[%s1405 + $0x10] sm:$0xf]
        %v1411 = vld [vmem:[%s1405 + $0x14] sm:$0xf]
        %v1412 = vld [vmem:[%s1405 + $0x18] sm:$0xf]
        %v1413 = vld [vmem:[%s1405 + $0x1c] sm:$0xf]
        %v1414 = vld [vmem:[%s1405 + $0x20] sm:$0xf]
        %v1415 = vld [vmem:[%s1405 + $0x24] sm:$0xf]
        %v1416 = vld [vmem:[%s1405 + $0x28] sm:$0xf]
        %v1417 = vld [vmem:[%s1405 + $0x2c] sm:$0xf]
        %v1418 = vld [vmem:[%s1405 + $0x30] sm:$0xf]
        %v1419 = vld [vmem:[%s1405 + $0x34] sm:$0xf]
        %v1420 = vld [vmem:[%s1405 + $0x38] sm:$0xf]
        %v1421 = vld [vmem:[%s1405 + $0x3c] sm:$0xf]
        %v1438 = vunpack.c.l.b16 %v1406
        %v1439 = vunpack.c.l.b16 %v1407
        %v1440 = vunpack.c.l.b16 %v1408
        %v1441 = vunpack.c.l.b16 %v1409
        %v1442 = vunpack.c.l.b16 %v1410
        %v1443 = vunpack.c.l.b16 %v1411
        %v1444 = vunpack.c.l.b16 %v1412
        %v1445 = vunpack.c.l.b16 %v1413
        %v1446 = vunpack.c.l.b16 %v1414
        %v1447 = vunpack.c.l.b16 %v1415
        %v1448 = vunpack.c.l.b16 %v1416
        %v1449 = vunpack.c.l.b16 %v1417
        %v1450 = vunpack.c.l.b16 %v1418
        %v1451 = vunpack.c.l.b16 %v1419
        %v1452 = vunpack.c.l.b16 %v1420
        %v1453 = vunpack.c.l.b16 %v1421
        %v1454 = vpack.c.b16 %v1439, %v1438
        %v1455 = vpack.c.b16 %v1441, %v1440
        %v1456 = vpack.c.b16 %v1443, %v1442
        %v1457 = vpack.c.b16 %v1445, %v1444
        %v1458 = vpack.c.b16 %v1447, %v1446
        %v1459 = vpack.c.b16 %v1449, %v1448
        %v1460 = vpack.c.b16 %v1451, %v1450
        %v1461 = vpack.c.b16 %v1453, %v1452
        %1470 = vmatprep.subr.bf16.mxu0 0
        %1471 = vmatpush1.bf16.msra.mxu0 %v1454
        %1472 = vmatprep.subr.bf16.mxu0 0
        %1473 = vmatpush1.bf16.msra.mxu0 %v1455
        %1474 = vmatprep.subr.bf16.mxu0 0
        %1475 = vmatpush1.bf16.msra.mxu0 %v1456
        %1476 = vmatprep.subr.bf16.mxu0 0
        %1477 = vmatpush1.bf16.msra.mxu0 %v1457
        %1478 = vmatprep.subr.bf16.mxu0 0
        %1479 = vmatpush1.bf16.msra.mxu0 %v1458
        %1480 = vmatprep.subr.bf16.mxu0 0
        %1481 = vmatpush1.bf16.msra.mxu0 %v1459
        %1482 = vmatprep.subr.bf16.mxu0 0
        %1483 = vmatpush1.bf16.msra.mxu0 %v1460
        %1484 = vmatprep.subr.bf16.mxu0 0
        %1485 = vmatpush1.bf16.msra.mxu0 %v1461
        %1486 = vmatprep.subr.bf16.mxu0 0
        %1487 = vmatpush1.bf16.msra.mxu0 0
        %1488 = vmatprep.subr.bf16.mxu0 0
        %1489 = vmatpush1.bf16.msra.mxu0 0
        %1490 = vmatprep.subr.bf16.mxu0 0
        %1491 = vmatpush1.bf16.msra.mxu0 0
        %1492 = vmatprep.subr.bf16.mxu0 0
        %1493 = vmatpush1.bf16.msra.mxu0 0
        %1494 = vmatprep.subr.bf16.mxu0 0
        %1495 = vmatpush1.bf16.msra.mxu0 0
        %1496 = vmatprep.subr.bf16.mxu0 0
        %1497 = vmatpush1.bf16.msra.mxu0 0
        %1498 = vmatprep.subr.bf16.mxu0 0
        %1499 = vmatpush1.bf16.msra.mxu0 0
        %1500 = vmatprep.subr.bf16.mxu0 0
        %1501 = vmatpush1.bf16.msra.mxu0 0
        %1502 = vmatprep.mubr.bf16.mxu0 0
        %1503 = vmatmul.mubr.bf16.gmra.mrb[0].mxu0 %v1389
        %v1504 = vpop.f32.mrb[0].mxu0
        %v1505 = vadd.f32 0.0, %v1504
        %v1506 = vpop.f32.mrb[0].mxu0
        %v1507 = vpop.f32.mrb[0].mxu0
        %v1508 = vadd.f32 0.0, %v1507
        %v1509 = vpop.f32.mrb[0].mxu0
        %1510 = vmatprep.mubr.bf16.mxu0 0
        %1511 = vmatmul.mubr.bf16.gmra.mrb[0].mxu0 %v1390
        %v1512 = vpop.f32.mrb[0].mxu0
        %v1513 = vadd.f32 0.0, %v1512
        %v1514 = vpop.f32.mrb[0].mxu0
        %v1515 = vpop.f32.mrb[0].mxu0
        %v1516 = vadd.f32 0.0, %v1515
        %v1517 = vpop.f32.mrb[0].mxu0
        %1518 = vmatprep.mubr.bf16.mxu0 0
        %1519 = vmatmul.mubr.bf16.gmra.mrb[0].mxu0 %v1391
        %v1520 = vpop.f32.mrb[0].mxu0
        %v1521 = vadd.f32 0.0, %v1520
        %v1522 = vpop.f32.mrb[0].mxu0
        %v1523 = vpop.f32.mrb[0].mxu0
        %v1524 = vadd.f32 0.0, %v1523
        %v1525 = vpop.f32.mrb[0].mxu0
        %1526 = vmatprep.mubr.bf16.mxu0 0
        %1527 = vmatmul.mubr.bf16.gmra.mrb[0].mxu0 %v1392
        %v1528 = vpop.f32.mrb[0].mxu0
        %v1529 = vadd.f32 0.0, %v1528
        %v1530 = vpop.f32.mrb[0].mxu0
        %v1531 = vpop.f32.mrb[0].mxu0
        %v1532 = vadd.f32 0.0, %v1531
        %v1533 = vpop.f32.mrb[0].mxu0
        %1534 = vmatprep.mubr.bf16.mxu0 0
        %1535 = vmatmul.mubr.bf16.gmra.mrb[0].mxu0 %v1393
        %v1536 = vpop.f32.mrb[0].mxu0
        %v1537 = vadd.f32 0.0, %v1536
        %v1538 = vpop.f32.mrb[0].mxu0
        %v1539 = vpop.f32.mrb[0].mxu0
        %v1540 = vadd.f32 0.0, %v1539
        %v1541 = vpop.f32.mrb[0].mxu0
        %1542 = vmatprep.mubr.bf16.mxu0 0
        %1543 = vmatmul.mubr.bf16.gmra.mrb[0].mxu0 %v1394
        %v1544 = vpop.f32.mrb[0].mxu0
        %v1545 = vadd.f32 0.0, %v1544
        %v1546 = vpop.f32.mrb[0].mxu0
        %v1547 = vpop.f32.mrb[0].mxu0
        %v1548 = vadd.f32 0.0, %v1547
        %v1549 = vpop.f32.mrb[0].mxu0
        %1550 = vmatprep.mubr.bf16.mxu0 0
        %1551 = vmatmul.mubr.bf16.gmra.mrb[0].mxu0 %v1395
        %v1552 = vpop.f32.mrb[0].mxu0
        %v1553 = vadd.f32 0.0, %v1552
        %v1554 = vpop.f32.mrb[0].mxu0
        %v1555 = vpop.f32.mrb[0].mxu0
        %v1556 = vadd.f32 0.0, %v1555
        %v1557 = vpop.f32.mrb[0].mxu0
        %1558 = vmatprep.mubr.bf16.mxu0 0
        %1559 = vmatmul.mubr.bf16.gmra.mrb[0].mxu0 %v1396
        %v1560 = vpop.f32.mrb[0].mxu0
        %v1561 = vadd.f32 0.0, %v1560
        %v1562 = vpop.f32.mrb[0].mxu0
        %v1563 = vpop.f32.mrb[0].mxu0
        %v1564 = vadd.f32 0.0, %v1563
        %v1565 = vpop.f32.mrb[0].mxu0
        %1566 = vmatprep.mubr.bf16.mxu0 0
        %1567 = vmatmul.mubr.bf16.gmra.mrb[0].mxu0 %v1397
        %v1568 = vpop.f32.mrb[0].mxu0
        %v1569 = vadd.f32 0.0, %v1568
        %v1570 = vpop.f32.mrb[0].mxu0
        %v1571 = vpop.f32.mrb[0].mxu0
        %v1572 = vadd.f32 0.0, %v1571
        %v1573 = vpop.f32.mrb[0].mxu0
        %1574 = vmatprep.mubr.bf16.mxu0 0
        %1575 = vmatmul.mubr.bf16.gmra.mrb[0].mxu0 %v1398
        %v1576 = vpop.f32.mrb[0].mxu0
        %v1577 = vadd.f32 0.0, %v1576
        %v1578 = vpop.f32.mrb[0].mxu0
        %v1579 = vpop.f32.mrb[0].mxu0
        %v1580 = vadd.f32 0.0, %v1579
        %v1581 = vpop.f32.mrb[0].mxu0
        %1582 = vmatprep.mubr.bf16.mxu0 0
        %1583 = vmatmul.mubr.bf16.gmra.mrb[0].mxu0 %v1399
        %v1584 = vpop.f32.mrb[0].mxu0
        %v1585 = vadd.f32 0.0, %v1584
        %v1586 = vpop.f32.mrb[0].mxu0
        %v1587 = vpop.f32.mrb[0].mxu0
        %v1588 = vadd.f32 0.0, %v1587
        %v1589 = vpop.f32.mrb[0].mxu0
        %1590 = vmatprep.mubr.bf16.mxu0 0
        %1591 = vmatmul.mubr.bf16.gmra.mrb[0].mxu0 %v1400
        %v1592 = vpop.f32.mrb[0].mxu0
        %v1593 = vadd.f32 0.0, %v1592
        %v1594 = vpop.f32.mrb[0].mxu0
        %v1595 = vpop.f32.mrb[0].mxu0
        %v1596 = vadd.f32 0.0, %v1595
        %v1597 = vpop.f32.mrb[0].mxu0
        %1598 = vmatprep.mubr.bf16.mxu0 0
        %1599 = vmatmul.mubr.bf16.gmra.mrb[0].mxu0 %v1401
        %v1600 = vpop.f32.mrb[0].mxu0
        %v1601 = vadd.f32 0.0, %v1600
        %v1602 = vpop.f32.mrb[0].mxu0
        %v1603 = vpop.f32.mrb[0].mxu0
        %v1604 = vadd.f32 0.0, %v1603
        %v1605 = vpop.f32.mrb[0].mxu0
        %1606 = vmatprep.mubr.bf16.mxu0 0
        %1607 = vmatmul.mubr.bf16.gmra.mrb[0].mxu0 %v1402
        %v1608 = vpop.f32.mrb[0].mxu0
        %v1609 = vadd.f32 0.0, %v1608
        %v1610 = vpop.f32.mrb[0].mxu0
        %v1611 = vpop.f32.mrb[0].mxu0
        %v1612 = vadd.f32 0.0, %v1611
        %v1613 = vpop.f32.mrb[0].mxu0
        %1614 = vmatprep.mubr.bf16.mxu0 0
        %1615 = vmatmul.mubr.bf16.gmra.mrb[0].mxu0 %v1403
        %v1616 = vpop.f32.mrb[0].mxu0
        %v1617 = vadd.f32 0.0, %v1616
        %v1618 = vpop.f32.mrb[0].mxu0
        %v1619 = vpop.f32.mrb[0].mxu0
        %v1620 = vadd.f32 0.0, %v1619
        %v1621 = vpop.f32.mrb[0].mxu0
        %1622 = vmatprep.mubr.bf16.mxu0 0
        %1623 = vmatmul.mubr.bf16.gmra.mrb[0].mxu0 %v1404
        %v1624 = vpop.f32.mrb[0].mxu0
        %v1625 = vadd.f32 0.0, %v1624
        %v1626 = vpop.f32.mrb[0].mxu0
        %v1627 = vpop.f32.mrb[0].mxu0
        %v1628 = vadd.f32 0.0, %v1627
        %v1629 = vpop.f32.mrb[0].mxu0
        %1630 = vdwg.mxu0
        %v1631 = vadd.f32 %v1325, %v1505
        %v1632 = vadd.f32 %v1326, %v1508
        %v1633 = vadd.f32 %v1327, %v1513
        %v1634 = vadd.f32 %v1328, %v1516
        %v1635 = vadd.f32 %v1329, %v1521
        %v1636 = vadd.f32 %v1330, %v1524
        %v1637 = vadd.f32 %v1331, %v1529
        %v1638 = vadd.f32 %v1332, %v1532
        %v1639 = vadd.f32 %v1333, %v1537
        %v1640 = vadd.f32 %v1334, %v1540
        %v1641 = vadd.f32 %v1335, %v1545
        %v1642 = vadd.f32 %v1336, %v1548
        %v1643 = vadd.f32 %v1337, %v1553
        %v1644 = vadd.f32 %v1338, %v1556
        %v1645 = vadd.f32 %v1339, %v1561
        %v1646 = vadd.f32 %v1340, %v1564
        %v1647 = vadd.f32 %v1341, %v1569
        %v1648 = vadd.f32 %v1342, %v1572
        %v1649 = vadd.f32 %v1343, %v1577
        %v1650 = vadd.f32 %v1344, %v1580
        %v1651 = vadd.f32 %v1345, %v1585
        %v1652 = vadd.f32 %v1346, %v1588
        %v1653 = vadd.f32 %v1347, %v1593
        %v1654 = vadd.f32 %v1348, %v1596
        %v1655 = vadd.f32 %v1349, %v1601
        %v1656 = vadd.f32 %v1350, %v1604
        %v1657 = vadd.f32 %v1351, %v1609
        %v1658 = vadd.f32 %v1352, %v1612
        %v1659 = vadd.f32 %v1353, %v1617
        %v1660 = vadd.f32 %v1354, %v1620
        %v1661 = vadd.f32 %v1355, %v1625
        %v1662 = vadd.f32 %v1356, %v1628
        %v1663 = vld [vmem:[%s1050 + $0x2] sm:$0xff]
        %v1664 = vld [vmem:[%s1050 + $0xa] sm:$0xff]
        %v1665 = vld [vmem:[%s1050 + $0x1a] sm:$0xff]
        %v1666 = vld [vmem:[%s1050 + $0x22] sm:$0xff]
        %v1667 = vld [vmem:[%s1050 + $0x32] sm:$0xff]
        %v1668 = vld [vmem:[%s1050 + $0x3a] sm:$0xff]
        %v1669 = vld [vmem:[%s1050 + $0x4a] sm:$0xff]
        %v1670 = vld [vmem:[%s1050 + $0x52] sm:$0xff]
        %v1671 = vld [vmem:[%s1050 + $0x62] sm:$0xff]
        %v1672 = vld [vmem:[%s1050 + $0x6a] sm:$0xff]
        %v1673 = vld [vmem:[%s1050 + $0x7a] sm:$0xff]
        %v1674 = vld [vmem:[%s1050 + $0x82] sm:$0xff]
        %v1675 = vld [vmem:[%s1050 + $0x92] sm:$0xff]
        %v1676 = vld [vmem:[%s1050 + $0x9a] sm:$0xff]
        %v1677 = vld [vmem:[%s1050 + $0xaa] sm:$0xff]
        %v1678 = vld [vmem:[%s1050 + $0xb2] sm:$0xff]
        %v1679 = vld [vmem:[%s1050 + $0xc2] sm:$0xff]
        %v1680 = vld [vmem:[%s1050 + $0xca] sm:$0xff]
        %v1681 = vld [vmem:[%s1050 + $0xda] sm:$0xff]
        %v1682 = vld [vmem:[%s1050 + $0xe2] sm:$0xff]
        %v1683 = vld [vmem:[%s1050 + $0xf2] sm:$0xff]
        %v1684 = vld [vmem:[%s1050 + $0xfa] sm:$0xff]
        %v1685 = vld [vmem:[%s1050 + $0x10a] sm:$0xff]
        %v1686 = vld [vmem:[%s1050 + $0x112] sm:$0xff]
        %v1687 = vld [vmem:[%s1050 + $0x122] sm:$0xff]
        %v1688 = vld [vmem:[%s1050 + $0x12a] sm:$0xff]
        %v1689 = vld [vmem:[%s1050 + $0x13a] sm:$0xff]
        %v1690 = vld [vmem:[%s1050 + $0x142] sm:$0xff]
        %v1691 = vld [vmem:[%s1050 + $0x152] sm:$0xff]
        %v1692 = vld [vmem:[%s1050 + $0x15a] sm:$0xff]
        %v1693 = vld [vmem:[%s1050 + $0x16a] sm:$0xff]
        %v1694 = vld [vmem:[%s1050 + $0x172] sm:$0xff]
        %v1695 = vpack.c.bf16 %v1664, %v1663
        %v1696 = vpack.c.bf16 %v1666, %v1665
        %v1697 = vpack.c.bf16 %v1668, %v1667
        %v1698 = vpack.c.bf16 %v1670, %v1669
        %v1699 = vpack.c.bf16 %v1672, %v1671
        %v1700 = vpack.c.bf16 %v1674, %v1673
        %v1701 = vpack.c.bf16 %v1676, %v1675
        %v1702 = vpack.c.bf16 %v1678, %v1677
        %v1703 = vpack.c.bf16 %v1680, %v1679
        %v1704 = vpack.c.bf16 %v1682, %v1681
        %v1705 = vpack.c.bf16 %v1684, %v1683
        %v1706 = vpack.c.bf16 %v1686, %v1685
        %v1707 = vpack.c.bf16 %v1688, %v1687
        %v1708 = vpack.c.bf16 %v1690, %v1689
        %v1709 = vpack.c.bf16 %v1692, %v1691
        %v1710 = vpack.c.bf16 %v1694, %v1693
        %s1711 = scalar_lea.vmem %s1, 320
        %v1712 = vld [vmem:[%s1711] sm:$0xf]
        %v1713 = vld [vmem:[%s1711 + $0x4] sm:$0xf]
        %v1714 = vld [vmem:[%s1711 + $0x8] sm:$0xf]
        %v1715 = vld [vmem:[%s1711 + $0xc] sm:$0xf]
        %v1716 = vld [vmem:[%s1711 + $0x10] sm:$0xf]
        %v1717 = vld [vmem:[%s1711 + $0x14] sm:$0xf]
        %v1718 = vld [vmem:[%s1711 + $0x18] sm:$0xf]
        %v1719 = vld [vmem:[%s1711 + $0x1c] sm:$0xf]
        %v1720 = vld [vmem:[%s1711 + $0x20] sm:$0xf]
        %v1721 = vld [vmem:[%s1711 + $0x24] sm:$0xf]
        %v1722 = vld [vmem:[%s1711 + $0x28] sm:$0xf]
        %v1723 = vld [vmem:[%s1711 + $0x2c] sm:$0xf]
        %v1724 = vld [vmem:[%s1711 + $0x30] sm:$0xf]
        %v1725 = vld [vmem:[%s1711 + $0x34] sm:$0xf]
        %v1726 = vld [vmem:[%s1711 + $0x38] sm:$0xf]
        %v1727 = vld [vmem:[%s1711 + $0x3c] sm:$0xf]
        %v1744 = vunpack.c.l.b16 %v1712
        %v1745 = vunpack.c.l.b16 %v1713
        %v1746 = vunpack.c.l.b16 %v1714
        %v1747 = vunpack.c.l.b16 %v1715
        %v1748 = vunpack.c.l.b16 %v1716
        %v1749 = vunpack.c.l.b16 %v1717
        %v1750 = vunpack.c.l.b16 %v1718
        %v1751 = vunpack.c.l.b16 %v1719
        %v1752 = vunpack.c.l.b16 %v1720
        %v1753 = vunpack.c.l.b16 %v1721
        %v1754 = vunpack.c.l.b16 %v1722
        %v1755 = vunpack.c.l.b16 %v1723
        %v1756 = vunpack.c.l.b16 %v1724
        %v1757 = vunpack.c.l.b16 %v1725
        %v1758 = vunpack.c.l.b16 %v1726
        %v1759 = vunpack.c.l.b16 %v1727
        %v1760 = vpack.c.b16 %v1745, %v1744
        %v1761 = vpack.c.b16 %v1747, %v1746
        %v1762 = vpack.c.b16 %v1749, %v1748
        %v1763 = vpack.c.b16 %v1751, %v1750
        %v1764 = vpack.c.b16 %v1753, %v1752
        %v1765 = vpack.c.b16 %v1755, %v1754
        %v1766 = vpack.c.b16 %v1757, %v1756
        %v1767 = vpack.c.b16 %v1759, %v1758
        %1776 = vmatprep.subr.bf16.mxu0 0
        %1777 = vmatpush1.bf16.msra.mxu0 %v1760
        %1778 = vmatprep.subr.bf16.mxu0 0
        %1779 = vmatpush1.bf16.msra.mxu0 %v1761
        %1780 = vmatprep.subr.bf16.mxu0 0
        %1781 = vmatpush1.bf16.msra.mxu0 %v1762
        %1782 = vmatprep.subr.bf16.mxu0 0
        %1783 = vmatpush1.bf16.msra.mxu0 %v1763
        %1784 = vmatprep.subr.bf16.mxu0 0
        %1785 = vmatpush1.bf16.msra.mxu0 %v1764
        %1786 = vmatprep.subr.bf16.mxu0 0
        %1787 = vmatpush1.bf16.msra.mxu0 %v1765
        %1788 = vmatprep.subr.bf16.mxu0 0
        %1789 = vmatpush1.bf16.msra.mxu0 %v1766
        %1790 = vmatprep.subr.bf16.mxu0 0
        %1791 = vmatpush1.bf16.msra.mxu0 %v1767
        %1792 = vmatprep.subr.bf16.mxu0 0
        %1793 = vmatpush1.bf16.msra.mxu0 0
        %1794 = vmatprep.subr.bf16.mxu0 0
        %1795 = vmatpush1.bf16.msra.mxu0 0
        %1796 = vmatprep.subr.bf16.mxu0 0
        %1797 = vmatpush1.bf16.msra.mxu0 0
        %1798 = vmatprep.subr.bf16.mxu0 0
        %1799 = vmatpush1.bf16.msra.mxu0 0
        %1800 = vmatprep.subr.bf16.mxu0 0
        %1801 = vmatpush1.bf16.msra.mxu0 0
        %1802 = vmatprep.subr.bf16.mxu0 0
        %1803 = vmatpush1.bf16.msra.mxu0 0
        %1804 = vmatprep.subr.bf16.mxu0 0
        %1805 = vmatpush1.bf16.msra.mxu0 0
        %1806 = vmatprep.subr.bf16.mxu0 0
        %1807 = vmatpush1.bf16.msra.mxu0 0
        %1808 = vmatprep.mubr.bf16.mxu0 0
        %1809 = vmatmul.mubr.bf16.gmra.mrb[0].mxu0 %v1695
        %v1810 = vpop.f32.mrb[0].mxu0
        %v1811 = vadd.f32 0.0, %v1810
        %v1812 = vpop.f32.mrb[0].mxu0
        %v1813 = vpop.f32.mrb[0].mxu0
        %v1814 = vadd.f32 0.0, %v1813
        %v1815 = vpop.f32.mrb[0].mxu0
        %1816 = vmatprep.mubr.bf16.mxu0 0
        %1817 = vmatmul.mubr.bf16.gmra.mrb[0].mxu0 %v1696
        %v1818 = vpop.f32.mrb[0].mxu0
        %v1819 = vadd.f32 0.0, %v1818
        %v1820 = vpop.f32.mrb[0].mxu0
        %v1821 = vpop.f32.mrb[0].mxu0
        %v1822 = vadd.f32 0.0, %v1821
        %v1823 = vpop.f32.mrb[0].mxu0
        %1824 = vmatprep.mubr.bf16.mxu0 0
        %1825 = vmatmul.mubr.bf16.gmra.mrb[0].mxu0 %v1697
        %v1826 = vpop.f32.mrb[0].mxu0
        %v1827 = vadd.f32 0.0, %v1826
        %v1828 = vpop.f32.mrb[0].mxu0
        %v1829 = vpop.f32.mrb[0].mxu0
        %v1830 = vadd.f32 0.0, %v1829
        %v1831 = vpop.f32.mrb[0].mxu0
        %1832 = vmatprep.mubr.bf16.mxu0 0
        %1833 = vmatmul.mubr.bf16.gmra.mrb[0].mxu0 %v1698
        %v1834 = vpop.f32.mrb[0].mxu0
        %v1835 = vadd.f32 0.0, %v1834
        %v1836 = vpop.f32.mrb[0].mxu0
        %v1837 = vpop.f32.mrb[0].mxu0
        %v1838 = vadd.f32 0.0, %v1837
        %v1839 = vpop.f32.mrb[0].mxu0
        %1840 = vmatprep.mubr.bf16.mxu0 0
        %1841 = vmatmul.mubr.bf16.gmra.mrb[0].mxu0 %v1699
        %v1842 = vpop.f32.mrb[0].mxu0
        %v1843 = vadd.f32 0.0, %v1842
        %v1844 = vpop.f32.mrb[0].mxu0
        %v1845 = vpop.f32.mrb[0].mxu0
        %v1846 = vadd.f32 0.0, %v1845
        %v1847 = vpop.f32.mrb[0].mxu0
        %1848 = vmatprep.mubr.bf16.mxu0 0
        %1849 = vmatmul.mubr.bf16.gmra.mrb[0].mxu0 %v1700
        %v1850 = vpop.f32.mrb[0].mxu0
        %v1851 = vadd.f32 0.0, %v1850
        %v1852 = vpop.f32.mrb[0].mxu0
        %v1853 = vpop.f32.mrb[0].mxu0
        %v1854 = vadd.f32 0.0, %v1853
        %v1855 = vpop.f32.mrb[0].mxu0
        %1856 = vmatprep.mubr.bf16.mxu0 0
        %1857 = vmatmul.mubr.bf16.gmra.mrb[0].mxu0 %v1701
        %v1858 = vpop.f32.mrb[0].mxu0
        %v1859 = vadd.f32 0.0, %v1858
        %v1860 = vpop.f32.mrb[0].mxu0
        %v1861 = vpop.f32.mrb[0].mxu0
        %v1862 = vadd.f32 0.0, %v1861
        %v1863 = vpop.f32.mrb[0].mxu0
        %1864 = vmatprep.mubr.bf16.mxu0 0
        %1865 = vmatmul.mubr.bf16.gmra.mrb[0].mxu0 %v1702
        %v1866 = vpop.f32.mrb[0].mxu0
        %v1867 = vadd.f32 0.0, %v1866
        %v1868 = vpop.f32.mrb[0].mxu0
        %v1869 = vpop.f32.mrb[0].mxu0
        %v1870 = vadd.f32 0.0, %v1869
        %v1871 = vpop.f32.mrb[0].mxu0
        %1872 = vmatprep.mubr.bf16.mxu0 0
        %1873 = vmatmul.mubr.bf16.gmra.mrb[0].mxu0 %v1703
        %v1874 = vpop.f32.mrb[0].mxu0
        %v1875 = vadd.f32 0.0, %v1874
        %v1876 = vpop.f32.mrb[0].mxu0
        %v1877 = vpop.f32.mrb[0].mxu0
        %v1878 = vadd.f32 0.0, %v1877
        %v1879 = vpop.f32.mrb[0].mxu0
        %1880 = vmatprep.mubr.bf16.mxu0 0
        %1881 = vmatmul.mubr.bf16.gmra.mrb[0].mxu0 %v1704
        %v1882 = vpop.f32.mrb[0].mxu0
        %v1883 = vadd.f32 0.0, %v1882
        %v1884 = vpop.f32.mrb[0].mxu0
        %v1885 = vpop.f32.mrb[0].mxu0
        %v1886 = vadd.f32 0.0, %v1885
        %v1887 = vpop.f32.mrb[0].mxu0
        %1888 = vmatprep.mubr.bf16.mxu0 0
        %1889 = vmatmul.mubr.bf16.gmra.mrb[0].mxu0 %v1705
        %v1890 = vpop.f32.mrb[0].mxu0
        %v1891 = vadd.f32 0.0, %v1890
        %v1892 = vpop.f32.mrb[0].mxu0
        %v1893 = vpop.f32.mrb[0].mxu0
        %v1894 = vadd.f32 0.0, %v1893
        %v1895 = vpop.f32.mrb[0].mxu0
        %1896 = vmatprep.mubr.bf16.mxu0 0
        %1897 = vmatmul.mubr.bf16.gmra.mrb[0].mxu0 %v1706
        %v1898 = vpop.f32.mrb[0].mxu0
        %v1899 = vadd.f32 0.0, %v1898
        %v1900 = vpop.f32.mrb[0].mxu0
        %v1901 = vpop.f32.mrb[0].mxu0
        %v1902 = vadd.f32 0.0, %v1901
        %v1903 = vpop.f32.mrb[0].mxu0
        %1904 = vmatprep.mubr.bf16.mxu0 0
        %1905 = vmatmul.mubr.bf16.gmra.mrb[0].mxu0 %v1707
        %v1906 = vpop.f32.mrb[0].mxu0
        %v1907 = vadd.f32 0.0, %v1906
        %v1908 = vpop.f32.mrb[0].mxu0
        %v1909 = vpop.f32.mrb[0].mxu0
        %v1910 = vadd.f32 0.0, %v1909
        %v1911 = vpop.f32.mrb[0].mxu0
        %1912 = vmatprep.mubr.bf16.mxu0 0
        %1913 = vmatmul.mubr.bf16.gmra.mrb[0].mxu0 %v1708
        %v1914 = vpop.f32.mrb[0].mxu0
        %v1915 = vadd.f32 0.0, %v1914
        %v1916 = vpop.f32.mrb[0].mxu0
        %v1917 = vpop.f32.mrb[0].mxu0
        %v1918 = vadd.f32 0.0, %v1917
        %v1919 = vpop.f32.mrb[0].mxu0
        %1920 = vmatprep.mubr.bf16.mxu0 0
        %1921 = vmatmul.mubr.bf16.gmra.mrb[0].mxu0 %v1709
        %v1922 = vpop.f32.mrb[0].mxu0
        %v1923 = vadd.f32 0.0, %v1922
        %v1924 = vpop.f32.mrb[0].mxu0
        %v1925 = vpop.f32.mrb[0].mxu0
        %v1926 = vadd.f32 0.0, %v1925
        %v1927 = vpop.f32.mrb[0].mxu0
        %1928 = vmatprep.mubr.bf16.mxu0 0
        %1929 = vmatmul.mubr.bf16.gmra.mrb[0].mxu0 %v1710
        %v1930 = vpop.f32.mrb[0].mxu0
        %v1931 = vadd.f32 0.0, %v1930
        %v1932 = vpop.f32.mrb[0].mxu0
        %v1933 = vpop.f32.mrb[0].mxu0
        %v1934 = vadd.f32 0.0, %v1933
        %v1935 = vpop.f32.mrb[0].mxu0
        %1936 = vdwg.mxu0
        %v1937 = vadd.f32 %v1631, %v1811
        %v1938 = vadd.f32 %v1632, %v1814
        %v1939 = vadd.f32 %v1633, %v1819
        %v1940 = vadd.f32 %v1634, %v1822
        %v1941 = vadd.f32 %v1635, %v1827
        %v1942 = vadd.f32 %v1636, %v1830
        %v1943 = vadd.f32 %v1637, %v1835
        %v1944 = vadd.f32 %v1638, %v1838
        %v1945 = vadd.f32 %v1639, %v1843
        %v1946 = vadd.f32 %v1640, %v1846
        %v1947 = vadd.f32 %v1641, %v1851
        %v1948 = vadd.f32 %v1642, %v1854
        %v1949 = vadd.f32 %v1643, %v1859
        %v1950 = vadd.f32 %v1644, %v1862
        %v1951 = vadd.f32 %v1645, %v1867
        %v1952 = vadd.f32 %v1646, %v1870
        %v1953 = vadd.f32 %v1647, %v1875
        %v1954 = vadd.f32 %v1648, %v1878
        %v1955 = vadd.f32 %v1649, %v1883
        %v1956 = vadd.f32 %v1650, %v1886
        %v1957 = vadd.f32 %v1651, %v1891
        %v1958 = vadd.f32 %v1652, %v1894
        %v1959 = vadd.f32 %v1653, %v1899
        %v1960 = vadd.f32 %v1654, %v1902
        %v1961 = vadd.f32 %v1655, %v1907
        %v1962 = vadd.f32 %v1656, %v1910
        %v1963 = vadd.f32 %v1657, %v1915
        %v1964 = vadd.f32 %v1658, %v1918
        %v1965 = vadd.f32 %v1659, %v1923
        %v1966 = vadd.f32 %v1660, %v1926
        %v1967 = vadd.f32 %v1661, %v1931
        %v1968 = vadd.f32 %v1662, %v1934
        %s1969 = scalar_lea.vmem %s195, 48
        %v1970 = vld [vmem:[%s1969] sm:$0xff]
        %v1971 = vld [vmem:[%s1969 + $0x8] sm:$0xff]
        %v1972 = vld [vmem:[%s1969 + $0x18] sm:$0xff]
        %v1973 = vld [vmem:[%s1969 + $0x20] sm:$0xff]
        %v1974 = vld [vmem:[%s1969 + $0x30] sm:$0xff]
        %v1975 = vld [vmem:[%s1969 + $0x38] sm:$0xff]
        %v1976 = vld [vmem:[%s1969 + $0x48] sm:$0xff]
        %v1977 = vld [vmem:[%s1969 + $0x50] sm:$0xff]
        %v1978 = vld [vmem:[%s1969 + $0x60] sm:$0xff]
        %v1979 = vld [vmem:[%s1969 + $0x68] sm:$0xff]
        %v1980 = vld [vmem:[%s1969 + $0x78] sm:$0xff]
        %v1981 = vld [vmem:[%s1969 + $0x80] sm:$0xff]
        %v1982 = vld [vmem:[%s1969 + $0x90] sm:$0xff]
        %v1983 = vld [vmem:[%s1969 + $0x98] sm:$0xff]
        %v1984 = vld [vmem:[%s1969 + $0xa8] sm:$0xff]
        %v1985 = vld [vmem:[%s1969 + $0xb0] sm:$0xff]
        %v1986 = vld [vmem:[%s1969 + $0xc0] sm:$0xff]
        %v1987 = vld [vmem:[%s1969 + $0xc8] sm:$0xff]
        %v1988 = vld [vmem:[%s1969 + $0xd8] sm:$0xff]
        %v1989 = vld [vmem:[%s1969 + $0xe0] sm:$0xff]
        %v1990 = vld [vmem:[%s1969 + $0xf0] sm:$0xff]
        %v1991 = vld [vmem:[%s1969 + $0xf8] sm:$0xff]
        %v1992 = vld [vmem:[%s1969 + $0x108] sm:$0xff]
        %v1993 = vld [vmem:[%s1969 + $0x110] sm:$0xff]
        %v1994 = vld [vmem:[%s1969 + $0x120] sm:$0xff]
        %v1995 = vld [vmem:[%s1969 + $0x128] sm:$0xff]
        %v1996 = vld [vmem:[%s1969 + $0x138] sm:$0xff]
        %v1997 = vld [vmem:[%s1969 + $0x140] sm:$0xff]
        %v1998 = vld [vmem:[%s1969 + $0x150] sm:$0xff]
        %v1999 = vld [vmem:[%s1969 + $0x158] sm:$0xff]
        %v2000 = vld [vmem:[%s1969 + $0x168] sm:$0xff]
        %v2001 = vld [vmem:[%s1969 + $0x170] sm:$0xff]
        %v2002 = vpack.c.bf16 %v1971, %v1970
        %v2003 = vpack.c.bf16 %v1973, %v1972
        %v2004 = vpack.c.bf16 %v1975, %v1974
        %v2005 = vpack.c.bf16 %v1977, %v1976
        %v2006 = vpack.c.bf16 %v1979, %v1978
        %v2007 = vpack.c.bf16 %v1981, %v1980
        %v2008 = vpack.c.bf16 %v1983, %v1982
        %v2009 = vpack.c.bf16 %v1985, %v1984
        %v2010 = vpack.c.bf16 %v1987, %v1986
        %v2011 = vpack.c.bf16 %v1989, %v1988
        %v2012 = vpack.c.bf16 %v1991, %v1990
        %v2013 = vpack.c.bf16 %v1993, %v1992
        %v2014 = vpack.c.bf16 %v1995, %v1994
        %v2015 = vpack.c.bf16 %v1997, %v1996
        %v2016 = vpack.c.bf16 %v1999, %v1998
        %v2017 = vpack.c.bf16 %v2001, %v2000
        %s2018 = scalar_lea.vmem %s1, 384
        %v2019 = vld [vmem:[%s2018] sm:$0xf]
        %v2020 = vld [vmem:[%s2018 + $0x4] sm:$0xf]
        %v2021 = vld [vmem:[%s2018 + $0x8] sm:$0xf]
        %v2022 = vld [vmem:[%s2018 + $0xc] sm:$0xf]
        %v2023 = vld [vmem:[%s2018 + $0x10] sm:$0xf]
        %v2024 = vld [vmem:[%s2018 + $0x14] sm:$0xf]
        %v2025 = vld [vmem:[%s2018 + $0x18] sm:$0xf]
        %v2026 = vld [vmem:[%s2018 + $0x1c] sm:$0xf]
        %v2027 = vld [vmem:[%s2018 + $0x20] sm:$0xf]
        %v2028 = vld [vmem:[%s2018 + $0x24] sm:$0xf]
        %v2029 = vld [vmem:[%s2018 + $0x28] sm:$0xf]
        %v2030 = vld [vmem:[%s2018 + $0x2c] sm:$0xf]
        %v2031 = vld [vmem:[%s2018 + $0x30] sm:$0xf]
        %v2032 = vld [vmem:[%s2018 + $0x34] sm:$0xf]
        %v2033 = vld [vmem:[%s2018 + $0x38] sm:$0xf]
        %v2034 = vld [vmem:[%s2018 + $0x3c] sm:$0xf]
        %v2051 = vunpack.c.l.b16 %v2019
        %v2052 = vunpack.c.l.b16 %v2020
        %v2053 = vunpack.c.l.b16 %v2021
        %v2054 = vunpack.c.l.b16 %v2022
        %v2055 = vunpack.c.l.b16 %v2023
        %v2056 = vunpack.c.l.b16 %v2024
        %v2057 = vunpack.c.l.b16 %v2025
        %v2058 = vunpack.c.l.b16 %v2026
        %v2059 = vunpack.c.l.b16 %v2027
        %v2060 = vunpack.c.l.b16 %v2028
        %v2061 = vunpack.c.l.b16 %v2029
        %v2062 = vunpack.c.l.b16 %v2030
        %v2063 = vunpack.c.l.b16 %v2031
        %v2064 = vunpack.c.l.b16 %v2032
        %v2065 = vunpack.c.l.b16 %v2033
        %v2066 = vunpack.c.l.b16 %v2034
        %v2067 = vpack.c.b16 %v2052, %v2051
        %v2068 = vpack.c.b16 %v2054, %v2053
        %v2069 = vpack.c.b16 %v2056, %v2055
        %v2070 = vpack.c.b16 %v2058, %v2057
        %v2071 = vpack.c.b16 %v2060, %v2059
        %v2072 = vpack.c.b16 %v2062, %v2061
        %v2073 = vpack.c.b16 %v2064, %v2063
        %v2074 = vpack.c.b16 %v2066, %v2065
        %2083 = vmatprep.subr.bf16.mxu0 0
        %2084 = vmatpush1.bf16.msra.mxu0 %v2067
        %2085 = vmatprep.subr.bf16.mxu0 0
        %2086 = vmatpush1.bf16.msra.mxu0 %v2068
        %2087 = vmatprep.subr.bf16.mxu0 0
        %2088 = vmatpush1.bf16.msra.mxu0 %v2069
        %2089 = vmatprep.subr.bf16.mxu0 0
        %2090 = vmatpush1.bf16.msra.mxu0 %v2070
        %2091 = vmatprep.subr.bf16.mxu0 0
        %2092 = vmatpush1.bf16.msra.mxu0 %v2071
        %2093 = vmatprep.subr.bf16.mxu0 0
        %2094 = vmatpush1.bf16.msra.mxu0 %v2072
        %2095 = vmatprep.subr.bf16.mxu0 0
        %2096 = vmatpush1.bf16.msra.mxu0 %v2073
        %2097 = vmatprep.subr.bf16.mxu0 0
        %2098 = vmatpush1.bf16.msra.mxu0 %v2074
        %2099 = vmatprep.subr.bf16.mxu0 0
        %2100 = vmatpush1.bf16.msra.mxu0 0
        %2101 = vmatprep.subr.bf16.mxu0 0
        %2102 = vmatpush1.bf16.msra.mxu0 0
        %2103 = vmatprep.subr.bf16.mxu0 0
        %2104 = vmatpush1.bf16.msra.mxu0 0
        %2105 = vmatprep.subr.bf16.mxu0 0
        %2106 = vmatpush1.bf16.msra.mxu0 0
        %2107 = vmatprep.subr.bf16.mxu0 0
        %2108 = vmatpush1.bf16.msra.mxu0 0
        %2109 = vmatprep.subr.bf16.mxu0 0
        %2110 = vmatpush1.bf16.msra.mxu0 0
        %2111 = vmatprep.subr.bf16.mxu0 0
        %2112 = vmatpush1.bf16.msra.mxu0 0
        %2113 = vmatprep.subr.bf16.mxu0 0
        %2114 = vmatpush1.bf16.msra.mxu0 0
        %2115 = vmatprep.mubr.bf16.mxu0 0
        %2116 = vmatmul.mubr.bf16.gmra.mrb[0].mxu0 %v2002
        %v2117 = vpop.f32.mrb[0].mxu0
        %v2118 = vadd.f32 0.0, %v2117
        %v2119 = vpop.f32.mrb[0].mxu0
        %v2120 = vpop.f32.mrb[0].mxu0
        %v2121 = vadd.f32 0.0, %v2120
        %v2122 = vpop.f32.mrb[0].mxu0
        %2123 = vmatprep.mubr.bf16.mxu0 0
        %2124 = vmatmul.mubr.bf16.gmra.mrb[0].mxu0 %v2003
        %v2125 = vpop.f32.mrb[0].mxu0
        %v2126 = vadd.f32 0.0, %v2125
        %v2127 = vpop.f32.mrb[0].mxu0
        %v2128 = vpop.f32.mrb[0].mxu0
        %v2129 = vadd.f32 0.0, %v2128
        %v2130 = vpop.f32.mrb[0].mxu0
        %2131 = vmatprep.mubr.bf16.mxu0 0
        %2132 = vmatmul.mubr.bf16.gmra.mrb[0].mxu0 %v2004
        %v2133 = vpop.f32.mrb[0].mxu0
        %v2134 = vadd.f32 0.0, %v2133
        %v2135 = vpop.f32.mrb[0].mxu0
        %v2136 = vpop.f32.mrb[0].mxu0
        %v2137 = vadd.f32 0.0, %v2136
        %v2138 = vpop.f32.mrb[0].mxu0
        %2139 = vmatprep.mubr.bf16.mxu0 0
        %2140 = vmatmul.mubr.bf16.gmra.mrb[0].mxu0 %v2005
        %v2141 = vpop.f32.mrb[0].mxu0
        %v2142 = vadd.f32 0.0, %v2141
        %v2143 = vpop.f32.mrb[0].mxu0
        %v2144 = vpop.f32.mrb[0].mxu0
        %v2145 = vadd.f32 0.0, %v2144
        %v2146 = vpop.f32.mrb[0].mxu0
        %2147 = vmatprep.mubr.bf16.mxu0 0
        %2148 = vmatmul.mubr.bf16.gmra.mrb[0].mxu0 %v2006
        %v2149 = vpop.f32.mrb[0].mxu0
        %v2150 = vadd.f32 0.0, %v2149
        %v2151 = vpop.f32.mrb[0].mxu0
        %v2152 = vpop.f32.mrb[0].mxu0
        %v2153 = vadd.f32 0.0, %v2152
        %v2154 = vpop.f32.mrb[0].mxu0
        %2155 = vmatprep.mubr.bf16.mxu0 0
        %2156 = vmatmul.mubr.bf16.gmra.mrb[0].mxu0 %v2007
        %v2157 = vpop.f32.mrb[0].mxu0
        %v2158 = vadd.f32 0.0, %v2157
        %v2159 = vpop.f32.mrb[0].mxu0
        %v2160 = vpop.f32.mrb[0].mxu0
        %v2161 = vadd.f32 0.0, %v2160
        %v2162 = vpop.f32.mrb[0].mxu0
        %2163 = vmatprep.mubr.bf16.mxu0 0
        %2164 = vmatmul.mubr.bf16.gmra.mrb[0].mxu0 %v2008
        %v2165 = vpop.f32.mrb[0].mxu0
        %v2166 = vadd.f32 0.0, %v2165
        %v2167 = vpop.f32.mrb[0].mxu0
        %v2168 = vpop.f32.mrb[0].mxu0
        %v2169 = vadd.f32 0.0, %v2168
        %v2170 = vpop.f32.mrb[0].mxu0
        %2171 = vmatprep.mubr.bf16.mxu0 0
        %2172 = vmatmul.mubr.bf16.gmra.mrb[0].mxu0 %v2009
        %v2173 = vpop.f32.mrb[0].mxu0
        %v2174 = vadd.f32 0.0, %v2173
        %v2175 = vpop.f32.mrb[0].mxu0
        %v2176 = vpop.f32.mrb[0].mxu0
        %v2177 = vadd.f32 0.0, %v2176
        %v2178 = vpop.f32.mrb[0].mxu0
        %2179 = vmatprep.mubr.bf16.mxu0 0
        %2180 = vmatmul.mubr.bf16.gmra.mrb[0].mxu0 %v2010
        %v2181 = vpop.f32.mrb[0].mxu0
        %v2182 = vadd.f32 0.0, %v2181
        %v2183 = vpop.f32.mrb[0].mxu0
        %v2184 = vpop.f32.mrb[0].mxu0
        %v2185 = vadd.f32 0.0, %v2184
        %v2186 = vpop.f32.mrb[0].mxu0
        %2187 = vmatprep.mubr.bf16.mxu0 0
        %2188 = vmatmul.mubr.bf16.gmra.mrb[0].mxu0 %v2011
        %v2189 = vpop.f32.mrb[0].mxu0
        %v2190 = vadd.f32 0.0, %v2189
        %v2191 = vpop.f32.mrb[0].mxu0
        %v2192 = vpop.f32.mrb[0].mxu0
        %v2193 = vadd.f32 0.0, %v2192
        %v2194 = vpop.f32.mrb[0].mxu0
        %2195 = vmatprep.mubr.bf16.mxu0 0
        %2196 = vmatmul.mubr.bf16.gmra.mrb[0].mxu0 %v2012
        %v2197 = vpop.f32.mrb[0].mxu0
        %v2198 = vadd.f32 0.0, %v2197
        %v2199 = vpop.f32.mrb[0].mxu0
        %v2200 = vpop.f32.mrb[0].mxu0
        %v2201 = vadd.f32 0.0, %v2200
        %v2202 = vpop.f32.mrb[0].mxu0
        %2203 = vmatprep.mubr.bf16.mxu0 0
        %2204 = vmatmul.mubr.bf16.gmra.mrb[0].mxu0 %v2013
        %v2205 = vpop.f32.mrb[0].mxu0
        %v2206 = vadd.f32 0.0, %v2205
        %v2207 = vpop.f32.mrb[0].mxu0
        %v2208 = vpop.f32.mrb[0].mxu0
        %v2209 = vadd.f32 0.0, %v2208
        %v2210 = vpop.f32.mrb[0].mxu0
        %2211 = vmatprep.mubr.bf16.mxu0 0
        %2212 = vmatmul.mubr.bf16.gmra.mrb[0].mxu0 %v2014
        %v2213 = vpop.f32.mrb[0].mxu0
        %v2214 = vadd.f32 0.0, %v2213
        %v2215 = vpop.f32.mrb[0].mxu0
        %v2216 = vpop.f32.mrb[0].mxu0
        %v2217 = vadd.f32 0.0, %v2216
        %v2218 = vpop.f32.mrb[0].mxu0
        %2219 = vmatprep.mubr.bf16.mxu0 0
        %2220 = vmatmul.mubr.bf16.gmra.mrb[0].mxu0 %v2015
        %v2221 = vpop.f32.mrb[0].mxu0
        %v2222 = vadd.f32 0.0, %v2221
        %v2223 = vpop.f32.mrb[0].mxu0
        %v2224 = vpop.f32.mrb[0].mxu0
        %v2225 = vadd.f32 0.0, %v2224
        %v2226 = vpop.f32.mrb[0].mxu0
        %2227 = vmatprep.mubr.bf16.mxu0 0
        %2228 = vmatmul.mubr.bf16.gmra.mrb[0].mxu0 %v2016
        %v2229 = vpop.f32.mrb[0].mxu0
        %v2230 = vadd.f32 0.0, %v2229
        %v2231 = vpop.f32.mrb[0].mxu0
        %v2232 = vpop.f32.mrb[0].mxu0
        %v2233 = vadd.f32 0.0, %v2232
        %v2234 = vpop.f32.mrb[0].mxu0
        %2235 = vmatprep.mubr.bf16.mxu0 0
        %2236 = vmatmul.mubr.bf16.gmra.mrb[0].mxu0 %v2017
        %v2237 = vpop.f32.mrb[0].mxu0
        %v2238 = vadd.f32 0.0, %v2237
        %v2239 = vpop.f32.mrb[0].mxu0
        %v2240 = vpop.f32.mrb[0].mxu0
        %v2241 = vadd.f32 0.0, %v2240
        %v2242 = vpop.f32.mrb[0].mxu0
        %2243 = vdwg.mxu0
        %v2244 = vadd.f32 %v1937, %v2118
        %v2245 = vadd.f32 %v1938, %v2121
        %v2246 = vadd.f32 %v1939, %v2126
        %v2247 = vadd.f32 %v1940, %v2129
        %v2248 = vadd.f32 %v1941, %v2134
        %v2249 = vadd.f32 %v1942, %v2137
        %v2250 = vadd.f32 %v1943, %v2142
        %v2251 = vadd.f32 %v1944, %v2145
        %v2252 = vadd.f32 %v1945, %v2150
        %v2253 = vadd.f32 %v1946, %v2153
        %v2254 = vadd.f32 %v1947, %v2158
        %v2255 = vadd.f32 %v1948, %v2161
        %v2256 = vadd.f32 %v1949, %v2166
        %v2257 = vadd.f32 %v1950, %v2169
        %v2258 = vadd.f32 %v1951, %v2174
        %v2259 = vadd.f32 %v1952, %v2177
        %v2260 = vadd.f32 %v1953, %v2182
        %v2261 = vadd.f32 %v1954, %v2185
        %v2262 = vadd.f32 %v1955, %v2190
        %v2263 = vadd.f32 %v1956, %v2193
        %v2264 = vadd.f32 %v1957, %v2198
        %v2265 = vadd.f32 %v1958, %v2201
        %v2266 = vadd.f32 %v1959, %v2206
        %v2267 = vadd.f32 %v1960, %v2209
        %v2268 = vadd.f32 %v1961, %v2214
        %v2269 = vadd.f32 %v1962, %v2217
        %v2270 = vadd.f32 %v1963, %v2222
        %v2271 = vadd.f32 %v1964, %v2225
        %v2272 = vadd.f32 %v1965, %v2230
        %v2273 = vadd.f32 %v1966, %v2233
        %v2274 = vadd.f32 %v1967, %v2238
        %v2275 = vadd.f32 %v1968, %v2241
        %v2276 = vld [vmem:[%s1969 + $0x1] sm:$0xff]
        %v2277 = vld [vmem:[%s1969 + $0x9] sm:$0xff]
        %v2278 = vld [vmem:[%s1969 + $0x19] sm:$0xff]
        %v2279 = vld [vmem:[%s1969 + $0x21] sm:$0xff]
        %v2280 = vld [vmem:[%s1969 + $0x31] sm:$0xff]
        %v2281 = vld [vmem:[%s1969 + $0x39] sm:$0xff]
        %v2282 = vld [vmem:[%s1969 + $0x49] sm:$0xff]
        %v2283 = vld [vmem:[%s1969 + $0x51] sm:$0xff]
        %v2284 = vld [vmem:[%s1969 + $0x61] sm:$0xff]
        %v2285 = vld [vmem:[%s1969 + $0x69] sm:$0xff]
        %v2286 = vld [vmem:[%s1969 + $0x79] sm:$0xff]
        %v2287 = vld [vmem:[%s1969 + $0x81] sm:$0xff]
        %v2288 = vld [vmem:[%s1969 + $0x91] sm:$0xff]
        %v2289 = vld [vmem:[%s1969 + $0x99] sm:$0xff]
        %v2290 = vld [vmem:[%s1969 + $0xa9] sm:$0xff]
        %v2291 = vld [vmem:[%s1969 + $0xb1] sm:$0xff]
        %v2292 = vld [vmem:[%s1969 + $0xc1] sm:$0xff]
        %v2293 = vld [vmem:[%s1969 + $0xc9] sm:$0xff]
        %v2294 = vld [vmem:[%s1969 + $0xd9] sm:$0xff]
        %v2295 = vld [vmem:[%s1969 + $0xe1] sm:$0xff]
        %v2296 = vld [vmem:[%s1969 + $0xf1] sm:$0xff]
        %v2297 = vld [vmem:[%s1969 + $0xf9] sm:$0xff]
        %v2298 = vld [vmem:[%s1969 + $0x109] sm:$0xff]
        %v2299 = vld [vmem:[%s1969 + $0x111] sm:$0xff]
        %v2300 = vld [vmem:[%s1969 + $0x121] sm:$0xff]
        %v2301 = vld [vmem:[%s1969 + $0x129] sm:$0xff]
        %v2302 = vld [vmem:[%s1969 + $0x139] sm:$0xff]
        %v2303 = vld [vmem:[%s1969 + $0x141] sm:$0xff]
        %v2304 = vld [vmem:[%s1969 + $0x151] sm:$0xff]
        %v2305 = vld [vmem:[%s1969 + $0x159] sm:$0xff]
        %v2306 = vld [vmem:[%s1969 + $0x169] sm:$0xff]
        %v2307 = vld [vmem:[%s1969 + $0x171] sm:$0xff]
        %v2308 = vpack.c.bf16 %v2277, %v2276
        %v2309 = vpack.c.bf16 %v2279, %v2278
        %v2310 = vpack.c.bf16 %v2281, %v2280
        %v2311 = vpack.c.bf16 %v2283, %v2282
        %v2312 = vpack.c.bf16 %v2285, %v2284
        %v2313 = vpack.c.bf16 %v2287, %v2286
        %v2314 = vpack.c.bf16 %v2289, %v2288
        %v2315 = vpack.c.bf16 %v2291, %v2290
        %v2316 = vpack.c.bf16 %v2293, %v2292
        %v2317 = vpack.c.bf16 %v2295, %v2294
        %v2318 = vpack.c.bf16 %v2297, %v2296
        %v2319 = vpack.c.bf16 %v2299, %v2298
        %v2320 = vpack.c.bf16 %v2301, %v2300
        %v2321 = vpack.c.bf16 %v2303, %v2302
        %v2322 = vpack.c.bf16 %v2305, %v2304
        %v2323 = vpack.c.bf16 %v2307, %v2306
        %s2324 = scalar_lea.vmem %s1, 448
        %v2325 = vld [vmem:[%s2324] sm:$0xf]
        %v2326 = vld [vmem:[%s2324 + $0x4] sm:$0xf]
        %v2327 = vld [vmem:[%s2324 + $0x8] sm:$0xf]
        %v2328 = vld [vmem:[%s2324 + $0xc] sm:$0xf]
        %v2329 = vld [vmem:[%s2324 + $0x10] sm:$0xf]
        %v2330 = vld [vmem:[%s2324 + $0x14] sm:$0xf]
        %v2331 = vld [vmem:[%s2324 + $0x18] sm:$0xf]
        %v2332 = vld [vmem:[%s2324 + $0x1c] sm:$0xf]
        %v2333 = vld [vmem:[%s2324 + $0x20] sm:$0xf]
        %v2334 = vld [vmem:[%s2324 + $0x24] sm:$0xf]
        %v2335 = vld [vmem:[%s2324 + $0x28] sm:$0xf]
        %v2336 = vld [vmem:[%s2324 + $0x2c] sm:$0xf]
        %v2337 = vld [vmem:[%s2324 + $0x30] sm:$0xf]
        %v2338 = vld [vmem:[%s2324 + $0x34] sm:$0xf]
        %v2339 = vld [vmem:[%s2324 + $0x38] sm:$0xf]
        %v2340 = vld [vmem:[%s2324 + $0x3c] sm:$0xf]
        %v2357 = vunpack.c.l.b16 %v2325
        %v2358 = vunpack.c.l.b16 %v2326
        %v2359 = vunpack.c.l.b16 %v2327
        %v2360 = vunpack.c.l.b16 %v2328
        %v2361 = vunpack.c.l.b16 %v2329
        %v2362 = vunpack.c.l.b16 %v2330
        %v2363 = vunpack.c.l.b16 %v2331
        %v2364 = vunpack.c.l.b16 %v2332
        %v2365 = vunpack.c.l.b16 %v2333
        %v2366 = vunpack.c.l.b16 %v2334
        %v2367 = vunpack.c.l.b16 %v2335
        %v2368 = vunpack.c.l.b16 %v2336
        %v2369 = vunpack.c.l.b16 %v2337
        %v2370 = vunpack.c.l.b16 %v2338
        %v2371 = vunpack.c.l.b16 %v2339
        %v2372 = vunpack.c.l.b16 %v2340
        %v2373 = vpack.c.b16 %v2358, %v2357
        %v2374 = vpack.c.b16 %v2360, %v2359
        %v2375 = vpack.c.b16 %v2362, %v2361
        %v2376 = vpack.c.b16 %v2364, %v2363
        %v2377 = vpack.c.b16 %v2366, %v2365
        %v2378 = vpack.c.b16 %v2368, %v2367
        %v2379 = vpack.c.b16 %v2370, %v2369
        %v2380 = vpack.c.b16 %v2372, %v2371
        %2389 = vmatprep.subr.bf16.mxu0 0
        %2390 = vmatpush1.bf16.msra.mxu0 %v2373
        %2391 = vmatprep.subr.bf16.mxu0 0
        %2392 = vmatpush1.bf16.msra.mxu0 %v2374
        %2393 = vmatprep.subr.bf16.mxu0 0
        %2394 = vmatpush1.bf16.msra.mxu0 %v2375
        %2395 = vmatprep.subr.bf16.mxu0 0
        %2396 = vmatpush1.bf16.msra.mxu0 %v2376
        %2397 = vmatprep.subr.bf16.mxu0 0
        %2398 = vmatpush1.bf16.msra.mxu0 %v2377
        %2399 = vmatprep.subr.bf16.mxu0 0
        %2400 = vmatpush1.bf16.msra.mxu0 %v2378
        %2401 = vmatprep.subr.bf16.mxu0 0
        %2402 = vmatpush1.bf16.msra.mxu0 %v2379
        %2403 = vmatprep.subr.bf16.mxu0 0
        %2404 = vmatpush1.bf16.msra.mxu0 %v2380
        %2405 = vmatprep.subr.bf16.mxu0 0
        %2406 = vmatpush1.bf16.msra.mxu0 0
        %2407 = vmatprep.subr.bf16.mxu0 0
        %2408 = vmatpush1.bf16.msra.mxu0 0
        %2409 = vmatprep.subr.bf16.mxu0 0
        %2410 = vmatpush1.bf16.msra.mxu0 0
        %2411 = vmatprep.subr.bf16.mxu0 0
        %2412 = vmatpush1.bf16.msra.mxu0 0
        %2413 = vmatprep.subr.bf16.mxu0 0
        %2414 = vmatpush1.bf16.msra.mxu0 0
        %2415 = vmatprep.subr.bf16.mxu0 0
        %2416 = vmatpush1.bf16.msra.mxu0 0
        %2417 = vmatprep.subr.bf16.mxu0 0
        %2418 = vmatpush1.bf16.msra.mxu0 0
        %2419 = vmatprep.subr.bf16.mxu0 0
        %2420 = vmatpush1.bf16.msra.mxu0 0
        %2421 = vmatprep.mubr.bf16.mxu0 0
        %2422 = vmatmul.mubr.bf16.gmra.mrb[0].mxu0 %v2308
        %v2423 = vpop.f32.mrb[0].mxu0
        %v2424 = vadd.f32 0.0, %v2423
        %v2425 = vpop.f32.mrb[0].mxu0
        %v2426 = vpop.f32.mrb[0].mxu0
        %v2427 = vadd.f32 0.0, %v2426
        %v2428 = vpop.f32.mrb[0].mxu0
        %2429 = vmatprep.mubr.bf16.mxu0 0
        %2430 = vmatmul.mubr.bf16.gmra.mrb[0].mxu0 %v2309
        %v2431 = vpop.f32.mrb[0].mxu0
        %v2432 = vadd.f32 0.0, %v2431
        %v2433 = vpop.f32.mrb[0].mxu0
        %v2434 = vpop.f32.mrb[0].mxu0
        %v2435 = vadd.f32 0.0, %v2434
        %v2436 = vpop.f32.mrb[0].mxu0
        %2437 = vmatprep.mubr.bf16.mxu0 0
        %2438 = vmatmul.mubr.bf16.gmra.mrb[0].mxu0 %v2310
        %v2439 = vpop.f32.mrb[0].mxu0
        %v2440 = vadd.f32 0.0, %v2439
        %v2441 = vpop.f32.mrb[0].mxu0
        %v2442 = vpop.f32.mrb[0].mxu0
        %v2443 = vadd.f32 0.0, %v2442
        %v2444 = vpop.f32.mrb[0].mxu0
        %2445 = vmatprep.mubr.bf16.mxu0 0
        %2446 = vmatmul.mubr.bf16.gmra.mrb[0].mxu0 %v2311
        %v2447 = vpop.f32.mrb[0].mxu0
        %v2448 = vadd.f32 0.0, %v2447
        %v2449 = vpop.f32.mrb[0].mxu0
        %v2450 = vpop.f32.mrb[0].mxu0
        %v2451 = vadd.f32 0.0, %v2450
        %v2452 = vpop.f32.mrb[0].mxu0
        %2453 = vmatprep.mubr.bf16.mxu0 0
        %2454 = vmatmul.mubr.bf16.gmra.mrb[0].mxu0 %v2312
        %v2455 = vpop.f32.mrb[0].mxu0
        %v2456 = vadd.f32 0.0, %v2455
        %v2457 = vpop.f32.mrb[0].mxu0
        %v2458 = vpop.f32.mrb[0].mxu0
        %v2459 = vadd.f32 0.0, %v2458
        %v2460 = vpop.f32.mrb[0].mxu0
        %2461 = vmatprep.mubr.bf16.mxu0 0
        %2462 = vmatmul.mubr.bf16.gmra.mrb[0].mxu0 %v2313
        %v2463 = vpop.f32.mrb[0].mxu0
        %v2464 = vadd.f32 0.0, %v2463
        %v2465 = vpop.f32.mrb[0].mxu0
        %v2466 = vpop.f32.mrb[0].mxu0
        %v2467 = vadd.f32 0.0, %v2466
        %v2468 = vpop.f32.mrb[0].mxu0
        %2469 = vmatprep.mubr.bf16.mxu0 0
        %2470 = vmatmul.mubr.bf16.gmra.mrb[0].mxu0 %v2314
        %v2471 = vpop.f32.mrb[0].mxu0
        %v2472 = vadd.f32 0.0, %v2471
        %v2473 = vpop.f32.mrb[0].mxu0
        %v2474 = vpop.f32.mrb[0].mxu0
        %v2475 = vadd.f32 0.0, %v2474
        %v2476 = vpop.f32.mrb[0].mxu0
        %2477 = vmatprep.mubr.bf16.mxu0 0
        %2478 = vmatmul.mubr.bf16.gmra.mrb[0].mxu0 %v2315
        %v2479 = vpop.f32.mrb[0].mxu0
        %v2480 = vadd.f32 0.0, %v2479
        %v2481 = vpop.f32.mrb[0].mxu0
        %v2482 = vpop.f32.mrb[0].mxu0
        %v2483 = vadd.f32 0.0, %v2482
        %v2484 = vpop.f32.mrb[0].mxu0
        %2485 = vmatprep.mubr.bf16.mxu0 0
        %2486 = vmatmul.mubr.bf16.gmra.mrb[0].mxu0 %v2316
        %v2487 = vpop.f32.mrb[0].mxu0
        %v2488 = vadd.f32 0.0, %v2487
        %v2489 = vpop.f32.mrb[0].mxu0
        %v2490 = vpop.f32.mrb[0].mxu0
        %v2491 = vadd.f32 0.0, %v2490
        %v2492 = vpop.f32.mrb[0].mxu0
        %2493 = vmatprep.mubr.bf16.mxu0 0
        %2494 = vmatmul.mubr.bf16.gmra.mrb[0].mxu0 %v2317
        %v2495 = vpop.f32.mrb[0].mxu0
        %v2496 = vadd.f32 0.0, %v2495
        %v2497 = vpop.f32.mrb[0].mxu0
        %v2498 = vpop.f32.mrb[0].mxu0
        %v2499 = vadd.f32 0.0, %v2498
        %v2500 = vpop.f32.mrb[0].mxu0
        %2501 = vmatprep.mubr.bf16.mxu0 0
        %2502 = vmatmul.mubr.bf16.gmra.mrb[0].mxu0 %v2318
        %v2503 = vpop.f32.mrb[0].mxu0
        %v2504 = vadd.f32 0.0, %v2503
        %v2505 = vpop.f32.mrb[0].mxu0
        %v2506 = vpop.f32.mrb[0].mxu0
        %v2507 = vadd.f32 0.0, %v2506
        %v2508 = vpop.f32.mrb[0].mxu0
        %2509 = vmatprep.mubr.bf16.mxu0 0
        %2510 = vmatmul.mubr.bf16.gmra.mrb[0].mxu0 %v2319
        %v2511 = vpop.f32.mrb[0].mxu0
        %v2512 = vadd.f32 0.0, %v2511
        %v2513 = vpop.f32.mrb[0].mxu0
        %v2514 = vpop.f32.mrb[0].mxu0
        %v2515 = vadd.f32 0.0, %v2514
        %v2516 = vpop.f32.mrb[0].mxu0
        %2517 = vmatprep.mubr.bf16.mxu0 0
        %2518 = vmatmul.mubr.bf16.gmra.mrb[0].mxu0 %v2320
        %v2519 = vpop.f32.mrb[0].mxu0
        %v2520 = vadd.f32 0.0, %v2519
        %v2521 = vpop.f32.mrb[0].mxu0
        %v2522 = vpop.f32.mrb[0].mxu0
        %v2523 = vadd.f32 0.0, %v2522
        %v2524 = vpop.f32.mrb[0].mxu0
        %2525 = vmatprep.mubr.bf16.mxu0 0
        %2526 = vmatmul.mubr.bf16.gmra.mrb[0].mxu0 %v2321
        %v2527 = vpop.f32.mrb[0].mxu0
        %v2528 = vadd.f32 0.0, %v2527
        %v2529 = vpop.f32.mrb[0].mxu0
        %v2530 = vpop.f32.mrb[0].mxu0
        %v2531 = vadd.f32 0.0, %v2530
        %v2532 = vpop.f32.mrb[0].mxu0
        %2533 = vmatprep.mubr.bf16.mxu0 0
        %2534 = vmatmul.mubr.bf16.gmra.mrb[0].mxu0 %v2322
        %v2535 = vpop.f32.mrb[0].mxu0
        %v2536 = vadd.f32 0.0, %v2535
        %v2537 = vpop.f32.mrb[0].mxu0
        %v2538 = vpop.f32.mrb[0].mxu0
        %v2539 = vadd.f32 0.0, %v2538
        %v2540 = vpop.f32.mrb[0].mxu0
        %2541 = vmatprep.mubr.bf16.mxu0 0
        %2542 = vmatmul.mubr.bf16.gmra.mrb[0].mxu0 %v2323
        %v2543 = vpop.f32.mrb[0].mxu0
        %v2544 = vadd.f32 0.0, %v2543
        %v2545 = vpop.f32.mrb[0].mxu0
        %v2546 = vpop.f32.mrb[0].mxu0
        %v2547 = vadd.f32 0.0, %v2546
        %v2548 = vpop.f32.mrb[0].mxu0
        %2549 = vdwg.mxu0
        %v2550 = vadd.f32 %v2244, %v2424
        %v2551 = vadd.f32 %v2245, %v2427
        %v2552 = vadd.f32 %v2246, %v2432
        %v2553 = vadd.f32 %v2247, %v2435
        %v2554 = vadd.f32 %v2248, %v2440
        %v2555 = vadd.f32 %v2249, %v2443
        %v2556 = vadd.f32 %v2250, %v2448
        %v2557 = vadd.f32 %v2251, %v2451
        %v2558 = vadd.f32 %v2252, %v2456
        %v2559 = vadd.f32 %v2253, %v2459
        %v2560 = vadd.f32 %v2254, %v2464
        %v2561 = vadd.f32 %v2255, %v2467
        %v2562 = vadd.f32 %v2256, %v2472
        %v2563 = vadd.f32 %v2257, %v2475
        %v2564 = vadd.f32 %v2258, %v2480
        %v2565 = vadd.f32 %v2259, %v2483
        %v2566 = vadd.f32 %v2260, %v2488
        %v2567 = vadd.f32 %v2261, %v2491
        %v2568 = vadd.f32 %v2262, %v2496
        %v2569 = vadd.f32 %v2263, %v2499
        %v2570 = vadd.f32 %v2264, %v2504
        %v2571 = vadd.f32 %v2265, %v2507
        %v2572 = vadd.f32 %v2266, %v2512
        %v2573 = vadd.f32 %v2267, %v2515
        %v2574 = vadd.f32 %v2268, %v2520
        %v2575 = vadd.f32 %v2269, %v2523
        %v2576 = vadd.f32 %v2270, %v2528
        %v2577 = vadd.f32 %v2271, %v2531
        %v2578 = vadd.f32 %v2272, %v2536
        %v2579 = vadd.f32 %v2273, %v2539
        %v2580 = vadd.f32 %v2274, %v2544
        %v2581 = vadd.f32 %v2275, %v2547
        %v2582 = vld [vmem:[%s1969 + $0x2] sm:$0xff]
        %v2583 = vld [vmem:[%s1969 + $0xa] sm:$0xff]
        %v2584 = vld [vmem:[%s1969 + $0x1a] sm:$0xff]
        %v2585 = vld [vmem:[%s1969 + $0x22] sm:$0xff]
        %v2586 = vld [vmem:[%s1969 + $0x32] sm:$0xff]
        %v2587 = vld [vmem:[%s1969 + $0x3a] sm:$0xff]
        %v2588 = vld [vmem:[%s1969 + $0x4a] sm:$0xff]
        %v2589 = vld [vmem:[%s1969 + $0x52] sm:$0xff]
        %v2590 = vld [vmem:[%s1969 + $0x62] sm:$0xff]
        %v2591 = vld [vmem:[%s1969 + $0x6a] sm:$0xff]
        %v2592 = vld [vmem:[%s1969 + $0x7a] sm:$0xff]
        %v2593 = vld [vmem:[%s1969 + $0x82] sm:$0xff]
        %v2594 = vld [vmem:[%s1969 + $0x92] sm:$0xff]
        %v2595 = vld [vmem:[%s1969 + $0x9a] sm:$0xff]
        %v2596 = vld [vmem:[%s1969 + $0xaa] sm:$0xff]
        %v2597 = vld [vmem:[%s1969 + $0xb2] sm:$0xff]
        %v2598 = vld [vmem:[%s1969 + $0xc2] sm:$0xff]
        %v2599 = vld [vmem:[%s1969 + $0xca] sm:$0xff]
        %v2600 = vld [vmem:[%s1969 + $0xda] sm:$0xff]
        %v2601 = vld [vmem:[%s1969 + $0xe2] sm:$0xff]
        %v2602 = vld [vmem:[%s1969 + $0xf2] sm:$0xff]
        %v2603 = vld [vmem:[%s1969 + $0xfa] sm:$0xff]
        %v2604 = vld [vmem:[%s1969 + $0x10a] sm:$0xff]
        %v2605 = vld [vmem:[%s1969 + $0x112] sm:$0xff]
        %v2606 = vld [vmem:[%s1969 + $0x122] sm:$0xff]
        %v2607 = vld [vmem:[%s1969 + $0x12a] sm:$0xff]
        %v2608 = vld [vmem:[%s1969 + $0x13a] sm:$0xff]
        %v2609 = vld [vmem:[%s1969 + $0x142] sm:$0xff]
        %v2610 = vld [vmem:[%s1969 + $0x152] sm:$0xff]
        %v2611 = vld [vmem:[%s1969 + $0x15a] sm:$0xff]
        %v2612 = vld [vmem:[%s1969 + $0x16a] sm:$0xff]
        %v2613 = vld [vmem:[%s1969 + $0x172] sm:$0xff]
        %v2614 = vpack.c.bf16 %v2583, %v2582
        %v2615 = vpack.c.bf16 %v2585, %v2584
        %v2616 = vpack.c.bf16 %v2587, %v2586
        %v2617 = vpack.c.bf16 %v2589, %v2588
        %v2618 = vpack.c.bf16 %v2591, %v2590
        %v2619 = vpack.c.bf16 %v2593, %v2592
        %v2620 = vpack.c.bf16 %v2595, %v2594
        %v2621 = vpack.c.bf16 %v2597, %v2596
        %v2622 = vpack.c.bf16 %v2599, %v2598
        %v2623 = vpack.c.bf16 %v2601, %v2600
        %v2624 = vpack.c.bf16 %v2603, %v2602
        %v2625 = vpack.c.bf16 %v2605, %v2604
        %v2626 = vpack.c.bf16 %v2607, %v2606
        %v2627 = vpack.c.bf16 %v2609, %v2608
        %v2628 = vpack.c.bf16 %v2611, %v2610
        %v2629 = vpack.c.bf16 %v2613, %v2612
        %s2630 = scalar_lea.vmem %s1, 512
        %v2631 = vld [vmem:[%s2630] sm:$0xf]
        %v2632 = vld [vmem:[%s2630 + $0x4] sm:$0xf]
        %v2633 = vld [vmem:[%s2630 + $0x8] sm:$0xf]
        %v2634 = vld [vmem:[%s2630 + $0xc] sm:$0xf]
        %v2635 = vld [vmem:[%s2630 + $0x10] sm:$0xf]
        %v2636 = vld [vmem:[%s2630 + $0x14] sm:$0xf]
        %v2637 = vld [vmem:[%s2630 + $0x18] sm:$0xf]
        %v2638 = vld [vmem:[%s2630 + $0x1c] sm:$0xf]
        %v2639 = vld [vmem:[%s2630 + $0x20] sm:$0xf]
        %v2640 = vld [vmem:[%s2630 + $0x24] sm:$0xf]
        %v2641 = vld [vmem:[%s2630 + $0x28] sm:$0xf]
        %v2642 = vld [vmem:[%s2630 + $0x2c] sm:$0xf]
        %v2643 = vld [vmem:[%s2630 + $0x30] sm:$0xf]
        %v2644 = vld [vmem:[%s2630 + $0x34] sm:$0xf]
        %v2645 = vld [vmem:[%s2630 + $0x38] sm:$0xf]
        %v2646 = vld [vmem:[%s2630 + $0x3c] sm:$0xf]
        %v2663 = vunpack.c.l.b16 %v2631
        %v2664 = vunpack.c.l.b16 %v2632
        %v2665 = vunpack.c.l.b16 %v2633
        %v2666 = vunpack.c.l.b16 %v2634
        %v2667 = vunpack.c.l.b16 %v2635
        %v2668 = vunpack.c.l.b16 %v2636
        %v2669 = vunpack.c.l.b16 %v2637
        %v2670 = vunpack.c.l.b16 %v2638
        %v2671 = vunpack.c.l.b16 %v2639
        %v2672 = vunpack.c.l.b16 %v2640
        %v2673 = vunpack.c.l.b16 %v2641
        %v2674 = vunpack.c.l.b16 %v2642
        %v2675 = vunpack.c.l.b16 %v2643
        %v2676 = vunpack.c.l.b16 %v2644
        %v2677 = vunpack.c.l.b16 %v2645
        %v2678 = vunpack.c.l.b16 %v2646
        %v2679 = vpack.c.b16 %v2664, %v2663
        %v2680 = vpack.c.b16 %v2666, %v2665
        %v2681 = vpack.c.b16 %v2668, %v2667
        %v2682 = vpack.c.b16 %v2670, %v2669
        %v2683 = vpack.c.b16 %v2672, %v2671
        %v2684 = vpack.c.b16 %v2674, %v2673
        %v2685 = vpack.c.b16 %v2676, %v2675
        %v2686 = vpack.c.b16 %v2678, %v2677
        %2695 = vmatprep.subr.bf16.mxu0 0
        %2696 = vmatpush1.bf16.msra.mxu0 %v2679
        %2697 = vmatprep.subr.bf16.mxu0 0
        %2698 = vmatpush1.bf16.msra.mxu0 %v2680
        %2699 = vmatprep.subr.bf16.mxu0 0
        %2700 = vmatpush1.bf16.msra.mxu0 %v2681
        %2701 = vmatprep.subr.bf16.mxu0 0
        %2702 = vmatpush1.bf16.msra.mxu0 %v2682
        %2703 = vmatprep.subr.bf16.mxu0 0
        %2704 = vmatpush1.bf16.msra.mxu0 %v2683
        %2705 = vmatprep.subr.bf16.mxu0 0
        %2706 = vmatpush1.bf16.msra.mxu0 %v2684
        %2707 = vmatprep.subr.bf16.mxu0 0
        %2708 = vmatpush1.bf16.msra.mxu0 %v2685
        %2709 = vmatprep.subr.bf16.mxu0 0
        %2710 = vmatpush1.bf16.msra.mxu0 %v2686
        %2711 = vmatprep.subr.bf16.mxu0 0
        %2712 = vmatpush1.bf16.msra.mxu0 0
        %2713 = vmatprep.subr.bf16.mxu0 0
        %2714 = vmatpush1.bf16.msra.mxu0 0
        %2715 = vmatprep.subr.bf16.mxu0 0
        %2716 = vmatpush1.bf16.msra.mxu0 0
        %2717 = vmatprep.subr.bf16.mxu0 0
        %2718 = vmatpush1.bf16.msra.mxu0 0
        %2719 = vmatprep.subr.bf16.mxu0 0
        %2720 = vmatpush1.bf16.msra.mxu0 0
        %2721 = vmatprep.subr.bf16.mxu0 0
        %2722 = vmatpush1.bf16.msra.mxu0 0
        %2723 = vmatprep.subr.bf16.mxu0 0
        %2724 = vmatpush1.bf16.msra.mxu0 0
        %2725 = vmatprep.subr.bf16.mxu0 0
        %2726 = vmatpush1.bf16.msra.mxu0 0
        %2727 = vmatprep.mubr.bf16.mxu0 0
        %2728 = vmatmul.mubr.bf16.gmra.mrb[0].mxu0 %v2614
        %v2729 = vpop.f32.mrb[0].mxu0
        %v2730 = vadd.f32 0.0, %v2729
        %v2731 = vpop.f32.mrb[0].mxu0
        %v2732 = vpop.f32.mrb[0].mxu0
        %v2733 = vadd.f32 0.0, %v2732
        %v2734 = vpop.f32.mrb[0].mxu0
        %2735 = vmatprep.mubr.bf16.mxu0 0
        %2736 = vmatmul.mubr.bf16.gmra.mrb[0].mxu0 %v2615
        %v2737 = vpop.f32.mrb[0].mxu0
        %v2738 = vadd.f32 0.0, %v2737
        %v2739 = vpop.f32.mrb[0].mxu0
        %v2740 = vpop.f32.mrb[0].mxu0
        %v2741 = vadd.f32 0.0, %v2740
        %v2742 = vpop.f32.mrb[0].mxu0
        %2743 = vmatprep.mubr.bf16.mxu0 0
        %2744 = vmatmul.mubr.bf16.gmra.mrb[0].mxu0 %v2616
        %v2745 = vpop.f32.mrb[0].mxu0
        %v2746 = vadd.f32 0.0, %v2745
        %v2747 = vpop.f32.mrb[0].mxu0
        %v2748 = vpop.f32.mrb[0].mxu0
        %v2749 = vadd.f32 0.0, %v2748
        %v2750 = vpop.f32.mrb[0].mxu0
        %2751 = vmatprep.mubr.bf16.mxu0 0
        %2752 = vmatmul.mubr.bf16.gmra.mrb[0].mxu0 %v2617
        %v2753 = vpop.f32.mrb[0].mxu0
        %v2754 = vadd.f32 0.0, %v2753
        %v2755 = vpop.f32.mrb[0].mxu0
        %v2756 = vpop.f32.mrb[0].mxu0
        %v2757 = vadd.f32 0.0, %v2756
        %v2758 = vpop.f32.mrb[0].mxu0
        %2759 = vmatprep.mubr.bf16.mxu0 0
        %2760 = vmatmul.mubr.bf16.gmra.mrb[0].mxu0 %v2618
        %v2761 = vpop.f32.mrb[0].mxu0
        %v2762 = vadd.f32 0.0, %v2761
        %v2763 = vpop.f32.mrb[0].mxu0
        %v2764 = vpop.f32.mrb[0].mxu0
        %v2765 = vadd.f32 0.0, %v2764
        %v2766 = vpop.f32.mrb[0].mxu0
        %2767 = vmatprep.mubr.bf16.mxu0 0
        %2768 = vmatmul.mubr.bf16.gmra.mrb[0].mxu0 %v2619
        %v2769 = vpop.f32.mrb[0].mxu0
        %v2770 = vadd.f32 0.0, %v2769
        %v2771 = vpop.f32.mrb[0].mxu0
        %v2772 = vpop.f32.mrb[0].mxu0
        %v2773 = vadd.f32 0.0, %v2772
        %v2774 = vpop.f32.mrb[0].mxu0
        %2775 = vmatprep.mubr.bf16.mxu0 0
        %2776 = vmatmul.mubr.bf16.gmra.mrb[0].mxu0 %v2620
        %v2777 = vpop.f32.mrb[0].mxu0
        %v2778 = vadd.f32 0.0, %v2777
        %v2779 = vpop.f32.mrb[0].mxu0
        %v2780 = vpop.f32.mrb[0].mxu0
        %v2781 = vadd.f32 0.0, %v2780
        %v2782 = vpop.f32.mrb[0].mxu0
        %2783 = vmatprep.mubr.bf16.mxu0 0
        %2784 = vmatmul.mubr.bf16.gmra.mrb[0].mxu0 %v2621
        %v2785 = vpop.f32.mrb[0].mxu0
        %v2786 = vadd.f32 0.0, %v2785
        %v2787 = vpop.f32.mrb[0].mxu0
        %v2788 = vpop.f32.mrb[0].mxu0
        %v2789 = vadd.f32 0.0, %v2788
        %v2790 = vpop.f32.mrb[0].mxu0
        %2791 = vmatprep.mubr.bf16.mxu0 0
        %2792 = vmatmul.mubr.bf16.gmra.mrb[0].mxu0 %v2622
        %v2793 = vpop.f32.mrb[0].mxu0
        %v2794 = vadd.f32 0.0, %v2793
        %v2795 = vpop.f32.mrb[0].mxu0
        %v2796 = vpop.f32.mrb[0].mxu0
        %v2797 = vadd.f32 0.0, %v2796
        %v2798 = vpop.f32.mrb[0].mxu0
        %2799 = vmatprep.mubr.bf16.mxu0 0
        %2800 = vmatmul.mubr.bf16.gmra.mrb[0].mxu0 %v2623
        %v2801 = vpop.f32.mrb[0].mxu0
        %v2802 = vadd.f32 0.0, %v2801
        %v2803 = vpop.f32.mrb[0].mxu0
        %v2804 = vpop.f32.mrb[0].mxu0
        %v2805 = vadd.f32 0.0, %v2804
        %v2806 = vpop.f32.mrb[0].mxu0
        %2807 = vmatprep.mubr.bf16.mxu0 0
        %2808 = vmatmul.mubr.bf16.gmra.mrb[0].mxu0 %v2624
        %v2809 = vpop.f32.mrb[0].mxu0
        %v2810 = vadd.f32 0.0, %v2809
        %v2811 = vpop.f32.mrb[0].mxu0
        %v2812 = vpop.f32.mrb[0].mxu0
        %v2813 = vadd.f32 0.0, %v2812
        %v2814 = vpop.f32.mrb[0].mxu0
        %2815 = vmatprep.mubr.bf16.mxu0 0
        %2816 = vmatmul.mubr.bf16.gmra.mrb[0].mxu0 %v2625
        %v2817 = vpop.f32.mrb[0].mxu0
        %v2818 = vadd.f32 0.0, %v2817
        %v2819 = vpop.f32.mrb[0].mxu0
        %v2820 = vpop.f32.mrb[0].mxu0
        %v2821 = vadd.f32 0.0, %v2820
        %v2822 = vpop.f32.mrb[0].mxu0
        %2823 = vmatprep.mubr.bf16.mxu0 0
        %2824 = vmatmul.mubr.bf16.gmra.mrb[0].mxu0 %v2626
        %v2825 = vpop.f32.mrb[0].mxu0
        %v2826 = vadd.f32 0.0, %v2825
        %v2827 = vpop.f32.mrb[0].mxu0
        %v2828 = vpop.f32.mrb[0].mxu0
        %v2829 = vadd.f32 0.0, %v2828
        %v2830 = vpop.f32.mrb[0].mxu0
        %2831 = vmatprep.mubr.bf16.mxu0 0
        %2832 = vmatmul.mubr.bf16.gmra.mrb[0].mxu0 %v2627
        %v2833 = vpop.f32.mrb[0].mxu0
        %v2834 = vadd.f32 0.0, %v2833
        %v2835 = vpop.f32.mrb[0].mxu0
        %v2836 = vpop.f32.mrb[0].mxu0
        %v2837 = vadd.f32 0.0, %v2836
        %v2838 = vpop.f32.mrb[0].mxu0
        %2839 = vmatprep.mubr.bf16.mxu0 0
        %2840 = vmatmul.mubr.bf16.gmra.mrb[0].mxu0 %v2628
        %v2841 = vpop.f32.mrb[0].mxu0
        %v2842 = vadd.f32 0.0, %v2841
        %v2843 = vpop.f32.mrb[0].mxu0
        %v2844 = vpop.f32.mrb[0].mxu0
        %v2845 = vadd.f32 0.0, %v2844
        %v2846 = vpop.f32.mrb[0].mxu0
        %2847 = vmatprep.mubr.bf16.mxu0 0
        %2848 = vmatmul.mubr.bf16.gmra.mrb[0].mxu0 %v2629
        %v2849 = vpop.f32.mrb[0].mxu0
        %v2850 = vadd.f32 0.0, %v2849
        %v2851 = vpop.f32.mrb[0].mxu0
        %v2852 = vpop.f32.mrb[0].mxu0
        %v2853 = vadd.f32 0.0, %v2852
        %v2854 = vpop.f32.mrb[0].mxu0
        %2855 = vdwg.mxu0
        %v2856 = vadd.f32 %v2550, %v2730
        %v2857 = vadd.f32 %v2551, %v2733
        %v2858 = vadd.f32 %v2552, %v2738
        %v2859 = vadd.f32 %v2553, %v2741
        %v2860 = vadd.f32 %v2554, %v2746
        %v2861 = vadd.f32 %v2555, %v2749
        %v2862 = vadd.f32 %v2556, %v2754
        %v2863 = vadd.f32 %v2557, %v2757
        %v2864 = vadd.f32 %v2558, %v2762
        %v2865 = vadd.f32 %v2559, %v2765
        %v2866 = vadd.f32 %v2560, %v2770
        %v2867 = vadd.f32 %v2561, %v2773
        %v2868 = vadd.f32 %v2562, %v2778
        %v2869 = vadd.f32 %v2563, %v2781
        %v2870 = vadd.f32 %v2564, %v2786
        %v2871 = vadd.f32 %v2565, %v2789
        %v2872 = vadd.f32 %v2566, %v2794
        %v2873 = vadd.f32 %v2567, %v2797
        %v2874 = vadd.f32 %v2568, %v2802
        %v2875 = vadd.f32 %v2569, %v2805
        %v2876 = vadd.f32 %v2570, %v2810
        %v2877 = vadd.f32 %v2571, %v2813
        %v2878 = vadd.f32 %v2572, %v2818
        %v2879 = vadd.f32 %v2573, %v2821
        %v2880 = vadd.f32 %v2574, %v2826
        %v2881 = vadd.f32 %v2575, %v2829
        %v2882 = vadd.f32 %v2576, %v2834
        %v2883 = vadd.f32 %v2577, %v2837
        %v2884 = vadd.f32 %v2578, %v2842
        %v2885 = vadd.f32 %v2579, %v2845
        %v2886 = vadd.f32 %v2580, %v2850
        %v2887 = vadd.f32 %v2581, %v2853
        %v2888 = vpack.c.bf16 %v2857, %v2856
        %v2889 = vpack.c.bf16 %v2859, %v2858
        %v2890 = vpack.c.bf16 %v2861, %v2860
        %v2891 = vpack.c.bf16 %v2863, %v2862
        %v2892 = vpack.c.bf16 %v2865, %v2864
        %v2893 = vpack.c.bf16 %v2867, %v2866
        %v2894 = vpack.c.bf16 %v2869, %v2868
        %v2895 = vpack.c.bf16 %v2871, %v2870
        %v2896 = vpack.c.bf16 %v2873, %v2872
        %v2897 = vpack.c.bf16 %v2875, %v2874
        %v2898 = vpack.c.bf16 %v2877, %v2876
        %v2899 = vpack.c.bf16 %v2879, %v2878
        %v2900 = vpack.c.bf16 %v2881, %v2880
        %v2901 = vpack.c.bf16 %v2883, %v2882
        %v2902 = vpack.c.bf16 %v2885, %v2884
        %v2903 = vpack.c.bf16 %v2887, %v2886
        %v2904 = vld [vmem:[%s2] sm:$0xff]
        %v2905 = vld [vmem:[%s2 + $0x8] sm:$0xf]
        %v2906 = vld [vmem:[%s2 + $0xc] sm:$0xff]
        %v2907 = vld [vmem:[%s2 + $0x14] sm:$0xf]
        %v2908 = vld [vmem:[%s2 + $0x18] sm:$0xff]
        %v2909 = vld [vmem:[%s2 + $0x20] sm:$0xf]
        %v2910 = vld [vmem:[%s2 + $0x24] sm:$0xff]
        %v2911 = vld [vmem:[%s2 + $0x2c] sm:$0xf]
        %v2912 = vld [vmem:[%s2 + $0x30] sm:$0xff]
        %v2913 = vld [vmem:[%s2 + $0x38] sm:$0xf]
        %v2914 = vld [vmem:[%s2 + $0x3c] sm:$0xff]
        %v2915 = vld [vmem:[%s2 + $0x44] sm:$0xf]
        %v2916 = vld [vmem:[%s2 + $0x48] sm:$0xff]
        %v2917 = vld [vmem:[%s2 + $0x50] sm:$0xf]
        %v2918 = vld [vmem:[%s2 + $0x54] sm:$0xff]
        %v2919 = vld [vmem:[%s2 + $0x5c] sm:$0xf]
        %v2920 = vld [vmem:[%s2 + $0x60] sm:$0xff]
        %v2921 = vld [vmem:[%s2 + $0x68] sm:$0xf]
        %v2922 = vld [vmem:[%s2 + $0x6c] sm:$0xff]
        %v2923 = vld [vmem:[%s2 + $0x74] sm:$0xf]
        %v2924 = vld [vmem:[%s2 + $0x78] sm:$0xff]
        %v2925 = vld [vmem:[%s2 + $0x80] sm:$0xf]
        %v2926 = vld [vmem:[%s2 + $0x84] sm:$0xff]
        %v2927 = vld [vmem:[%s2 + $0x8c] sm:$0xf]
        %v2928 = vld [vmem:[%s2 + $0x90] sm:$0xff]
        %v2929 = vld [vmem:[%s2 + $0x98] sm:$0xf]
        %v2930 = vld [vmem:[%s2 + $0x9c] sm:$0xff]
        %v2931 = vld [vmem:[%s2 + $0xa4] sm:$0xf]
        %v2932 = vld [vmem:[%s2 + $0xa8] sm:$0xff]
        %v2933 = vld [vmem:[%s2 + $0xb0] sm:$0xf]
        %v2934 = vld [vmem:[%s2 + $0xb4] sm:$0xff]
        %v2935 = vld [vmem:[%s2 + $0xbc] sm:$0xf]
        %v2936 = vld [vmem:[%s3] sm:$0x7]
        %v2938 = vlaneseq
        %v2939 = vshrl.u32 %v2938, 7
        %v2940 = vsub.s32 0, %v2939
        %v2941 = vrot.slane %v2936, %v2940
        %v2942 = vlaneseq
        %v2943 = vshrl.u32 %v2942, 7
        %v2944 = vsub.s32 1, %v2943
        %v2945 = vrot.slane %v2936, %v2944
        %v2946 = vlaneseq
        %v2947 = vshrl.u32 %v2946, 7
        %v2948 = vsub.s32 2, %v2947
        %v2949 = vrot.slane %v2936, %v2948
        %v2985 = vunpack.c.l.b16 %v2904
        %v2986 = vunpack.c.h.b16 %v2904
        %v2987 = vunpack.c.l.b16 %v2905
        %v2988 = vunpack.c.l.b16 %v2906
        %v2989 = vunpack.c.h.b16 %v2906
        %v2990 = vunpack.c.l.b16 %v2907
        %v2991 = vunpack.c.l.b16 %v2908
        %v2992 = vunpack.c.h.b16 %v2908
        %v2993 = vunpack.c.l.b16 %v2909
        %v2994 = vunpack.c.l.b16 %v2910
        %v2995 = vunpack.c.h.b16 %v2910
        %v2996 = vunpack.c.l.b16 %v2911
        %v2997 = vunpack.c.l.b16 %v2912
        %v2998 = vunpack.c.h.b16 %v2912
        %v2999 = vunpack.c.l.b16 %v2913
        %v3000 = vunpack.c.l.b16 %v2914
        %v3001 = vunpack.c.h.b16 %v2914
        %v3002 = vunpack.c.l.b16 %v2915
        %v3003 = vunpack.c.l.b16 %v2916
        %v3004 = vunpack.c.h.b16 %v2916
        %v3005 = vunpack.c.l.b16 %v2917
        %v3006 = vunpack.c.l.b16 %v2918
        %v3007 = vunpack.c.h.b16 %v2918
        %v3008 = vunpack.c.l.b16 %v2919
        %v3009 = vunpack.c.l.b16 %v2920
        %v3010 = vunpack.c.h.b16 %v2920
        %v3011 = vunpack.c.l.b16 %v2921
        %v3012 = vunpack.c.l.b16 %v2922
        %v3013 = vunpack.c.h.b16 %v2922
        %v3014 = vunpack.c.l.b16 %v2923
        %v3015 = vunpack.c.l.b16 %v2924
        %v3016 = vunpack.c.h.b16 %v2924
        %v3017 = vunpack.c.l.b16 %v2925
        %v3018 = vunpack.c.l.b16 %v2926
        %v3019 = vunpack.c.h.b16 %v2926
        %v3020 = vunpack.c.l.b16 %v2927
        %v3021 = vunpack.c.l.b16 %v2928
        %v3022 = vunpack.c.h.b16 %v2928
        %v3023 = vunpack.c.l.b16 %v2929
        %v3024 = vunpack.c.l.b16 %v2930
        %v3025 = vunpack.c.h.b16 %v2930
        %v3026 = vunpack.c.l.b16 %v2931
        %v3027 = vunpack.c.l.b16 %v2932
        %v3028 = vunpack.c.h.b16 %v2932
        %v3029 = vunpack.c.l.b16 %v2933
        %v3030 = vunpack.c.l.b16 %v2934
        %v3031 = vunpack.c.h.b16 %v2934
        %v3032 = vunpack.c.l.b16 %v2935
        %v3033 = vpack.c.b16 %v2988, %v2985
        %v3034 = vpack.c.b16 %v2989, %v2986
        %v3035 = vpack.c.b16 %v2990, %v2987
        %v3036 = vpack.c.b16 %v2994, %v2991
        %v3037 = vpack.c.b16 %v2995, %v2992
        %v3038 = vpack.c.b16 %v2996, %v2993
        %v3039 = vpack.c.b16 %v3000, %v2997
        %v3040 = vpack.c.b16 %v3001, %v2998
        %v3041 = vpack.c.b16 %v3002, %v2999
        %v3042 = vpack.c.b16 %v3006, %v3003
        %v3043 = vpack.c.b16 %v3007, %v3004
        %v3044 = vpack.c.b16 %v3008, %v3005
        %v3045 = vpack.c.b16 %v3012, %v3009
        %v3046 = vpack.c.b16 %v3013, %v3010
        %v3047 = vpack.c.b16 %v3014, %v3011
        %v3048 = vpack.c.b16 %v3018, %v3015
        %v3049 = vpack.c.b16 %v3019, %v3016
        %v3050 = vpack.c.b16 %v3020, %v3017
        %v3051 = vpack.c.b16 %v3024, %v3021
        %v3052 = vpack.c.b16 %v3025, %v3022
        %v3053 = vpack.c.b16 %v3026, %v3023
        %v3054 = vpack.c.b16 %v3030, %v3027
        %v3055 = vpack.c.b16 %v3031, %v3028
        %v3056 = vpack.c.b16 %v3032, %v3029
        %3081 = vmatprep.subr.bf16.mxu0 %v3034
        %3082 = vmatpush1.bf16.msra.mxu0 %v3033
        %3083 = vmatprep.subr.bf16.mxu0 %v3037
        %3084 = vmatpush1.bf16.msra.mxu0 %v3036
        %3085 = vmatprep.subr.bf16.mxu0 %v3040
        %3086 = vmatpush1.bf16.msra.mxu0 %v3039
        %3087 = vmatprep.subr.bf16.mxu0 %v3043
        %3088 = vmatpush1.bf16.msra.mxu0 %v3042
        %3089 = vmatprep.subr.bf16.mxu0 %v3046
        %3090 = vmatpush1.bf16.msra.mxu0 %v3045
        %3091 = vmatprep.subr.bf16.mxu0 %v3049
        %3092 = vmatpush1.bf16.msra.mxu0 %v3048
        %3093 = vmatprep.subr.bf16.mxu0 %v3052
        %3094 = vmatpush1.bf16.msra.mxu0 %v3051
        %3095 = vmatprep.subr.bf16.mxu0 %v3055
        %3096 = vmatpush1.bf16.msra.mxu0 %v3054
        %3097 = vmatprep.subr.bf16.mxu0 0
        %3098 = vmatpush1.bf16.msra.mxu0 0
        %3099 = vmatprep.subr.bf16.mxu0 0
        %3100 = vmatpush1.bf16.msra.mxu0 0
        %3101 = vmatprep.subr.bf16.mxu0 0
        %3102 = vmatpush1.bf16.msra.mxu0 0
        %3103 = vmatprep.subr.bf16.mxu0 0
        %3104 = vmatpush1.bf16.msra.mxu0 0
        %3105 = vmatprep.subr.bf16.mxu0 0
        %3106 = vmatpush1.bf16.msra.mxu0 0
        %3107 = vmatprep.subr.bf16.mxu0 0
        %3108 = vmatpush1.bf16.msra.mxu0 0
        %3109 = vmatprep.subr.bf16.mxu0 0
        %3110 = vmatpush1.bf16.msra.mxu0 0
        %3111 = vmatprep.subr.bf16.mxu0 0
        %3112 = vmatpush1.bf16.msra.mxu0 0
        %3113 = vmatprep.mubr.bf16.mxu0 0
        %3114 = vmatmul.mubr.bf16.gmra.mrb[0].mxu0 %v2888
        %v3115 = vpop.f32.mrb[0].mxu0
        %v3116 = vadd.f32 %v2941, %v3115
        %v3117 = vpop.f32.mrb[0].mxu0
        %v3118 = vadd.f32 %v2945, %v3117
        %v3119 = vpop.f32.mrb[0].mxu0
        %v3120 = vadd.f32 %v2941, %v3119
        %v3121 = vpop.f32.mrb[0].mxu0
        %v3122 = vadd.f32 %v2945, %v3121
        %3123 = vmatprep.mubr.bf16.mxu0 0
        %3124 = vmatmul.mubr.bf16.gmra.mrb[0].mxu0 %v2889
        %v3125 = vpop.f32.mrb[0].mxu0
        %v3126 = vadd.f32 %v2941, %v3125
        %v3127 = vpop.f32.mrb[0].mxu0
        %v3128 = vadd.f32 %v2945, %v3127
        %v3129 = vpop.f32.mrb[0].mxu0
        %v3130 = vadd.f32 %v2941, %v3129
        %v3131 = vpop.f32.mrb[0].mxu0
        %v3132 = vadd.f32 %v2945, %v3131
        %3133 = vmatprep.mubr.bf16.mxu0 0
        %3134 = vmatmul.mubr.bf16.gmra.mrb[0].mxu0 %v2890
        %v3135 = vpop.f32.mrb[0].mxu0
        %v3136 = vadd.f32 %v2941, %v3135
        %v3137 = vpop.f32.mrb[0].mxu0
        %v3138 = vadd.f32 %v2945, %v3137
        %v3139 = vpop.f32.mrb[0].mxu0
        %v3140 = vadd.f32 %v2941, %v3139
        %v3141 = vpop.f32.mrb[0].mxu0
        %v3142 = vadd.f32 %v2945, %v3141
        %3143 = vmatprep.mubr.bf16.mxu0 0
        %3144 = vmatmul.mubr.bf16.gmra.mrb[0].mxu0 %v2891
        %v3145 = vpop.f32.mrb[0].mxu0
        %v3146 = vadd.f32 %v2941, %v3145
        %v3147 = vpop.f32.mrb[0].mxu0
        %v3148 = vadd.f32 %v2945, %v3147
        %v3149 = vpop.f32.mrb[0].mxu0
        %v3150 = vadd.f32 %v2941, %v3149
        %v3151 = vpop.f32.mrb[0].mxu0
        %v3152 = vadd.f32 %v2945, %v3151
        %3153 = vmatprep.mubr.bf16.mxu0 0
        %3154 = vmatmul.mubr.bf16.gmra.mrb[0].mxu0 %v2892
        %v3155 = vpop.f32.mrb[0].mxu0
        %v3156 = vadd.f32 %v2941, %v3155
        %v3157 = vpop.f32.mrb[0].mxu0
        %v3158 = vadd.f32 %v2945, %v3157
        %v3159 = vpop.f32.mrb[0].mxu0
        %v3160 = vadd.f32 %v2941, %v3159
        %v3161 = vpop.f32.mrb[0].mxu0
        %v3162 = vadd.f32 %v2945, %v3161
        %3163 = vmatprep.mubr.bf16.mxu0 0
        %3164 = vmatmul.mubr.bf16.gmra.mrb[0].mxu0 %v2893
        %v3165 = vpop.f32.mrb[0].mxu0
        %v3166 = vadd.f32 %v2941, %v3165
        %v3167 = vpop.f32.mrb[0].mxu0
        %v3168 = vadd.f32 %v2945, %v3167
        %v3169 = vpop.f32.mrb[0].mxu0
        %v3170 = vadd.f32 %v2941, %v3169
        %v3171 = vpop.f32.mrb[0].mxu0
        %v3172 = vadd.f32 %v2945, %v3171
        %3173 = vmatprep.mubr.bf16.mxu0 0
        %3174 = vmatmul.mubr.bf16.gmra.mrb[0].mxu0 %v2894
        %v3175 = vpop.f32.mrb[0].mxu0
        %v3176 = vadd.f32 %v2941, %v3175
        %v3177 = vpop.f32.mrb[0].mxu0
        %v3178 = vadd.f32 %v2945, %v3177
        %v3179 = vpop.f32.mrb[0].mxu0
        %v3180 = vadd.f32 %v2941, %v3179
        %v3181 = vpop.f32.mrb[0].mxu0
        %v3182 = vadd.f32 %v2945, %v3181
        %3183 = vmatprep.mubr.bf16.mxu0 0
        %3184 = vmatmul.mubr.bf16.gmra.mrb[0].mxu0 %v2895
        %v3185 = vpop.f32.mrb[0].mxu0
        %v3186 = vadd.f32 %v2941, %v3185
        %v3187 = vpop.f32.mrb[0].mxu0
        %v3188 = vadd.f32 %v2945, %v3187
        %v3189 = vpop.f32.mrb[0].mxu0
        %v3190 = vadd.f32 %v2941, %v3189
        %v3191 = vpop.f32.mrb[0].mxu0
        %v3192 = vadd.f32 %v2945, %v3191
        %3193 = vmatprep.mubr.bf16.mxu0 0
        %3194 = vmatmul.mubr.bf16.gmra.mrb[0].mxu0 %v2896
        %v3195 = vpop.f32.mrb[0].mxu0
        %v3196 = vadd.f32 %v2941, %v3195
        %v3197 = vpop.f32.mrb[0].mxu0
        %v3198 = vadd.f32 %v2945, %v3197
        %v3199 = vpop.f32.mrb[0].mxu0
        %v3200 = vadd.f32 %v2941, %v3199
        %v3201 = vpop.f32.mrb[0].mxu0
        %v3202 = vadd.f32 %v2945, %v3201
        %3203 = vmatprep.mubr.bf16.mxu0 0
        %3204 = vmatmul.mubr.bf16.gmra.mrb[0].mxu0 %v2897
        %v3205 = vpop.f32.mrb[0].mxu0
        %v3206 = vadd.f32 %v2941, %v3205
        %v3207 = vpop.f32.mrb[0].mxu0
        %v3208 = vadd.f32 %v2945, %v3207
        %v3209 = vpop.f32.mrb[0].mxu0
        %v3210 = vadd.f32 %v2941, %v3209
        %v3211 = vpop.f32.mrb[0].mxu0
        %v3212 = vadd.f32 %v2945, %v3211
        %3213 = vmatprep.mubr.bf16.mxu0 0
        %3214 = vmatmul.mubr.bf16.gmra.mrb[0].mxu0 %v2898
        %v3215 = vpop.f32.mrb[0].mxu0
        %v3216 = vadd.f32 %v2941, %v3215
        %v3217 = vpop.f32.mrb[0].mxu0
        %v3218 = vadd.f32 %v2945, %v3217
        %v3219 = vpop.f32.mrb[0].mxu0
        %v3220 = vadd.f32 %v2941, %v3219
        %v3221 = vpop.f32.mrb[0].mxu0
        %v3222 = vadd.f32 %v2945, %v3221
        %3223 = vmatprep.mubr.bf16.mxu0 0
        %3224 = vmatmul.mubr.bf16.gmra.mrb[0].mxu0 %v2899
        %v3225 = vpop.f32.mrb[0].mxu0
        %v3226 = vadd.f32 %v2941, %v3225
        %v3227 = vpop.f32.mrb[0].mxu0
        %v3228 = vadd.f32 %v2945, %v3227
        %v3229 = vpop.f32.mrb[0].mxu0
        %v3230 = vadd.f32 %v2941, %v3229
        %v3231 = vpop.f32.mrb[0].mxu0
        %v3232 = vadd.f32 %v2945, %v3231
        %3233 = vmatprep.mubr.bf16.mxu0 0
        %3234 = vmatmul.mubr.bf16.gmra.mrb[0].mxu0 %v2900
        %v3235 = vpop.f32.mrb[0].mxu0
        %v3236 = vadd.f32 %v2941, %v3235
        %v3237 = vpop.f32.mrb[0].mxu0
        %v3238 = vadd.f32 %v2945, %v3237
        %v3239 = vpop.f32.mrb[0].mxu0
        %v3240 = vadd.f32 %v2941, %v3239
        %v3241 = vpop.f32.mrb[0].mxu0
        %v3242 = vadd.f32 %v2945, %v3241
        %3243 = vmatprep.mubr.bf16.mxu0 0
        %3244 = vmatmul.mubr.bf16.gmra.mrb[0].mxu0 %v2901
        %v3245 = vpop.f32.mrb[0].mxu0
        %v3246 = vadd.f32 %v2941, %v3245
        %v3247 = vpop.f32.mrb[0].mxu0
        %v3248 = vadd.f32 %v2945, %v3247
        %v3249 = vpop.f32.mrb[0].mxu0
        %v3250 = vadd.f32 %v2941, %v3249
        %v3251 = vpop.f32.mrb[0].mxu0
        %v3252 = vadd.f32 %v2945, %v3251
        %3253 = vmatprep.mubr.bf16.mxu0 0
        %3254 = vmatmul.mubr.bf16.gmra.mrb[0].mxu0 %v2902
        %v3255 = vpop.f32.mrb[0].mxu0
        %v3256 = vadd.f32 %v2941, %v3255
        %v3257 = vpop.f32.mrb[0].mxu0
        %v3258 = vadd.f32 %v2945, %v3257
        %v3259 = vpop.f32.mrb[0].mxu0
        %v3260 = vadd.f32 %v2941, %v3259
        %v3261 = vpop.f32.mrb[0].mxu0
        %v3262 = vadd.f32 %v2945, %v3261
        %3263 = vmatprep.mubr.bf16.mxu0 0
        %3264 = vmatmul.mubr.bf16.gmra.mrb[0].mxu0 %v2903
        %v3265 = vpop.f32.mrb[0].mxu0
        %v3266 = vadd.f32 %v2941, %v3265
        %v3267 = vpop.f32.mrb[0].mxu0
        %v3268 = vadd.f32 %v2945, %v3267
        %v3269 = vpop.f32.mrb[0].mxu0
        %v3270 = vadd.f32 %v2941, %v3269
        %v3271 = vpop.f32.mrb[0].mxu0
        %v3272 = vadd.f32 %v2945, %v3271
        %3273 = vdwg.mxu0
        %3274 = vmatprep.subr.bf16.mxu0 0
        %3275 = vmatpush1.bf16.msra.mxu0 %v3035
        %3276 = vmatprep.subr.bf16.mxu0 0
        %3277 = vmatpush1.bf16.msra.mxu0 %v3038
        %3278 = vmatprep.subr.bf16.mxu0 0
        %3279 = vmatpush1.bf16.msra.mxu0 %v3041
        %3280 = vmatprep.subr.bf16.mxu0 0
        %3281 = vmatpush1.bf16.msra.mxu0 %v3044
        %3282 = vmatprep.subr.bf16.mxu0 0
        %3283 = vmatpush1.bf16.msra.mxu0 %v3047
        %3284 = vmatprep.subr.bf16.mxu0 0
        %3285 = vmatpush1.bf16.msra.mxu0 %v3050
        %3286 = vmatprep.subr.bf16.mxu0 0
        %3287 = vmatpush1.bf16.msra.mxu0 %v3053
        %3288 = vmatprep.subr.bf16.mxu0 0
        %3289 = vmatpush1.bf16.msra.mxu0 %v3056
        %3290 = vmatprep.subr.bf16.mxu0 0
        %3291 = vmatpush1.bf16.msra.mxu0 0
        %3292 = vmatprep.subr.bf16.mxu0 0
        %3293 = vmatpush1.bf16.msra.mxu0 0
        %3294 = vmatprep.subr.bf16.mxu0 0
        %3295 = vmatpush1.bf16.msra.mxu0 0
        %3296 = vmatprep.subr.bf16.mxu0 0
        %3297 = vmatpush1.bf16.msra.mxu0 0
        %3298 = vmatprep.subr.bf16.mxu0 0
        %3299 = vmatpush1.bf16.msra.mxu0 0
        %3300 = vmatprep.subr.bf16.mxu0 0
        %3301 = vmatpush1.bf16.msra.mxu0 0
        %3302 = vmatprep.subr.bf16.mxu0 0
        %3303 = vmatpush1.bf16.msra.mxu0 0
        %3304 = vmatprep.subr.bf16.mxu0 0
        %3305 = vmatpush1.bf16.msra.mxu0 0
        %3306 = vmatprep.mubr.bf16.mxu0 0
        %3307 = vmatmul.mubr.bf16.gmra.mrb[0].mxu0 %v2888
        %v3308 = vpop.f32.mrb[0].mxu0
        %v3309 = vadd.f32 %v2949, %v3308
        %v3310 = vpop.f32.mrb[0].mxu0
        %v3311 = vpop.f32.mrb[0].mxu0
        %v3312 = vadd.f32 %v2949, %v3311
        %v3313 = vpop.f32.mrb[0].mxu0
        %3314 = vmatprep.mubr.bf16.mxu0 0
        %3315 = vmatmul.mubr.bf16.gmra.mrb[0].mxu0 %v2889
        %v3316 = vpop.f32.mrb[0].mxu0
        %v3317 = vadd.f32 %v2949, %v3316
        %v3318 = vpop.f32.mrb[0].mxu0
        %v3319 = vpop.f32.mrb[0].mxu0
        %v3320 = vadd.f32 %v2949, %v3319
        %v3321 = vpop.f32.mrb[0].mxu0
        %3322 = vmatprep.mubr.bf16.mxu0 0
        %3323 = vmatmul.mubr.bf16.gmra.mrb[0].mxu0 %v2890
        %v3324 = vpop.f32.mrb[0].mxu0
        %v3325 = vadd.f32 %v2949, %v3324
        %v3326 = vpop.f32.mrb[0].mxu0
        %v3327 = vpop.f32.mrb[0].mxu0
        %v3328 = vadd.f32 %v2949, %v3327
        %v3329 = vpop.f32.mrb[0].mxu0
        %3330 = vmatprep.mubr.bf16.mxu0 0
        %3331 = vmatmul.mubr.bf16.gmra.mrb[0].mxu0 %v2891
        %v3332 = vpop.f32.mrb[0].mxu0
        %v3333 = vadd.f32 %v2949, %v3332
        %v3334 = vpop.f32.mrb[0].mxu0
        %v3335 = vpop.f32.mrb[0].mxu0
        %v3336 = vadd.f32 %v2949, %v3335
        %v3337 = vpop.f32.mrb[0].mxu0
        %3338 = vmatprep.mubr.bf16.mxu0 0
        %3339 = vmatmul.mubr.bf16.gmra.mrb[0].mxu0 %v2892
        %v3340 = vpop.f32.mrb[0].mxu0
        %v3341 = vadd.f32 %v2949, %v3340
        %v3342 = vpop.f32.mrb[0].mxu0
        %v3343 = vpop.f32.mrb[0].mxu0
        %v3344 = vadd.f32 %v2949, %v3343
        %v3345 = vpop.f32.mrb[0].mxu0
        %3346 = vmatprep.mubr.bf16.mxu0 0
        %3347 = vmatmul.mubr.bf16.gmra.mrb[0].mxu0 %v2893
        %v3348 = vpop.f32.mrb[0].mxu0
        %v3349 = vadd.f32 %v2949, %v3348
        %v3350 = vpop.f32.mrb[0].mxu0
        %v3351 = vpop.f32.mrb[0].mxu0
        %v3352 = vadd.f32 %v2949, %v3351
        %v3353 = vpop.f32.mrb[0].mxu0
        %3354 = vmatprep.mubr.bf16.mxu0 0
        %3355 = vmatmul.mubr.bf16.gmra.mrb[0].mxu0 %v2894
        %v3356 = vpop.f32.mrb[0].mxu0
        %v3357 = vadd.f32 %v2949, %v3356
        %v3358 = vpop.f32.mrb[0].mxu0
        %v3359 = vpop.f32.mrb[0].mxu0
        %v3360 = vadd.f32 %v2949, %v3359
        %v3361 = vpop.f32.mrb[0].mxu0
        %3362 = vmatprep.mubr.bf16.mxu0 0
        %3363 = vmatmul.mubr.bf16.gmra.mrb[0].mxu0 %v2895
        %v3364 = vpop.f32.mrb[0].mxu0
        %v3365 = vadd.f32 %v2949, %v3364
        %v3366 = vpop.f32.mrb[0].mxu0
        %v3367 = vpop.f32.mrb[0].mxu0
        %v3368 = vadd.f32 %v2949, %v3367
        %v3369 = vpop.f32.mrb[0].mxu0
        %3370 = vmatprep.mubr.bf16.mxu0 0
        %3371 = vmatmul.mubr.bf16.gmra.mrb[0].mxu0 %v2896
        %v3372 = vpop.f32.mrb[0].mxu0
        %v3373 = vadd.f32 %v2949, %v3372
        %v3374 = vpop.f32.mrb[0].mxu0
        %v3375 = vpop.f32.mrb[0].mxu0
        %v3376 = vadd.f32 %v2949, %v3375
        %v3377 = vpop.f32.mrb[0].mxu0
        %3378 = vmatprep.mubr.bf16.mxu0 0
        %3379 = vmatmul.mubr.bf16.gmra.mrb[0].mxu0 %v2897
        %v3380 = vpop.f32.mrb[0].mxu0
        %v3381 = vadd.f32 %v2949, %v3380
        %v3382 = vpop.f32.mrb[0].mxu0
        %v3383 = vpop.f32.mrb[0].mxu0
        %v3384 = vadd.f32 %v2949, %v3383
        %v3385 = vpop.f32.mrb[0].mxu0
        %3386 = vmatprep.mubr.bf16.mxu0 0
        %3387 = vmatmul.mubr.bf16.gmra.mrb[0].mxu0 %v2898
        %v3388 = vpop.f32.mrb[0].mxu0
        %v3389 = vadd.f32 %v2949, %v3388
        %v3390 = vpop.f32.mrb[0].mxu0
        %v3391 = vpop.f32.mrb[0].mxu0
        %v3392 = vadd.f32 %v2949, %v3391
        %v3393 = vpop.f32.mrb[0].mxu0
        %3394 = vmatprep.mubr.bf16.mxu0 0
        %3395 = vmatmul.mubr.bf16.gmra.mrb[0].mxu0 %v2899
        %v3396 = vpop.f32.mrb[0].mxu0
        %v3397 = vadd.f32 %v2949, %v3396
        %v3398 = vpop.f32.mrb[0].mxu0
        %v3399 = vpop.f32.mrb[0].mxu0
        %v3400 = vadd.f32 %v2949, %v3399
        %v3401 = vpop.f32.mrb[0].mxu0
        %3402 = vmatprep.mubr.bf16.mxu0 0
        %3403 = vmatmul.mubr.bf16.gmra.mrb[0].mxu0 %v2900
        %v3404 = vpop.f32.mrb[0].mxu0
        %v3405 = vadd.f32 %v2949, %v3404
        %v3406 = vpop.f32.mrb[0].mxu0
        %v3407 = vpop.f32.mrb[0].mxu0
        %v3408 = vadd.f32 %v2949, %v3407
        %v3409 = vpop.f32.mrb[0].mxu0
        %3410 = vmatprep.mubr.bf16.mxu0 0
        %3411 = vmatmul.mubr.bf16.gmra.mrb[0].mxu0 %v2901
        %v3412 = vpop.f32.mrb[0].mxu0
        %v3413 = vadd.f32 %v2949, %v3412
        %v3414 = vpop.f32.mrb[0].mxu0
        %v3415 = vpop.f32.mrb[0].mxu0
        %v3416 = vadd.f32 %v2949, %v3415
        %v3417 = vpop.f32.mrb[0].mxu0
        %3418 = vmatprep.mubr.bf16.mxu0 0
        %3419 = vmatmul.mubr.bf16.gmra.mrb[0].mxu0 %v2902
        %v3420 = vpop.f32.mrb[0].mxu0
        %v3421 = vadd.f32 %v2949, %v3420
        %v3422 = vpop.f32.mrb[0].mxu0
        %v3423 = vpop.f32.mrb[0].mxu0
        %v3424 = vadd.f32 %v2949, %v3423
        %v3425 = vpop.f32.mrb[0].mxu0
        %3426 = vmatprep.mubr.bf16.mxu0 0
        %3427 = vmatmul.mubr.bf16.gmra.mrb[0].mxu0 %v2903
        %v3428 = vpop.f32.mrb[0].mxu0
        %v3429 = vadd.f32 %v2949, %v3428
        %v3430 = vpop.f32.mrb[0].mxu0
        %v3431 = vpop.f32.mrb[0].mxu0
        %v3432 = vadd.f32 %v2949, %v3431
        %v3433 = vpop.f32.mrb[0].mxu0
        %3434 = vdwg.mxu0
        %v3435 = vpack.c.bf16 %v3120, %v3116
        %v3436 = vpack.c.bf16 %v3122, %v3118
        %v3437 = vpack.c.bf16 %v3312, %v3309
        %v3438 = vpack.c.bf16 %v3130, %v3126
        %v3439 = vpack.c.bf16 %v3132, %v3128
        %v3440 = vpack.c.bf16 %v3320, %v3317
        %v3441 = vpack.c.bf16 %v3140, %v3136
        %v3442 = vpack.c.bf16 %v3142, %v3138
        %v3443 = vpack.c.bf16 %v3328, %v3325
        %v3444 = vpack.c.bf16 %v3150, %v3146
        %v3445 = vpack.c.bf16 %v3152, %v3148
        %v3446 = vpack.c.bf16 %v3336, %v3333
        %v3447 = vpack.c.bf16 %v3160, %v3156
        %v3448 = vpack.c.bf16 %v3162, %v3158
        %v3449 = vpack.c.bf16 %v3344, %v3341
        %v3450 = vpack.c.bf16 %v3170, %v3166
        %v3451 = vpack.c.bf16 %v3172, %v3168
        %v3452 = vpack.c.bf16 %v3352, %v3349
        %v3453 = vpack.c.bf16 %v3180, %v3176
        %v3454 = vpack.c.bf16 %v3182, %v3178
        %v3455 = vpack.c.bf16 %v3360, %v3357
        %v3456 = vpack.c.bf16 %v3190, %v3186
        %v3457 = vpack.c.bf16 %v3192, %v3188
        %v3458 = vpack.c.bf16 %v3368, %v3365
        %v3459 = vpack.c.bf16 %v3200, %v3196
        %v3460 = vpack.c.bf16 %v3202, %v3198
        %v3461 = vpack.c.bf16 %v3376, %v3373
        %v3462 = vpack.c.bf16 %v3210, %v3206
        %v3463 = vpack.c.bf16 %v3212, %v3208
        %v3464 = vpack.c.bf16 %v3384, %v3381
        %v3465 = vpack.c.bf16 %v3220, %v3216
        %v3466 = vpack.c.bf16 %v3222, %v3218
        %v3467 = vpack.c.bf16 %v3392, %v3389
        %v3468 = vpack.c.bf16 %v3230, %v3226
        %v3469 = vpack.c.bf16 %v3232, %v3228
        %v3470 = vpack.c.bf16 %v3400, %v3397
        %v3471 = vpack.c.bf16 %v3240, %v3236
        %v3472 = vpack.c.bf16 %v3242, %v3238
        %v3473 = vpack.c.bf16 %v3408, %v3405
        %v3474 = vpack.c.bf16 %v3250, %v3246
        %v3475 = vpack.c.bf16 %v3252, %v3248
        %v3476 = vpack.c.bf16 %v3416, %v3413
        %v3477 = vpack.c.bf16 %v3260, %v3256
        %v3478 = vpack.c.bf16 %v3262, %v3258
        %v3479 = vpack.c.bf16 %v3424, %v3421
        %v3480 = vpack.c.bf16 %v3270, %v3266
        %v3481 = vpack.c.bf16 %v3272, %v3268
        %v3482 = vpack.c.bf16 %v3432, %v3429
        %v3531 = vunpack.c.l.b16 %v3435
        %v3532 = vunpack.c.l.b16 %v3436
        %v3533 = vunpack.c.l.b16 %v3437
        %v3534 = vunpack.c.h.b16 %v3435
        %v3535 = vunpack.c.h.b16 %v3436
        %v3536 = vunpack.c.h.b16 %v3437
        %v3537 = vunpack.c.l.b16 %v3438
        %v3538 = vunpack.c.l.b16 %v3439
        %v3539 = vunpack.c.l.b16 %v3440
        %v3540 = vunpack.c.h.b16 %v3438
        %v3541 = vunpack.c.h.b16 %v3439
        %v3542 = vunpack.c.h.b16 %v3440
        %v3543 = vunpack.c.l.b16 %v3441
        %v3544 = vunpack.c.l.b16 %v3442
        %v3545 = vunpack.c.l.b16 %v3443
        %v3546 = vunpack.c.h.b16 %v3441
        %v3547 = vunpack.c.h.b16 %v3442
        %v3548 = vunpack.c.h.b16 %v3443
        %v3549 = vunpack.c.l.b16 %v3444
        %v3550 = vunpack.c.l.b16 %v3445
        %v3551 = vunpack.c.l.b16 %v3446
        %v3552 = vunpack.c.h.b16 %v3444
        %v3553 = vunpack.c.h.b16 %v3445
        %v3554 = vunpack.c.h.b16 %v3446
        %v3555 = vunpack.c.l.b16 %v3447
        %v3556 = vunpack.c.l.b16 %v3448
        %v3557 = vunpack.c.l.b16 %v3449
        %v3558 = vunpack.c.h.b16 %v3447
        %v3559 = vunpack.c.h.b16 %v3448
        %v3560 = vunpack.c.h.b16 %v3449
        %v3561 = vunpack.c.l.b16 %v3450
        %v3562 = vunpack.c.l.b16 %v3451
        %v3563 = vunpack.c.l.b16 %v3452
        %v3564 = vunpack.c.h.b16 %v3450
        %v3565 = vunpack.c.h.b16 %v3451
        %v3566 = vunpack.c.h.b16 %v3452
        %v3567 = vunpack.c.l.b16 %v3453
        %v3568 = vunpack.c.l.b16 %v3454
        %v3569 = vunpack.c.l.b16 %v3455
        %v3570 = vunpack.c.h.b16 %v3453
        %v3571 = vunpack.c.h.b16 %v3454
        %v3572 = vunpack.c.h.b16 %v3455
        %v3573 = vunpack.c.l.b16 %v3456
        %v3574 = vunpack.c.l.b16 %v3457
        %v3575 = vunpack.c.l.b16 %v3458
        %v3576 = vunpack.c.h.b16 %v3456
        %v3577 = vunpack.c.h.b16 %v3457
        %v3578 = vunpack.c.h.b16 %v3458
        %v3579 = vunpack.c.l.b16 %v3459
        %v3580 = vunpack.c.l.b16 %v3460
        %v3581 = vunpack.c.l.b16 %v3461
        %v3582 = vunpack.c.h.b16 %v3459
        %v3583 = vunpack.c.h.b16 %v3460
        %v3584 = vunpack.c.h.b16 %v3461
        %v3585 = vunpack.c.l.b16 %v3462
        %v3586 = vunpack.c.l.b16 %v3463
        %v3587 = vunpack.c.l.b16 %v3464
        %v3588 = vunpack.c.h.b16 %v3462
        %v3589 = vunpack.c.h.b16 %v3463
        %v3590 = vunpack.c.h.b16 %v3464
        %v3591 = vunpack.c.l.b16 %v3465
        %v3592 = vunpack.c.l.b16 %v3466
        %v3593 = vunpack.c.l.b16 %v3467
        %v3594 = vunpack.c.h.b16 %v3465
        %v3595 = vunpack.c.h.b16 %v3466
        %v3596 = vunpack.c.h.b16 %v3467
        %v3597 = vunpack.c.l.b16 %v3468
        %v3598 = vunpack.c.l.b16 %v3469
        %v3599 = vunpack.c.l.b16 %v3470
        %v3600 = vunpack.c.h.b16 %v3468
        %v3601 = vunpack.c.h.b16 %v3469
        %v3602 = vunpack.c.h.b16 %v3470
        %v3603 = vunpack.c.l.b16 %v3471
        %v3604 = vunpack.c.l.b16 %v3472
        %v3605 = vunpack.c.l.b16 %v3473
        %v3606 = vunpack.c.h.b16 %v3471
        %v3607 = vunpack.c.h.b16 %v3472
        %v3608 = vunpack.c.h.b16 %v3473
        %v3609 = vunpack.c.l.b16 %v3474
        %v3610 = vunpack.c.l.b16 %v3475
        %v3611 = vunpack.c.l.b16 %v3476
        %v3612 = vunpack.c.h.b16 %v3474
        %v3613 = vunpack.c.h.b16 %v3475
        %v3614 = vunpack.c.h.b16 %v3476
        %v3615 = vunpack.c.l.b16 %v3477
        %v3616 = vunpack.c.l.b16 %v3478
        %v3617 = vunpack.c.l.b16 %v3479
        %v3618 = vunpack.c.h.b16 %v3477
        %v3619 = vunpack.c.h.b16 %v3478
        %v3620 = vunpack.c.h.b16 %v3479
        %v3621 = vunpack.c.l.b16 %v3480
        %v3622 = vunpack.c.l.b16 %v3481
        %v3623 = vunpack.c.l.b16 %v3482
        %v3624 = vunpack.c.h.b16 %v3480
        %v3625 = vunpack.c.h.b16 %v3481
        %v3626 = vunpack.c.h.b16 %v3482
        %v3627 = vpack.c.b16 %v3532, %v3531
        %v3628 = vpack.c.b16 %v3533, %v3533
        %v3629 = vpack.c.b16 %v3535, %v3534
        %v3630 = vpack.c.b16 %v3536, %v3536
        %v3631 = vpack.c.b16 %v3538, %v3537
        %v3632 = vpack.c.b16 %v3539, %v3539
        %v3633 = vpack.c.b16 %v3541, %v3540
        %v3634 = vpack.c.b16 %v3542, %v3542
        %v3635 = vpack.c.b16 %v3544, %v3543
        %v3636 = vpack.c.b16 %v3545, %v3545
        %v3637 = vpack.c.b16 %v3547, %v3546
        %v3638 = vpack.c.b16 %v3548, %v3548
        %v3639 = vpack.c.b16 %v3550, %v3549
        %v3640 = vpack.c.b16 %v3551, %v3551
        %v3641 = vpack.c.b16 %v3553, %v3552
        %v3642 = vpack.c.b16 %v3554, %v3554
        %v3643 = vpack.c.b16 %v3556, %v3555
        %v3644 = vpack.c.b16 %v3557, %v3557
        %v3645 = vpack.c.b16 %v3559, %v3558
        %v3646 = vpack.c.b16 %v3560, %v3560
        %v3647 = vpack.c.b16 %v3562, %v3561
        %v3648 = vpack.c.b16 %v3563, %v3563
        %v3649 = vpack.c.b16 %v3565, %v3564
        %v3650 = vpack.c.b16 %v3566, %v3566
        %v3651 = vpack.c.b16 %v3568, %v3567
        %v3652 = vpack.c.b16 %v3569, %v3569
        %v3653 = vpack.c.b16 %v3571, %v3570
        %v3654 = vpack.c.b16 %v3572, %v3572
        %v3655 = vpack.c.b16 %v3574, %v3573
        %v3656 = vpack.c.b16 %v3575, %v3575
        %v3657 = vpack.c.b16 %v3577, %v3576
        %v3658 = vpack.c.b16 %v3578, %v3578
        %v3659 = vpack.c.b16 %v3580, %v3579
        %v3660 = vpack.c.b16 %v3581, %v3581
        %v3661 = vpack.c.b16 %v3583, %v3582
        %v3662 = vpack.c.b16 %v3584, %v3584
        %v3663 = vpack.c.b16 %v3586, %v3585
        %v3664 = vpack.c.b16 %v3587, %v3587
        %v3665 = vpack.c.b16 %v3589, %v3588
        %v3666 = vpack.c.b16 %v3590, %v3590
        %v3667 = vpack.c.b16 %v3592, %v3591
        %v3668 = vpack.c.b16 %v3593, %v3593
        %v3669 = vpack.c.b16 %v3595, %v3594
        %v3670 = vpack.c.b16 %v3596, %v3596
        %v3671 = vpack.c.b16 %v3598, %v3597
        %v3672 = vpack.c.b16 %v3599, %v3599
        %v3673 = vpack.c.b16 %v3601, %v3600
        %v3674 = vpack.c.b16 %v3602, %v3602
        %v3675 = vpack.c.b16 %v3604, %v3603
        %v3676 = vpack.c.b16 %v3605, %v3605
        %v3677 = vpack.c.b16 %v3607, %v3606
        %v3678 = vpack.c.b16 %v3608, %v3608
        %v3679 = vpack.c.b16 %v3610, %v3609
        %v3680 = vpack.c.b16 %v3611, %v3611
        %v3681 = vpack.c.b16 %v3613, %v3612
        %v3682 = vpack.c.b16 %v3614, %v3614
        %v3683 = vpack.c.b16 %v3616, %v3615
        %v3684 = vpack.c.b16 %v3617, %v3617
        %v3685 = vpack.c.b16 %v3619, %v3618
        %v3686 = vpack.c.b16 %v3620, %v3620
        %v3687 = vpack.c.b16 %v3622, %v3621
        %v3688 = vpack.c.b16 %v3623, %v3623
        %v3689 = vpack.c.b16 %v3625, %v3624
        %v3690 = vpack.c.b16 %v3626, %v3626
        %3755 = vst [vmem:[%s190] sm:$0xff] %v3627
        %3756 = vst [vmem:[%s190 + $0x8] sm:$0xf] %v3628
        %3757 = vst [vmem:[%s190 + $0xc] sm:$0xff] %v3629
        %3758 = vst [vmem:[%s190 + $0x14] sm:$0xf] %v3630
        %3759 = vst [vmem:[%s190 + $0x18] sm:$0xff] %v3631
        %3760 = vst [vmem:[%s190 + $0x20] sm:$0xf] %v3632
        %3761 = vst [vmem:[%s190 + $0x24] sm:$0xff] %v3633
        %3762 = vst [vmem:[%s190 + $0x2c] sm:$0xf] %v3634
        %3763 = vst [vmem:[%s190 + $0x30] sm:$0xff] %v3635
        %3764 = vst [vmem:[%s190 + $0x38] sm:$0xf] %v3636
        %3765 = vst [vmem:[%s190 + $0x3c] sm:$0xff] %v3637
        %3766 = vst [vmem:[%s190 + $0x44] sm:$0xf] %v3638
        %3767 = vst [vmem:[%s190 + $0x48] sm:$0xff] %v3639
        %3768 = vst [vmem:[%s190 + $0x50] sm:$0xf] %v3640
        %3769 = vst [vmem:[%s190 + $0x54] sm:$0xff] %v3641
        %3770 = vst [vmem:[%s190 + $0x5c] sm:$0xf] %v3642
        %3771 = vst [vmem:[%s190 + $0x60] sm:$0xff] %v3643
        %3772 = vst [vmem:[%s190 + $0x68] sm:$0xf] %v3644
        %3773 = vst [vmem:[%s190 + $0x6c] sm:$0xff] %v3645
        %3774 = vst [vmem:[%s190 + $0x74] sm:$0xf] %v3646
        %3775 = vst [vmem:[%s190 + $0x78] sm:$0xff] %v3647
        %3776 = vst [vmem:[%s190 + $0x80] sm:$0xf] %v3648
        %3777 = vst [vmem:[%s190 + $0x84] sm:$0xff] %v3649
        %3778 = vst [vmem:[%s190 + $0x8c] sm:$0xf] %v3650
        %3779 = vst [vmem:[%s190 + $0x90] sm:$0xff] %v3651
        %3780 = vst [vmem:[%s190 + $0x98] sm:$0xf] %v3652
        %3781 = vst [vmem:[%s190 + $0x9c] sm:$0xff] %v3653
        %3782 = vst [vmem:[%s190 + $0xa4] sm:$0xf] %v3654
        %3783 = vst [vmem:[%s190 + $0xa8] sm:$0xff] %v3655
        %3784 = vst [vmem:[%s190 + $0xb0] sm:$0xf] %v3656
        %3785 = vst [vmem:[%s190 + $0xb4] sm:$0xff] %v3657
        %3786 = vst [vmem:[%s190 + $0xbc] sm:$0xf] %v3658
        %3787 = vst [vmem:[%s190 + $0xc0] sm:$0xff] %v3659
        %3788 = vst [vmem:[%s190 + $0xc8] sm:$0xf] %v3660
        %3789 = vst [vmem:[%s190 + $0xcc] sm:$0xff] %v3661
        %3790 = vst [vmem:[%s190 + $0xd4] sm:$0xf] %v3662
        %3791 = vst [vmem:[%s190 + $0xd8] sm:$0xff] %v3663
        %3792 = vst [vmem:[%s190 + $0xe0] sm:$0xf] %v3664
        %3793 = vst [vmem:[%s190 + $0xe4] sm:$0xff] %v3665
        %3794 = vst [vmem:[%s190 + $0xec] sm:$0xf] %v3666
        %3795 = vst [vmem:[%s190 + $0xf0] sm:$0xff] %v3667
        %3796 = vst [vmem:[%s190 + $0xf8] sm:$0xf] %v3668
        %3797 = vst [vmem:[%s190 + $0xfc] sm:$0xff] %v3669
        %3798 = vst [vmem:[%s190 + $0x104] sm:$0xf] %v3670
        %3799 = vst [vmem:[%s190 + $0x108] sm:$0xff] %v3671
        %3800 = vst [vmem:[%s190 + $0x110] sm:$0xf] %v3672
        %3801 = vst [vmem:[%s190 + $0x114] sm:$0xff] %v3673
        %3802 = vst [vmem:[%s190 + $0x11c] sm:$0xf] %v3674
        %3803 = vst [vmem:[%s190 + $0x120] sm:$0xff] %v3675
        %3804 = vst [vmem:[%s190 + $0x128] sm:$0xf] %v3676
        %3805 = vst [vmem:[%s190 + $0x12c] sm:$0xff] %v3677
        %3806 = vst [vmem:[%s190 + $0x134] sm:$0xf] %v3678
        %3807 = vst [vmem:[%s190 + $0x138] sm:$0xff] %v3679
        %3808 = vst [vmem:[%s190 + $0x140] sm:$0xf] %v3680
        %3809 = vst [vmem:[%s190 + $0x144] sm:$0xff] %v3681
        %3810 = vst [vmem:[%s190 + $0x14c] sm:$0xf] %v3682
        %3811 = vst [vmem:[%s190 + $0x150] sm:$0xff] %v3683
        %3812 = vst [vmem:[%s190 + $0x158] sm:$0xf] %v3684
        %3813 = vst [vmem:[%s190 + $0x15c] sm:$0xff] %v3685
        %3814 = vst [vmem:[%s190 + $0x164] sm:$0xf] %v3686
        %3815 = vst [vmem:[%s190 + $0x168] sm:$0xff] %v3687
        %3816 = vst [vmem:[%s190 + $0x170] sm:$0xf] %v3688
        %3817 = vst [vmem:[%s190 + $0x174] sm:$0xff] %v3689
        %3818 = vst [vmem:[%s190 + $0x17c] sm:$0xf] %v3690
        %s3819 = sand.u32 %s115, 1
        %s3820 = scalar_lea.sflag [#allocation3], %s3819
        %s3821 = sand.u32 %s115, 1
        %s3822 = smul.addr %s3821, 384
        %s3823 = scalar_lea.vmem [#allocation2], %s3822
        // Predicated region
        $region37: #{tpu_custom_call.1} parent=35 // pred_check
          %p3824 = pneg %p125
        $region38: #{tpu_custom_call.1} parent=35 // pred_check_branch
          %3826 = sbr.rel (%p3824) target = $region40
        $region39: #{tpu_custom_call.1} parent=35 // pred_region
          %s3828 = ssub.s32 6144, 6144
          %3829 = vsyncadd %s3820, %s3828
          %s3830 = smul.addr %s18, 96
          %s3831 = smul.addr %s3830, 64
          %s3832 = scalar_lea.hbm %s4, %s3831
          %s3833 = sshll.u32 %s3823, 4
          %s3834 = int_to_ptr.vmem [resolvable:$true] %s3833
          %3839 = dma.vmem_to_hbm [thread:$0]  %s3834, 6144, %s3832, %s3820, 192, 192, 12
        $region40: #{tpu_custom_call.1} parent=35 // pred_fallthru
          _
      $region36: #{tpu_custom_call.1} parent=5 // pred_fallthru
        _
      %p3840 = scmp.le.s32.totalorder 2, %s13
      // Predicated region
      $region41: #{tpu_custom_call.1} parent=5 // pred_check
        %p3841 = pneg %p3840
      $region42: #{tpu_custom_call.1} parent=5 // pred_check_branch
        %3843 = sbr.rel (%p3841) target = $region44
      $region43: #{tpu_custom_call.1} parent=5 // pred_region
        %s3844 = ssub.s32 %s13, 2
        // Predicated region
        $region45: #{tpu_custom_call.1} parent=43 // pred_check
          %p3845 = pneg %p131
        $region46: #{tpu_custom_call.1} parent=43 // pred_check_branch
          %3847 = sbr.rel (%p3845) target = $region48
        $region47: #{tpu_custom_call.1} parent=43 // pred_region
          %s3848 = sand.u32 %s116, 1
          %s3849 = scalar_lea.sflag [#allocation3], %s3848
          %s3850 = sand.u32 %s116, 1
          %s3851 = smul.addr %s3850, 384
          %s3852 = scalar_lea.vmem [#allocation2], %s3851
          %3853 = dma.done %s3849, 6144
        $region48: #{tpu_custom_call.1} parent=43 // pred_fallthru
          _
      $region44: #{tpu_custom_call.1} parent=5 // pred_fallthru
        _
    $region6: #{tpu_custom_call.1} parent=1 // loop_footer
      %s17 = sadd.s32 1, %s13
    $region7: #{tpu_custom_call.1} parent=1 // loop_footer_branch
      %12 = sbr.rel target = $region3
    $region8: #{tpu_custom_call.1} parent=1 // loop_exit
      _
    %3854 = vsyncpa [#allocation3], 1
    %s3855 = scalar_lea.sflag [#allocation3], 1
    %3856 = vsyncpa %s3855, 1

</llo_original>
